<compile_context>
chip_gen: v7x
topology: tpu7x:2x2x1
jax: 0.10.0
libtpu: 0.0.40
codegen_flags: <defaults>
</compile_context>

<pallas_src>
import functools
import math

import jax
import jax.numpy as jnp
from jax.experimental import pallas as pl
from jax.experimental.pallas import tpu as pltpu


def _round_up(n, m):
    return ((n + m - 1) // m) * m


# ----------------------------------------------------------------------------
# Kernel
# ----------------------------------------------------------------------------
def _geb_kernel(x_ref, v_ref, wv_ref, w1x_ref, w1v_ref, b1_ref, w2_ref, b2_ref,
                ox_ref, ov_ref, *, scalar_activation):
    # x_ref : (tm, Hp)            scalar features tile
    # v_ref : (S, tm, Hp)         vector features tile (spatial-major layout)
    # wv_ref: (Hp, Hp + Op)       fused [W_vec1.T | W_vec2.T], lane-padded halves
    # w1x_ref, w1v_ref: (Hp, Ip)  first MLP layer split so concat([x, vec1]) is
    #                             two matmuls instead of a lane concat
    # b1_ref: (1, Ip)  f32
    # w2_ref: (Ip, 2*Op)          fused [scalar head | gate head], lane-aligned
    # b2_ref: (1, 2*Op) f32
    # ox_ref: (tm, Op)            scalar output
    # ov_ref: (S, tm, Op)         vector output
    s_dim, tm, hp = v_ref.shape
    op = ox_ref.shape[-1]

    # --- fused vec1/vec2 projection: ONE long-M MXU stream over (S*tm, Hp) ---
    # Leading-dim collapse is free: (tm, Hp) slabs are (8,128)-tile aligned.
    v_all = v_ref[...].reshape(s_dim * tm, hp)
    p = jnp.dot(v_all, wv_ref[...], preferred_element_type=jnp.float32)

    # vec2 goes straight into the output block (output dtype) instead of being
    # kept live in f32 across two more matmuls; it is gated with a
    # read-modify-write at the end of the step.
    ov_ref[...] = p[:, hp:].reshape(s_dim, tm, op).astype(ov_ref.dtype)

    # ||vec1_buffer||_2 over the spatial axis (sum of S elementwise squares).
    vb = p[:, :hp]
    sq = (vb * vb).reshape(s_dim, tm, hp).sum(axis=0)
    vec1 = jnp.sqrt(sq)                                  # (tm, Hp), f32

    # --- update_net layer 1: concat([x, vec1]) folded into two matmuls -------
    h = jnp.dot(x_ref[...], w1x_ref[...], preferred_element_type=jnp.float32)
    h = h + jnp.dot(vec1.astype(w1v_ref.dtype), w1v_ref[...],
                    preferred_element_type=jnp.float32)
    h = h + b1_ref[...]
    h = h * jax.nn.sigmoid(h)                            # SiLU (EUP)

    # --- update_net layer 2: fused scalar/gate heads --------------------------
    out2 = jnp.dot(h.astype(w2_ref.dtype), w2_ref[...],
                   preferred_element_type=jnp.float32) + b2_ref[...]
    x_out = out2[:, :op]                                 # lane-aligned split
    gate = out2[:, op:]

    if scalar_activation:
        x_out = x_out * jax.nn.sigmoid(x_out)

    ox_ref[...] = x_out.astype(ox_ref.dtype)
    # Gate the vec2 values already staged in the output block (RMW).
    ov_ref[...] = (gate[None, :, :] * ov_ref[...]).astype(ov_ref.dtype)


# ----------------------------------------------------------------------------
# One-time parameter packing (hoist out of the forward path; cacheable/jittable)
# ----------------------------------------------------------------------------
def pack_geb_params(vec1_w, vec2_w, mlp_w1, mlp_b1, mlp_w2, mlp_b2, *,
                    param_dtype=jnp.float32):
    """Pad, transpose and fuse the PyTorch parameters once.

    vec1_w: [H, H]   vec1_proj.weight (out x in, no bias)
    vec2_w: [O, H]   vec2_proj.weight (no bias)
    mlp_w1: [I, 2H], mlp_b1: [I]       update_net layer 1
    mlp_w2: [2O, I], mlp_b2: [2O]      update_net layer 2
    """
    hidden = vec1_w.shape[1]
    out_channels = vec2_w.shape[0]
    inter = mlp_w1.shape[0]
    assert vec1_w.shape == (hidden, hidden)
    assert vec2_w.shape == (out_channels, hidden)
    assert mlp_w1.shape == (inter, 2 * hidden)
    assert mlp_b1.shape == (inter,)
    assert mlp_w2.shape == (2 * out_channels, inter)
    assert mlp_b2.shape == (2 * out_channels,)

    hp = _round_up(hidden, 128)           # lane-padded hidden
    ip = _round_up(inter, 128)            # lane-padded intermediate
    op = _round_up(out_channels, 128)     # lane-padded output

    # Fused [W_vec1.T | W_vec2.T]; padded K lanes are zero so they contribute 0.
    wv = jnp.zeros((hp, hp + op), param_dtype)
    wv = wv.at[:hidden, :hidden].set(vec1_w.T.astype(param_dtype))
    wv = wv.at[:hidden, hp:hp + out_channels].set(vec2_w.T.astype(param_dtype))

    w1x = jnp.zeros((hp, ip), param_dtype).at[:hidden, :inter].set(
        mlp_w1[:, :hidden].T.astype(param_dtype))
    w1v = jnp.zeros((hp, ip), param_dtype).at[:hidden, :inter].set(
        mlp_w1[:, hidden:].T.astype(param_dtype))
    b1 = jnp.zeros((1, ip), jnp.float32).at[0, :inter].set(
        mlp_b1.astype(jnp.float32))

    # Fused [scalar head | gate head] of the second MLP layer, lane-aligned.
    w2 = jnp.zeros((ip, 2 * op), param_dtype)
    w2 = w2.at[:inter, :out_channels].set(mlp_w2[:out_channels].T.astype(param_dtype))
    w2 = w2.at[:inter, op:op + out_channels].set(
        mlp_w2[out_channels:].T.astype(param_dtype))
    b2 = jnp.zeros((1, 2 * op), jnp.float32)
    b2 = b2.at[0, :out_channels].set(mlp_b2[:out_channels].astype(jnp.float32))
    b2 = b2.at[0, op:op + out_channels].set(
        mlp_b2[out_channels:].astype(jnp.float32))

    meta = dict(hidden=hidden, out_channels=out_channels, inter=inter,
                hp=hp, ip=ip, op=op, dtype=param_dtype)
    return dict(wv=wv, w1x=w1x, w1v=w1v, b1=b1, w2=w2, b2=b2, meta=meta)


# ----------------------------------------------------------------------------
# Forward wrapper
# ----------------------------------------------------------------------------
def gated_equivariant_block_forward(x, v, params, *, scalar_activation=False,
                                    spatial_major=False, tm_max=1024,
                                    block_vmem_budget_bytes=36 << 20):
    """Forward pass of GatedEquivariantBlock.

    x: [N, H] scalar features.
    v: [N, S, H] vector features (default), or [S, N, H] if spatial_major=True
       (recommended for stacked blocks: skips both v / v_out transposes).
    Returns (x_out [N, O], v_out [N, S, O]) (or [S, N, O] if spatial_major).
    """
    meta = params["meta"]
    hidden, out_channels = meta["hidden"], meta["out_channels"]
    hp, ip, op = meta["hp"], meta["ip"], meta["op"]
    dtype = meta["dtype"]

    if spatial_major:
        n_spatial, n = v.shape[0], v.shape[1]
        assert v.shape == (n_spatial, n, hidden)
    else:
        n, n_spatial = v.shape[0], v.shape[1]
        assert v.shape == (n, n_spatial, hidden)
    assert x.shape == (n, hidden)

    itemsize = jnp.dtype(dtype).itemsize

    # ---- row-tile selection ---------------------------------------------------
    # (a) stay inside a conservative per-TC VMEM budget (v7x: 64 MiB/TC),
    # (b) force >= 2 grid steps so dimension_semantics=("parallel",) actually
    #     spreads rows across both v7x TensorCores (no-op on single-TC v5e/v6e).
    per_row_bytes = 2 * itemsize * ((n_spatial + 1) * hp + (n_spatial + 1) * op)
    tm_budget = max(8, (block_vmem_budget_bytes // max(per_row_bytes, 1)) // 8 * 8)
    tm_half = max(8, _round_up(pl.cdiv(n, 2), 8))
    tm_max = max(8, (tm_max // 8) * 8)
    tm = max(8, min(tm_max, tm_budget, tm_half, _round_up(n, 8)))
    mp = _round_up(n, tm)
    grid = mp // tm

    # ---- padded, lane-dense inputs (fast path: no copies if already aligned) --
    v_sm = v if spatial_major else jnp.transpose(v, (1, 0, 2))
    if mp == n and hp == hidden and x.dtype == dtype and v.dtype == dtype:
        xp, vp = x, v_sm
    else:
        # Transpose (if any), dtype cast and zero-pad fuse into one XLA copy.
        xp = jnp.zeros((mp, hp), dtype).at[:n, :hidden].set(x.astype(dtype))
        vp = jnp.zeros((n_spatial, mp, hp), dtype).at[:, :n, :hidden].set(
            v_sm.astype(dtype))

    # ---- explicit VMEM limit + advisory cost estimate -------------------------
    weight_bytes = (itemsize * (hp * (hp + op) + 2 * hp * ip + ip * 2 * op)
                    + 4 * (ip + 2 * op))
    vmem_est = 2 * weight_bytes + per_row_bytes * tm
    vmem_limit = int(min(64 << 20, max(32 << 20, vmem_est + (8 << 20))))

    flops = 2 * mp * (n_spatial * hp * (hp + op) + 2 * hp * ip + ip * 2 * op)
    transcendentals = mp * (ip + (op if scalar_activation else 0))
    bytes_accessed = (itemsize * (mp * hp + n_spatial * mp * hp
                                  + mp * op + n_spatial * mp * op)
                      + weight_bytes)
    cost = pl.CostEstimate(flops=flops, transcendentals=transcendentals,
                           bytes_accessed=bytes_accessed)

    kernel = functools.partial(_geb_kernel, scalar_activation=scalar_activation)

    x_out_p, v_out_p = pl.pallas_call(
        kernel,
        out_shape=(
            jax.ShapeDtypeStruct((mp, op), dtype),
            jax.ShapeDtypeStruct((n_spatial, mp, op), dtype),
        ),
        grid_spec=pltpu.PrefetchScalarGridSpec(
            num_scalar_prefetch=0,
            grid=(grid,),
            in_specs=[
                pl.BlockSpec((tm, hp), lambda i: (i, 0)),                # x
                pl.BlockSpec((n_spatial, tm, hp), lambda i: (0, i, 0)),  # v
                pl.BlockSpec((hp, hp + op), lambda i: (0, 0)),           # fused vec W
                pl.BlockSpec((hp, ip), lambda i: (0, 0)),                # W1 (x half)
                pl.BlockSpec((hp, ip), lambda i: (0, 0)),                # W1 (vec1 half)
                pl.BlockSpec((1, ip), lambda i: (0, 0)),                 # b1
                pl.BlockSpec((ip, 2 * op), lambda i: (0, 0)),            # fused W2
                pl.BlockSpec((1, 2 * op), lambda i: (0, 0)),             # b2
            ],
            out_specs=[
                pl.BlockSpec((tm, op), lambda i: (i, 0)),                # x_out
                pl.BlockSpec((n_spatial, tm, op), lambda i: (0, i, 0)),  # v_out
            ],
        ),
        compiler_params=pltpu.CompilerParams(
            dimension_semantics=("parallel",),
            vmem_limit_bytes=vmem_limit),
        cost_estimate=cost,
    )(xp, vp, params["wv"], params["w1x"], params["w1v"], params["b1"],
      params["w2"], params["b2"])

    # ---- strip padding (fast path: none) --------------------------------------
    if mp == n and op == out_channels:
        x_out, v_out_sm = x_out_p, v_out_p
    else:
        x_out = x_out_p[:n, :out_channels]
        v_out_sm = v_out_p[:, :n, :out_channels]
    v_out = v_out_sm if spatial_major else jnp.transpose(v_out_sm, (1, 0, 2))
    return x_out, v_out


if __name__ == "__main__":
    # Make the pure-JAX reference matmuls run at full f32 precision so the
    # tolerance check is meaningful.
    jax.config.update("jax_default_matmul_precision", "highest")

    num_atoms, n_spatial = 16, 3
    hidden_channels, out_channels = 32, 16
    intermediate_channels = hidden_channels     # module default

    key = jax.random.PRNGKey(0)
    keys = jax.random.split(key, 8)

    def xavier(k, shape):
        bound = math.sqrt(6.0 / (shape[0] + shape[1]))
        return jax.random.uniform(k, shape, jnp.float32, -bound, bound)

    x = jax.random.normal(keys[0], (num_atoms, hidden_channels), jnp.float32)
    v = jax.random.normal(keys[1], (num_atoms, n_spatial, hidden_channels),
                          jnp.float32)

    vec1_w = xavier(keys[2], (hidden_channels, hidden_channels))
    vec2_w = xavier(keys[3], (out_channels, hidden_channels))
    w1 = xavier(keys[4], (intermediate_channels, 2 * hidden_channels))
    b1 = 0.1 * jax.random.normal(keys[5], (intermediate_channels,), jnp.float32)
    w2 = xavier(keys[6], (2 * out_channels, intermediate_channels))
    b2 = 0.1 * jax.random.normal(keys[7], (2 * out_channels,), jnp.float32)

    # One-time parameter packing, hoisted out of the forward (review item).
    # Use param_dtype=jnp.bfloat16 on v5e/v6e if model tolerance allows.
    params = pack_geb_params(vec1_w, vec2_w, w1, b1, w2, b2,
                             param_dtype=jnp.float32)
    params = jax.block_until_ready(params)

    x_out, v_out = gated_equivariant_block_forward(
        x, v, params, scalar_activation=False)
    x_out, v_out = jax.block_until_ready((x_out, v_out))

    # Pure-JAX reference of the PyTorch forward.
    # TODO(synk): the PyTorch mask/warning branch for all-zero vector rows only
    # affects gradients (norm-at-zero) and emits a host-side warning; forward
    # values are identical, so it is not reproduced in the kernel.
    vec1_buffer = jnp.einsum("nsh,kh->nsk", v, vec1_w)
    vec1_ref = jnp.sqrt(jnp.sum(vec1_buffer ** 2, axis=-2))
    vec2_ref = jnp.einsum("nsh,kh->nsk", v, vec2_w)
    cat = jnp.concatenate([x, vec1_ref], axis=-1)
    h_ref = cat @ w1.T + b1
    h_ref = h_ref * jax.nn.sigmoid(h_ref)                    # SiLU
    out2_ref = h_ref @ w2.T + b2
    x_ref = out2_ref[:, :out_channels]
    v_ref = out2_ref[:, None, out_channels:] * vec2_ref

    assert x_out.shape == (num_atoms, out_channels)
    assert v_out.shape == (num_atoms, n_spatial, out_channels)
    assert jnp.allclose(x_out, x_ref, atol=1e-3, rtol=1e-3), (
        float(jnp.max(jnp.abs(x_out - x_ref))))
    assert jnp.allclose(v_out, v_ref, atol=1e-3, rtol=1e-3), (
        float(jnp.max(jnp.abs(v_out - v_ref))))

    print("KERNEL_OK")
</pallas_src>

<mosaic_0001>
module attributes {stable_mosaic.version = 11 : i64} {
  func.func @_geb_kernel(%arg0: i32, %arg1: memref<8x128xf32, #tpu.memory_space<vmem>>, %arg2: memref<3x8x128xf32, #tpu.memory_space<vmem>>, %arg3: memref<128x256xf32, #tpu.memory_space<vmem>>, %arg4: memref<128x128xf32, #tpu.memory_space<vmem>>, %arg5: memref<128x128xf32, #tpu.memory_space<vmem>>, %arg6: memref<1x128xf32, #tpu.memory_space<vmem>>, %arg7: memref<128x256xf32, #tpu.memory_space<vmem>>, %arg8: memref<1x256xf32, #tpu.memory_space<vmem>>, %arg9: memref<8x128xf32, #tpu.memory_space<vmem>>, %arg10: memref<3x8x128xf32, #tpu.memory_space<vmem>>) attributes {dimension_semantics = [#tpu.dimension_semantics<parallel>], iteration_bounds = array<i64: 2>, scalar_prefetch = 0 : i64, scratch_operands = 0 : i64, tpu.core_type = #tpu.core_type<tc>, window_params = [{transform_indices = @transform_0, window_bounds = array<i64: 8, 128>}, {transform_indices = @transform_1, window_bounds = array<i64: 3, 8, 128>}, {pipeline_mode = #tpu.pipeline_mode<synchronous>, transform_indices = @transform_2, window_bounds = array<i64: 128, 256>}, {pipeline_mode = #tpu.pipeline_mode<synchronous>, transform_indices = @transform_3, window_bounds = array<i64: 128, 128>}, {pipeline_mode = #tpu.pipeline_mode<synchronous>, transform_indices = @transform_4, window_bounds = array<i64: 128, 128>}, {pipeline_mode = #tpu.pipeline_mode<synchronous>, transform_indices = @transform_5, window_bounds = array<i64: 1, 128>}, {pipeline_mode = #tpu.pipeline_mode<synchronous>, transform_indices = @transform_6, window_bounds = array<i64: 128, 256>}, {pipeline_mode = #tpu.pipeline_mode<synchronous>, transform_indices = @transform_7, window_bounds = array<i64: 1, 256>}, {transform_indices = @transform_8, window_bounds = array<i64: 8, 128>}, {transform_indices = @transform_9, window_bounds = array<i64: 3, 8, 128>}]} {
    %c0 = arith.constant 0 : index
    %c0_0 = arith.constant 0 : index
    %c0_1 = arith.constant 0 : index
    %0 = vector.load %arg2[%c0, %c0_0, %c0_1] : memref<3x8x128xf32, #tpu.memory_space<vmem>>, vector<3x8x128xf32>
    %1 = vector.shape_cast %0 : vector<3x8x128xf32> to vector<24x128xf32>
    %c0_2 = arith.constant 0 : index
    %c0_3 = arith.constant 0 : index
    %2 = vector.load %arg3[%c0_2, %c0_3] : memref<128x256xf32, #tpu.memory_space<vmem>>, vector<128x256xf32>
    %cst = arith.constant dense<0.000000e+00> : vector<24x256xf32>
    %3 = tpu.matmul %1, %2, %cst {dimension_numbers = #tpu.dot_dimension_numbers<[1], [0], [0], [1], [0, 0, 1, 1], [], []>, precision = #tpu.contract_precision<fp32>} : vector<24x128xf32>, vector<128x256xf32>, vector<24x256xf32> -> vector<24x256xf32>
    %4 = vector.extract_strided_slice %3 {offsets = [0, 128], sizes = [24, 128], strides = [1, 1]} : vector<24x256xf32> to vector<24x128xf32>
    %5 = vector.shape_cast %4 : vector<24x128xf32> to vector<3x8x128xf32>
    %c0_4 = arith.constant 0 : index
    %c0_5 = arith.constant 0 : index
    %c0_6 = arith.constant 0 : index
    %6 = vector.load %arg10[%c0_4, %c0_5, %c0_6] : memref<3x8x128xf32, #tpu.memory_space<vmem>>, vector<3x8x128xf32>
    tpu.vector_store %arg10[%c0_4, %c0_5, %c0_6], %5 {strides = array<i32>} : memref<3x8x128xf32, #tpu.memory_space<vmem>>, vector<3x8x128xf32>,
    %7 = vector.extract_strided_slice %3 {offsets = [0, 0], sizes = [24, 128], strides = [1, 1]} : vector<24x256xf32> to vector<24x128xf32>
    %8 = arith.mulf %7, %7 : vector<24x128xf32>
    %9 = vector.shape_cast %8 : vector<24x128xf32> to vector<3x8x128xf32>
    %cst_7 = arith.constant dense<0.000000e+00> : vector<8x128xf32>
    %10 = vector.multi_reduction <add>, %9, %cst_7 [0] : vector<3x8x128xf32> to vector<8x128xf32>
    %11 = math.sqrt %10 : vector<8x128xf32>
    %c0_8 = arith.constant 0 : index
    %c0_9 = arith.constant 0 : index
    %12 = vector.load %arg1[%c0_8, %c0_9] : memref<8x128xf32, #tpu.memory_space<vmem>>, vector<8x128xf32>
    %c0_10 = arith.constant 0 : index
    %c0_11 = arith.constant 0 : index
    %13 = vector.load %arg4[%c0_10, %c0_11] : memref<128x128xf32, #tpu.memory_space<vmem>>, vector<128x128xf32>
    %cst_12 = arith.constant dense<0.000000e+00> : vector<8x128xf32>
    %14 = tpu.matmul %12, %13, %cst_12 {dimension_numbers = #tpu.dot_dimension_numbers<[1], [0], [0], [1], [0, 0, 1, 1], [], []>, precision = #tpu.contract_precision<fp32>} : vector<8x128xf32>, vector<128x128xf32>, vector<8x128xf32> -> vector<8x128xf32>
    %c0_13 = arith.constant 0 : index
    %c0_14 = arith.constant 0 : index
    %15 = vector.load %arg5[%c0_13, %c0_14] : memref<128x128xf32, #tpu.memory_space<vmem>>, vector<128x128xf32>
    %cst_15 = arith.constant dense<0.000000e+00> : vector<8x128xf32>
    %16 = tpu.matmul %11, %15, %cst_15 {dimension_numbers = #tpu.dot_dimension_numbers<[1], [0], [0], [1], [0, 0, 1, 1], [], []>, precision = #tpu.contract_precision<fp32>} : vector<8x128xf32>, vector<128x128xf32>, vector<8x128xf32> -> vector<8x128xf32>
    %17 = arith.addf %14, %16 : vector<8x128xf32>
    %c0_16 = arith.constant 0 : index
    %c0_17 = arith.constant 0 : index
    %18 = vector.load %arg6[%c0_16, %c0_17] : memref<1x128xf32, #tpu.memory_space<vmem>>, vector<1x128xf32>
    %19 = vector.broadcast %18 : vector<1x128xf32> to vector<8x128xf32>
    %20 = arith.addf %17, %19 : vector<8x128xf32>
    %21 = arith.negf %20 : vector<8x128xf32>
    %22 = math.exp %21 : vector<8x128xf32>
    %cst_18 = arith.constant 1.000000e+00 : f32
    %23 = vector.broadcast %cst_18 : f32 to vector<8x128xf32>
    %24 = arith.addf %23, %22 : vector<8x128xf32>
    %25 = arith.divf %23, %24 : vector<8x128xf32>
    %26 = arith.mulf %20, %25 : vector<8x128xf32>
    %c0_19 = arith.constant 0 : index
    %c0_20 = arith.constant 0 : index
    %27 = vector.load %arg7[%c0_19, %c0_20] : memref<128x256xf32, #tpu.memory_space<vmem>>, vector<128x256xf32>
    %cst_21 = arith.constant dense<0.000000e+00> : vector<8x256xf32>
    %28 = tpu.matmul %26, %27, %cst_21 {dimension_numbers = #tpu.dot_dimension_numbers<[1], [0], [0], [1], [0, 0, 1, 1], [], []>, precision = #tpu.contract_precision<fp32>} : vector<8x128xf32>, vector<128x256xf32>, vector<8x256xf32> -> vector<8x256xf32>
    %c0_22 = arith.constant 0 : index
    %c0_23 = arith.constant 0 : index
    %29 = vector.load %arg8[%c0_22, %c0_23] : memref<1x256xf32, #tpu.memory_space<vmem>>, vector<1x256xf32>
    %30 = vector.broadcast %29 : vector<1x256xf32> to vector<8x256xf32>
    %31 = arith.addf %28, %30 : vector<8x256xf32>
    %32 = vector.extract_strided_slice %31 {offsets = [0, 0], sizes = [8, 128], strides = [1, 1]} : vector<8x256xf32> to vector<8x128xf32>
    %33 = vector.extract_strided_slice %31 {offsets = [0, 128], sizes = [8, 128], strides = [1, 1]} : vector<8x256xf32> to vector<8x128xf32>
    %c0_24 = arith.constant 0 : index
    %c0_25 = arith.constant 0 : index
    %34 = vector.load %arg9[%c0_24, %c0_25] : memref<8x128xf32, #tpu.memory_space<vmem>>, vector<8x128xf32>
    tpu.vector_store %arg9[%c0_24, %c0_25], %32 {strides = array<i32>} : memref<8x128xf32, #tpu.memory_space<vmem>>, vector<8x128xf32>,
    %35 = vector.shape_cast %33 : vector<8x128xf32> to vector<1x8x128xf32>
    %c0_26 = arith.constant 0 : index
    %c0_27 = arith.constant 0 : index
    %c0_28 = arith.constant 0 : index
    %36 = vector.load %arg10[%c0_26, %c0_27, %c0_28] : memref<3x8x128xf32, #tpu.memory_space<vmem>>, vector<3x8x128xf32>
    %37 = vector.broadcast %35 : vector<1x8x128xf32> to vector<3x8x128xf32>
    %38 = arith.mulf %37, %36 : vector<3x8x128xf32>
    %c0_29 = arith.constant 0 : index
    %c0_30 = arith.constant 0 : index
    %c0_31 = arith.constant 0 : index
    %39 = vector.load %arg10[%c0_29, %c0_30, %c0_31] : memref<3x8x128xf32, #tpu.memory_space<vmem>>, vector<3x8x128xf32>
    tpu.vector_store %arg10[%c0_29, %c0_30, %c0_31], %38 {strides = array<i32>} : memref<3x8x128xf32, #tpu.memory_space<vmem>>, vector<3x8x128xf32>,
    return
  }
  func.func @transform_0(%arg0: i32) -> (i32, i32) {
    %c0_i32 = arith.constant 0 : i32
    %c0_i32_0 = arith.constant 0 : i32
    return %arg0, %c0_i32 : i32, i32
  }
  func.func @transform_1(%arg0: i32) -> (i32, i32, i32) {
    %c0_i32 = arith.constant 0 : i32
    %c0_i32_0 = arith.constant 0 : i32
    %c0_i32_1 = arith.constant 0 : i32
    return %c0_i32, %arg0, %c0_i32_0 : i32, i32, i32
  }
  func.func @transform_2(%arg0: i32) -> (i32, i32) {
    %c0_i32 = arith.constant 0 : i32
    %c0_i32_0 = arith.constant 0 : i32
    %c0_i32_1 = arith.constant 0 : i32
    return %c0_i32, %c0_i32_0 : i32, i32
  }
  func.func @transform_3(%arg0: i32) -> (i32, i32) {
    %c0_i32 = arith.constant 0 : i32
    %c0_i32_0 = arith.constant 0 : i32
    %c0_i32_1 = arith.constant 0 : i32
    return %c0_i32, %c0_i32_0 : i32, i32
  }
  func.func @transform_4(%arg0: i32) -> (i32, i32) {
    %c0_i32 = arith.constant 0 : i32
    %c0_i32_0 = arith.constant 0 : i32
    %c0_i32_1 = arith.constant 0 : i32
    return %c0_i32, %c0_i32_0 : i32, i32
  }
  func.func @transform_5(%arg0: i32) -> (i32, i32) {
    %c0_i32 = arith.constant 0 : i32
    %c0_i32_0 = arith.constant 0 : i32
    %c0_i32_1 = arith.constant 0 : i32
    return %c0_i32, %c0_i32_0 : i32, i32
  }
  func.func @transform_6(%arg0: i32) -> (i32, i32) {
    %c0_i32 = arith.constant 0 : i32
    %c0_i32_0 = arith.constant 0 : i32
    %c0_i32_1 = arith.constant 0 : i32
    return %c0_i32, %c0_i32_0 : i32, i32
  }
  func.func @transform_7(%arg0: i32) -> (i32, i32) {
    %c0_i32 = arith.constant 0 : i32
    %c0_i32_0 = arith.constant 0 : i32
    %c0_i32_1 = arith.constant 0 : i32
    return %c0_i32, %c0_i32_0 : i32, i32
  }
  func.func @transform_8(%arg0: i32) -> (i32, i32) {
    %c0_i32 = arith.constant 0 : i32
    %c0_i32_0 = arith.constant 0 : i32
    return %arg0, %c0_i32 : i32, i32
  }
  func.func @transform_9(%arg0: i32) -> (i32, i32, i32) {
    %c0_i32 = arith.constant 0 : i32
    %c0_i32_0 = arith.constant 0 : i32
    %c0_i32_1 = arith.constant 0 : i32
    return %c0_i32, %arg0, %c0_i32_0 : i32, i32, i32
  }
}

</mosaic_0001>

<llo_original>
// kernel: tpu_custom_call.1
$region0: #{tpu_custom_call.1}
  #allocation0 [shape = 'u32[]', space=smem, size = 0x4, offset = 0x4, fixed_abs, tag = 'smem constant byte address 0x4 - core index']
  #allocation1 [shape = 'u32[144,128]{1,0:T(1,128)}', space=vmem, size = 0x12000, scoped, tag = 'internal scratch']
  %s0 = inlined_call_operand.hbm [shape: f32[16,128], index: 0, kind: input, shape index: {}]
  %s1 = inlined_call_operand.hbm [shape: f32[3,16,128], index: 1, kind: input, shape index: {}]
  %s2 = inlined_call_operand.hbm [shape: f32[128,256], index: 2, kind: input, shape index: {}]
  %s3 = inlined_call_operand.hbm [shape: f32[128,128], index: 3, kind: input, shape index: {}]
  %s4 = inlined_call_operand.hbm [shape: f32[128,128], index: 4, kind: input, shape index: {}]
  %s5 = inlined_call_operand.vmem [shape: f32[1,128], index: 5, kind: input, shape index: {}]
  %s6 = inlined_call_operand.hbm [shape: f32[128,256], index: 6, kind: input, shape index: {}]
  %s7 = inlined_call_operand.vmem [shape: f32[1,256], index: 7, kind: input, shape index: {}]
  %s8 = inlined_call_operand.hbm [shape: f32[16,128], index: 8, kind: output, shape index: {0}]
  %s9 = inlined_call_operand.hbm [shape: f32[3,16,128], index: 9, kind: output, shape index: {1}]
  %10 = xla_tuple %s8, %s9
  %s11 = sld [smem:[#allocation0]]
  $region97: #{tpu_custom_call.1} parent=0
    _
  %s13 = ssub.s32 1, %s11
  %s14 = scalar_select 0, %s13, %s11
  $region1: #{tpu_custom_call.1} parent=0
    #allocation2 [shape = 'u8[8192]{0}', space=vmem, size = 0x2000, scoped, tag = 'input window, operand 0']
    #allocation3 [shape = 's32[2]{0}', space=sflag, size = 0x8, scoped, tag = 'scoped memory for tpu_custom_call.1']
    #allocation4 [shape = 's32[2]{0}', space=sflag, size = 0x8, scoped, tag = 'scoped memory for tpu_custom_call.1']
    #allocation5 [shape = 'u8[24576]{0}', space=vmem, size = 0x6000, scoped, tag = 'input window, operand 1']
    #allocation6 [shape = 's32[2]{0}', space=sflag, size = 0x8, scoped, tag = 'scoped memory for tpu_custom_call.1']
    #allocation7 [shape = 'u8[131072]{0}', space=vmem, size = 0x20000, scoped, tag = 'input window, operand 2, single buffered']
    #allocation8 [shape = 'u8[65536]{0}', space=vmem, size = 0x10000, scoped, tag = 'input window, operand 3, single buffered']
    #allocation9 [shape = 's32[1]{0}', space=sflag, size = 0x4, scoped, tag = 'scoped memory for tpu_custom_call.1']
    #allocation10 [shape = 'u8[65536]{0}', space=vmem, size = 0x10000, scoped, tag = 'input window, operand 4, single buffered']
    #allocation11 [shape = 'u8[131072]{0}', space=vmem, size = 0x20000, scoped, tag = 'input window, operand 6, single buffered']
    #allocation12 [shape = 's32[1]{0}', space=sflag, size = 0x4, scoped, tag = 'scoped memory for tpu_custom_call.1']
    #allocation13 [shape = 'u8[8192]{0}', space=vmem, size = 0x2000, scoped, tag = 'output window, operand 0']
    #allocation14 [shape = 'u8[24576]{0}', space=vmem, size = 0x6000, scoped, tag = 'output window, operand 1']
    #allocation15 [shape = 's32[2]{0}', space=sflag, size = 0x8, scoped, tag = 'scoped memory for tpu_custom_call.1']
    %15 = vsyncpa [#allocation3], 0
    %s16 = scalar_lea.sflag [#allocation3], 1
    %17 = vsyncpa %s16, 0
    %18 = vsyncpa [#allocation6], 0
    %s19 = scalar_lea.sflag [#allocation6], 1
    %20 = vsyncpa %s19, 0
    %21 = vsyncpa [#allocation9], 0
    %22 = vsyncpa [#allocation12], 0
    %23 = vsyncpa [#allocation4], 0
    %s24 = scalar_lea.sflag [#allocation4], 1
    %25 = vsyncpa %s24, 0
    %26 = vsyncpa [#allocation15], 0
    %s27 = scalar_lea.sflag [#allocation15], 1
    %28 = vsyncpa %s27, 0
    loop: start=0, step=1, limit=4
    $region2: #{tpu_custom_call.1} parent=1 // loop_pre_header
      _
    $region3: #{tpu_custom_call.1} parent=1 // loop_header
      %s30 = sphi 0, %s34
      %p31 = scmp.ge.s32.totalorder %s30, 4
      %s40 = sphi 0, %s42
      %s43 = sphi 0, %s40
      %s44 = sphi 0, %s43
      %s60 = sphi 0, %s44
      %s66 = sphi 0, %s68
      %s69 = sphi 0, %s66
      %s70 = sphi 0, %s69
      %s86 = sphi 0, %s70
      %s90 = sphi 0, %s90
      %s92 = sphi 0, %s90
      %s93 = sphi 0, %s92
      %s107 = sphi 0, %s93
      %s111 = sphi 0, %s111
      %s113 = sphi 0, %s111
      %s114 = sphi 0, %s113
      %s128 = sphi 0, %s114
      %s132 = sphi 0, %s132
      %s134 = sphi 0, %s132
      %s135 = sphi 0, %s134
      %s149 = sphi 0, %s135
      %s153 = sphi 0, %s153
      %s155 = sphi 0, %s153
      %s156 = sphi 0, %s155
      %s170 = sphi 0, %s156
      %s174 = sphi 0, %s174
      %s176 = sphi 0, %s174
      %s177 = sphi 0, %s176
      %s191 = sphi 0, %s177
      %s195 = sphi 0, %s195
      %s197 = sphi 0, %s195
      %s198 = sphi 0, %s197
      %s212 = sphi 0, %s198
      %s218 = sphi 0, %s220
      %s221 = sphi 0, %s218
      %s222 = sphi 0, %s221
      %s238 = sphi 0, %s222
      %s244 = sphi 0, %s246
      %s247 = sphi 0, %s244
      %s248 = sphi 0, %s247
      %s264 = sphi 0, %s248
    $region4: #{tpu_custom_call.1} parent=1 // loop_header_branch
      %33 = sbr.rel (%p31) target = $region8
    $region5: #{tpu_custom_call.1} parent=1 // loop_body
      %s35 = ssub.s32 %s30, 1
      %s36 = ssub.s32 %s30, 2
      %s37 = sadd.s32 %s30, 1
      %s38 = ssub.s32 %s30, %s37
      %p39 = scmp.eq.s32.totalorder %s38, 0
      %s41 = sadd.s32 %s40, 1
      %s42 = scalar_select %p39, %s40, %s41
      %p45 = pneg %p39
      %p46 = scmp.eq.s32.totalorder %s30, 1
      %p47 = por %p45, %p46
      %p48 = scmp.ne.s32.totalorder %s40, %s43
      %p49 = scmp.eq.s32.totalorder %s30, 0
      %p50 = por %p48, %p49
      %p51 = scmp.ne.s32.totalorder %s40, %s43
      %p52 = scmp.eq.s32.totalorder %s35, 1
      %p53 = por %p51, %p52
      %p54 = scmp.ne.s32.totalorder %s43, %s44
      %p55 = scmp.eq.s32.totalorder %s35, 0
      %p56 = por %p54, %p55
      %p57 = scmp.ne.s32.totalorder %s43, %s44
      %p58 = scmp.eq.s32.totalorder %s36, 1
      %p59 = por %p57, %p58
      %p61 = scmp.ne.s32.totalorder %s44, %s60
      %p62 = scmp.eq.s32.totalorder %s36, 0
      %p63 = por %p61, %p62
      %s64 = ssub.s32 %s30, %s37
      %p65 = scmp.eq.s32.totalorder %s64, 0
      %s67 = sadd.s32 %s66, 1
      %s68 = scalar_select %p65, %s66, %s67
      %p71 = pneg %p65
      %p72 = scmp.eq.s32.totalorder %s30, 1
      %p73 = por %p71, %p72
      %p74 = scmp.ne.s32.totalorder %s66, %s69
      %p75 = scmp.eq.s32.totalorder %s30, 0
      %p76 = por %p74, %p75
      %p77 = scmp.ne.s32.totalorder %s66, %s69
      %p78 = scmp.eq.s32.totalorder %s35, 1
      %p79 = por %p77, %p78
      %p80 = scmp.ne.s32.totalorder %s69, %s70
      %p81 = scmp.eq.s32.totalorder %s35, 0
      %p82 = por %p80, %p81
      %p83 = scmp.ne.s32.totalorder %s69, %s70
      %p84 = scmp.eq.s32.totalorder %s36, 1
      %p85 = por %p83, %p84
      %p87 = scmp.ne.s32.totalorder %s70, %s86
      %p88 = scmp.eq.s32.totalorder %s36, 0
      %p89 = por %p87, %p88
      %s91 = sadd.s32 %s90, 1
      %p94 = scmp.eq.s32.totalorder %s30, 1
      %p95 = scmp.ne.s32.totalorder %s90, %s92
      %p96 = scmp.eq.s32.totalorder %s30, 0
      %p97 = por %p95, %p96
      %p98 = scmp.ne.s32.totalorder %s90, %s92
      %p99 = scmp.eq.s32.totalorder %s35, 1
      %p100 = por %p98, %p99
      %p101 = scmp.ne.s32.totalorder %s92, %s93
      %p102 = scmp.eq.s32.totalorder %s35, 0
      %p103 = por %p101, %p102
      %p104 = scmp.ne.s32.totalorder %s92, %s93
      %p105 = scmp.eq.s32.totalorder %s36, 1
      %p106 = por %p104, %p105
      %p108 = scmp.ne.s32.totalorder %s93, %s107
      %p109 = scmp.eq.s32.totalorder %s36, 0
      %p110 = por %p108, %p109
      %s112 = sadd.s32 %s111, 1
      %p115 = scmp.eq.s32.totalorder %s30, 1
      %p116 = scmp.ne.s32.totalorder %s111, %s113
      %p117 = scmp.eq.s32.totalorder %s30, 0
      %p118 = por %p116, %p117
      %p119 = scmp.ne.s32.totalorder %s111, %s113
      %p120 = scmp.eq.s32.totalorder %s35, 1
      %p121 = por %p119, %p120
      %p122 = scmp.ne.s32.totalorder %s113, %s114
      %p123 = scmp.eq.s32.totalorder %s35, 0
      %p124 = por %p122, %p123
      %p125 = scmp.ne.s32.totalorder %s113, %s114
      %p126 = scmp.eq.s32.totalorder %s36, 1
      %p127 = por %p125, %p126
      %p129 = scmp.ne.s32.totalorder %s114, %s128
      %p130 = scmp.eq.s32.totalorder %s36, 0
      %p131 = por %p129, %p130
      %s133 = sadd.s32 %s132, 1
      %p136 = scmp.eq.s32.totalorder %s30, 1
      %p137 = scmp.ne.s32.totalorder %s132, %s134
      %p138 = scmp.eq.s32.totalorder %s30, 0
      %p139 = por %p137, %p138
      %p140 = scmp.ne.s32.totalorder %s132, %s134
      %p141 = scmp.eq.s32.totalorder %s35, 1
      %p142 = por %p140, %p141
      %p143 = scmp.ne.s32.totalorder %s134, %s135
      %p144 = scmp.eq.s32.totalorder %s35, 0
      %p145 = por %p143, %p144
      %p146 = scmp.ne.s32.totalorder %s134, %s135
      %p147 = scmp.eq.s32.totalorder %s36, 1
      %p148 = por %p146, %p147
      %p150 = scmp.ne.s32.totalorder %s135, %s149
      %p151 = scmp.eq.s32.totalorder %s36, 0
      %p152 = por %p150, %p151
      %s154 = sadd.s32 %s153, 1
      %p157 = scmp.eq.s32.totalorder %s30, 1
      %p158 = scmp.ne.s32.totalorder %s153, %s155
      %p159 = scmp.eq.s32.totalorder %s30, 0
      %p160 = por %p158, %p159
      %p161 = scmp.ne.s32.totalorder %s153, %s155
      %p162 = scmp.eq.s32.totalorder %s35, 1
      %p163 = por %p161, %p162
      %p164 = scmp.ne.s32.totalorder %s155, %s156
      %p165 = scmp.eq.s32.totalorder %s35, 0
      %p166 = por %p164, %p165
      %p167 = scmp.ne.s32.totalorder %s155, %s156
      %p168 = scmp.eq.s32.totalorder %s36, 1
      %p169 = por %p167, %p168
      %p171 = scmp.ne.s32.totalorder %s156, %s170
      %p172 = scmp.eq.s32.totalorder %s36, 0
      %p173 = por %p171, %p172
      %s175 = sadd.s32 %s174, 1
      %p178 = scmp.eq.s32.totalorder %s30, 1
      %p179 = scmp.ne.s32.totalorder %s174, %s176
      %p180 = scmp.eq.s32.totalorder %s30, 0
      %p181 = por %p179, %p180
      %p182 = scmp.ne.s32.totalorder %s174, %s176
      %p183 = scmp.eq.s32.totalorder %s35, 1
      %p184 = por %p182, %p183
      %p185 = scmp.ne.s32.totalorder %s176, %s177
      %p186 = scmp.eq.s32.totalorder %s35, 0
      %p187 = por %p185, %p186
      %p188 = scmp.ne.s32.totalorder %s176, %s177
      %p189 = scmp.eq.s32.totalorder %s36, 1
      %p190 = por %p188, %p189
      %p192 = scmp.ne.s32.totalorder %s177, %s191
      %p193 = scmp.eq.s32.totalorder %s36, 0
      %p194 = por %p192, %p193
      %s196 = sadd.s32 %s195, 1
      %p199 = scmp.eq.s32.totalorder %s30, 1
      %p200 = scmp.ne.s32.totalorder %s195, %s197
      %p201 = scmp.eq.s32.totalorder %s30, 0
      %p202 = por %p200, %p201
      %p203 = scmp.ne.s32.totalorder %s195, %s197
      %p204 = scmp.eq.s32.totalorder %s35, 1
      %p205 = por %p203, %p204
      %p206 = scmp.ne.s32.totalorder %s197, %s198
      %p207 = scmp.eq.s32.totalorder %s35, 0
      %p208 = por %p206, %p207
      %p209 = scmp.ne.s32.totalorder %s197, %s198
      %p210 = scmp.eq.s32.totalorder %s36, 1
      %p211 = por %p209, %p210
      %p213 = scmp.ne.s32.totalorder %s198, %s212
      %p214 = scmp.eq.s32.totalorder %s36, 0
      %p215 = por %p213, %p214
      %s216 = ssub.s32 %s30, %s37
      %p217 = scmp.eq.s32.totalorder %s216, 0
      %s219 = sadd.s32 %s218, 1
      %s220 = scalar_select %p217, %s218, %s219
      %p223 = pneg %p217
      %p224 = scmp.eq.s32.totalorder %s30, 1
      %p225 = por %p223, %p224
      %p226 = scmp.ne.s32.totalorder %s218, %s221
      %p227 = scmp.eq.s32.totalorder %s30, 0
      %p228 = por %p226, %p227
      %p229 = scmp.ne.s32.totalorder %s218, %s221
      %p230 = scmp.eq.s32.totalorder %s35, 1
      %p231 = por %p229, %p230
      %p232 = scmp.ne.s32.totalorder %s221, %s222
      %p233 = scmp.eq.s32.totalorder %s35, 0
      %p234 = por %p232, %p233
      %p235 = scmp.ne.s32.totalorder %s221, %s222
      %p236 = scmp.eq.s32.totalorder %s36, 1
      %p237 = por %p235, %p236
      %p239 = scmp.ne.s32.totalorder %s222, %s238
      %p240 = scmp.eq.s32.totalorder %s36, 0
      %p241 = por %p239, %p240
      %s242 = ssub.s32 %s30, %s37
      %p243 = scmp.eq.s32.totalorder %s242, 0
      %s245 = sadd.s32 %s244, 1
      %s246 = scalar_select %p243, %s244, %s245
      %p249 = pneg %p243
      %p250 = scmp.eq.s32.totalorder %s30, 1
      %p251 = por %p249, %p250
      %p252 = scmp.ne.s32.totalorder %s244, %s247
      %p253 = scmp.eq.s32.totalorder %s30, 0
      %p254 = por %p252, %p253
      %p255 = scmp.ne.s32.totalorder %s244, %s247
      %p256 = scmp.eq.s32.totalorder %s35, 1
      %p257 = por %p255, %p256
      %p258 = scmp.ne.s32.totalorder %s247, %s248
      %p259 = scmp.eq.s32.totalorder %s35, 0
      %p260 = por %p258, %p259
      %p261 = scmp.ne.s32.totalorder %s247, %s248
      %p262 = scmp.eq.s32.totalorder %s36, 1
      %p263 = por %p261, %p262
      %p265 = scmp.ne.s32.totalorder %s248, %s264
      %p266 = scmp.eq.s32.totalorder %s36, 0
      %p267 = por %p265, %p266
      %p268 = scmp.le.s32.totalorder 1, %s30
      %p269 = scmp.lt.s32.totalorder %s30, 3
      %p270 = pnand %p268, %p269
      %p271 = pneg %p270
      // Predicated region
      $region9: #{tpu_custom_call.1} parent=5 // pred_check
        _
      $region10: #{tpu_custom_call.1} parent=5 // pred_check_branch
        %273 = sbr.rel (%p270) target = $region12
      $region11: #{tpu_custom_call.1} parent=5 // pred_region
        %s274 = ssub.s32 %s30, 1
        // Predicated region
        $region13: #{tpu_custom_call.1} parent=11 // pred_check
          %p275 = pneg %p103
        $region14: #{tpu_custom_call.1} parent=11 // pred_check_branch
          %277 = sbr.rel (%p275) target = $region16
        $region15: #{tpu_custom_call.1} parent=11 // pred_region
          %s279 = ssub.s32 4096, 4096
          %280 = vsyncadd [#allocation6], %s279
          %s281 = sshll.u32 [#allocation7], 4
          %s282 = int_to_ptr.vmem [resolvable:$true] %s281
          %287 = dma.hbm_to_vmem [thread:$0]  %s2, 4096, %s282, [#allocation6], 256, 256, 16
        $region16: #{tpu_custom_call.1} parent=11 // pred_fallthru
          _
        // Predicated region
        $region17: #{tpu_custom_call.1} parent=11 // pred_check
          %p288 = pneg %p124
        $region18: #{tpu_custom_call.1} parent=11 // pred_check_branch
          %290 = sbr.rel (%p288) target = $region20
        $region19: #{tpu_custom_call.1} parent=11 // pred_region
          %s292 = ssub.s32 2048, 2048
          %293 = vsyncadd [#allocation9], %s292
          %s294 = sshll.u32 [#allocation8], 4
          %s295 = int_to_ptr.vmem [resolvable:$true] %s294
          %300 = dma.hbm_to_vmem [thread:$0]  %s3, 2048, %s295, [#allocation9], 128, 128, 8
        $region20: #{tpu_custom_call.1} parent=11 // pred_fallthru
          _
        // Predicated region
        $region21: #{tpu_custom_call.1} parent=11 // pred_check
          %p301 = pneg %p145
        $region22: #{tpu_custom_call.1} parent=11 // pred_check_branch
          %303 = sbr.rel (%p301) target = $region24
        $region23: #{tpu_custom_call.1} parent=11 // pred_region
          %s305 = ssub.s32 2048, 2048
          %306 = vsyncadd [#allocation9], %s305
          %s307 = sshll.u32 [#allocation10], 4
          %s308 = int_to_ptr.vmem [resolvable:$true] %s307
          %313 = dma.hbm_to_vmem [thread:$0]  %s4, 2048, %s308, [#allocation9], 128, 128, 8
        $region24: #{tpu_custom_call.1} parent=11 // pred_fallthru
          _
        // Predicated region
        $region25: #{tpu_custom_call.1} parent=11 // pred_check
          %p314 = pneg %p166
        $region26: #{tpu_custom_call.1} parent=11 // pred_check_branch
          %316 = sbr.rel (%p314) target = $region28
        $region27: #{tpu_custom_call.1} parent=11 // pred_region
          _
        $region28: #{tpu_custom_call.1} parent=11 // pred_fallthru
          _
        // Predicated region
        $region29: #{tpu_custom_call.1} parent=11 // pred_check
          %p317 = pneg %p187
        $region30: #{tpu_custom_call.1} parent=11 // pred_check_branch
          %319 = sbr.rel (%p317) target = $region32
        $region31: #{tpu_custom_call.1} parent=11 // pred_region
          %s321 = ssub.s32 4096, 4096
          %322 = vsyncadd [#allocation12], %s321
          %s323 = sshll.u32 [#allocation11], 4
          %s324 = int_to_ptr.vmem [resolvable:$true] %s323
          %329 = dma.hbm_to_vmem [thread:$0]  %s6, 4096, %s324, [#allocation12], 256, 256, 16
        $region32: #{tpu_custom_call.1} parent=11 // pred_fallthru
          _
        // Predicated region
        $region33: #{tpu_custom_call.1} parent=11 // pred_check
          %p330 = pneg %p208
        $region34: #{tpu_custom_call.1} parent=11 // pred_check_branch
          %332 = sbr.rel (%p330) target = $region36
        $region35: #{tpu_custom_call.1} parent=11 // pred_region
          _
        $region36: #{tpu_custom_call.1} parent=11 // pred_fallthru
          _
      $region12: #{tpu_custom_call.1} parent=5 // pred_fallthru
        _
      %p333 = scmp.lt.s32.totalorder %s30, 2
      // Predicated region
      $region37: #{tpu_custom_call.1} parent=5 // pred_check
        %p334 = pneg %p333
      $region38: #{tpu_custom_call.1} parent=5 // pred_check_branch
        %336 = sbr.rel (%p334) target = $region40
      $region39: #{tpu_custom_call.1} parent=5 // pred_region
        // Predicated region
        $region41: #{tpu_custom_call.1} parent=39 // pred_check
          %p337 = pneg %p50
        $region42: #{tpu_custom_call.1} parent=39 // pred_check_branch
          %339 = sbr.rel (%p337) target = $region44
        $region43: #{tpu_custom_call.1} parent=39 // pred_region
          %s340 = sand.u32 %s40, 1
          %s341 = scalar_lea.sflag [#allocation3], %s340
          %s342 = sand.u32 %s40, 1
          %s343 = smul.addr %s342, 8
          %s344 = scalar_lea.vmem [#allocation2], %s343
          %s346 = ssub.s32 128, 128
          %347 = vsyncadd %s341, %s346
          %s348 = smul.addr %s30, 128
          %s349 = scalar_lea.hbm %s0, %s348
          %s351 = sshll.u32 %s344, 4
          %s352 = int_to_ptr.vmem [resolvable:$true] %s351
          %354 = dma.hbm_to_vmem [thread:$0]  %s349, 128, %s352, %s341
        $region44: #{tpu_custom_call.1} parent=39 // pred_fallthru
          _
        // Predicated region
        $region45: #{tpu_custom_call.1} parent=39 // pred_check
          %p355 = pneg %p76
        $region46: #{tpu_custom_call.1} parent=39 // pred_check_branch
          %357 = sbr.rel (%p355) target = $region48
        $region47: #{tpu_custom_call.1} parent=39 // pred_region
          %s358 = sand.u32 %s30, 1
          %s359 = scalar_lea.sflag [#allocation6], %s358
          %s360 = sand.u32 %s66, 1
          %s361 = smul.addr %s360, 24
          %s362 = scalar_lea.vmem [#allocation5], %s361
          %s364 = ssub.s32 384, 384
          %365 = vsyncadd %s359, %s364
          %s366 = smul.addr %s30, 128
          %s367 = scalar_lea.hbm %s1, %s366
          %s368 = sshll.u32 %s362, 4
          %s369 = int_to_ptr.vmem [resolvable:$true] %s368
          %374 = dma.hbm_to_vmem [thread:$0]  %s367, 384, %s369, %s359, 256, 128, 8
        $region48: #{tpu_custom_call.1} parent=39 // pred_fallthru
          _
      $region40: #{tpu_custom_call.1} parent=5 // pred_fallthru
        _
      %p375 = scmp.le.s32.totalorder 1, %s30
      %p376 = scmp.lt.s32.totalorder %s30, 3
      %p377 = pnand %p375, %p376
      %p378 = pneg %p377
      // Predicated region
      $region49: #{tpu_custom_call.1} parent=5 // pred_check
        _
      $region50: #{tpu_custom_call.1} parent=5 // pred_check_branch
        %380 = sbr.rel (%p377) target = $region52
      $region51: #{tpu_custom_call.1} parent=5 // pred_region
        %s381 = ssub.s32 %s30, 1
        %s382 = sand.u32 %s43, 1
        %s383 = scalar_lea.sflag [#allocation3], %s382
        %s384 = sand.u32 %s43, 1
        %s385 = smul.addr %s384, 8
        %s386 = scalar_lea.vmem [#allocation2], %s385
        // Predicated region
        $region53: #{tpu_custom_call.1} parent=51 // pred_check
          %p387 = pneg %p56
        $region54: #{tpu_custom_call.1} parent=51 // pred_check_branch
          %389 = sbr.rel (%p387) target = $region56
        $region55: #{tpu_custom_call.1} parent=51 // pred_region
          %390 = dma.done %s383, 128
        $region56: #{tpu_custom_call.1} parent=51 // pred_fallthru
          _
        %s391 = sand.u32 %s35, 1
        %s392 = scalar_lea.sflag [#allocation6], %s391
        %s393 = sand.u32 %s69, 1
        %s394 = smul.addr %s393, 24
        %s395 = scalar_lea.vmem [#allocation5], %s394
        // Predicated region
        $region57: #{tpu_custom_call.1} parent=51 // pred_check
          %p396 = pneg %p82
        $region58: #{tpu_custom_call.1} parent=51 // pred_check_branch
          %398 = sbr.rel (%p396) target = $region60
        $region59: #{tpu_custom_call.1} parent=51 // pred_region
          %399 = dma.done %s392, 384
        $region60: #{tpu_custom_call.1} parent=51 // pred_fallthru
          _
        // Predicated region
        $region61: #{tpu_custom_call.1} parent=51 // pred_check
          %p400 = pneg %p103
        $region62: #{tpu_custom_call.1} parent=51 // pred_check_branch
          %402 = sbr.rel (%p400) target = $region64
        $region63: #{tpu_custom_call.1} parent=51 // pred_region
          %403 = dma.done [#allocation6], 4096
        $region64: #{tpu_custom_call.1} parent=51 // pred_fallthru
          _
        // Predicated region
        $region65: #{tpu_custom_call.1} parent=51 // pred_check
          %p404 = pneg %p124
        $region66: #{tpu_custom_call.1} parent=51 // pred_check_branch
          %406 = sbr.rel (%p404) target = $region68
        $region67: #{tpu_custom_call.1} parent=51 // pred_region
          %407 = dma.done [#allocation9], 2048
        $region68: #{tpu_custom_call.1} parent=51 // pred_fallthru
          _
        // Predicated region
        $region69: #{tpu_custom_call.1} parent=51 // pred_check
          %p408 = pneg %p145
        $region70: #{tpu_custom_call.1} parent=51 // pred_check_branch
          %410 = sbr.rel (%p408) target = $region72
        $region71: #{tpu_custom_call.1} parent=51 // pred_region
          %411 = dma.done [#allocation9], 2048
        $region72: #{tpu_custom_call.1} parent=51 // pred_fallthru
          _
        // Predicated region
        $region73: #{tpu_custom_call.1} parent=51 // pred_check
          %p412 = pneg %p187
        $region74: #{tpu_custom_call.1} parent=51 // pred_check_branch
          %414 = sbr.rel (%p412) target = $region76
        $region75: #{tpu_custom_call.1} parent=51 // pred_region
          %415 = dma.done [#allocation12], 4096
        $region76: #{tpu_custom_call.1} parent=51 // pred_fallthru
          _
        %s416 = sand.u32 %s43, 1
        %s417 = scalar_lea.sflag [#allocation3], %s416
        %s418 = sand.u32 %s43, 1
        %s419 = smul.addr %s418, 8
        %s420 = scalar_lea.vmem [#allocation2], %s419
        %p421 = pneg %p56
        %p422 = pneg %p53
        %s423 = sand.u32 %s35, 1
        %s424 = scalar_lea.sflag [#allocation6], %s423
        %s425 = sand.u32 %s69, 1
        %s426 = smul.addr %s425, 24
        %s427 = scalar_lea.vmem [#allocation5], %s426
        %p428 = pneg %p82
        %p429 = pneg %p79
        %p430 = pneg %p103
        %p431 = pneg %p100
        %p432 = pneg %p124
        %p433 = pneg %p121
        %p434 = pneg %p145
        %p435 = pneg %p142
        %p436 = pneg %p166
        %p437 = pneg %p163
        %p438 = pneg %p187
        %p439 = pneg %p184
        %p440 = pneg %p208
        %p441 = pneg %p205
        %p442 = pneg %p234
        %p443 = pneg %p231
        %s444 = sand.u32 %s221, 1
        %s445 = scalar_lea.sflag [#allocation4], %s444
        %s446 = sand.u32 %s221, 1
        %s447 = smul.addr %s446, 8
        %s448 = scalar_lea.vmem [#allocation13], %s447
        %p449 = pneg %p260
        %p450 = pneg %p257
        %s451 = sand.u32 %s247, 1
        %s452 = scalar_lea.sflag [#allocation15], %s451
        %s453 = sand.u32 %s247, 1
        %s454 = smul.addr %s453, 24
        %s455 = scalar_lea.vmem [#allocation14], %s454
        %v456 = vld [vmem:[%s395] sm:$0xff]
        %v457 = vld [vmem:[%s395 + $0x8] sm:$0xff]
        %v458 = vld [vmem:[%s395 + $0x10] sm:$0xff]
        %v459 = vld [vmem:[#allocation7] sm:$0xff]
        %v460 = vld [vmem:[#allocation7 + $0x8] sm:$0xff]
        %v461 = vld [vmem:[#allocation7 + $0x10] sm:$0xff]
        %v462 = vld [vmem:[#allocation7 + $0x18] sm:$0xff]
        %v463 = vld [vmem:[#allocation7 + $0x20] sm:$0xff]
        %v464 = vld [vmem:[#allocation7 + $0x28] sm:$0xff]
        %v465 = vld [vmem:[#allocation7 + $0x30] sm:$0xff]
        %v466 = vld [vmem:[#allocation7 + $0x38] sm:$0xff]
        %v467 = vld [vmem:[#allocation7 + $0x40] sm:$0xff]
        %v468 = vld [vmem:[#allocation7 + $0x48] sm:$0xff]
        %v469 = vld [vmem:[#allocation7 + $0x50] sm:$0xff]
        %v470 = vld [vmem:[#allocation7 + $0x58] sm:$0xff]
        %v471 = vld [vmem:[#allocation7 + $0x60] sm:$0xff]
        %v472 = vld [vmem:[#allocation7 + $0x68] sm:$0xff]
        %v473 = vld [vmem:[#allocation7 + $0x70] sm:$0xff]
        %v474 = vld [vmem:[#allocation7 + $0x78] sm:$0xff]
        %v475 = vld [vmem:[#allocation7 + $0x80] sm:$0xff]
        %v476 = vld [vmem:[#allocation7 + $0x88] sm:$0xff]
        %v477 = vld [vmem:[#allocation7 + $0x90] sm:$0xff]
        %v478 = vld [vmem:[#allocation7 + $0x98] sm:$0xff]
        %v479 = vld [vmem:[#allocation7 + $0xa0] sm:$0xff]
        %v480 = vld [vmem:[#allocation7 + $0xa8] sm:$0xff]
        %v481 = vld [vmem:[#allocation7 + $0xb0] sm:$0xff]
        %v482 = vld [vmem:[#allocation7 + $0xb8] sm:$0xff]
        %v483 = vld [vmem:[#allocation7 + $0xc0] sm:$0xff]
        %v484 = vld [vmem:[#allocation7 + $0xc8] sm:$0xff]
        %v485 = vld [vmem:[#allocation7 + $0xd0] sm:$0xff]
        %v486 = vld [vmem:[#allocation7 + $0xd8] sm:$0xff]
        %v487 = vld [vmem:[#allocation7 + $0xe0] sm:$0xff]
        %v488 = vld [vmem:[#allocation7 + $0xe8] sm:$0xff]
        %v489 = vld [vmem:[#allocation7 + $0xf0] sm:$0xff]
        %v490 = vld [vmem:[#allocation7 + $0xf8] sm:$0xff]
        %v491 = vand.u32 %v460, 4294901760
        %492 = vmatprep.subr.mxu0 %v491
        %v493 = vand.u32 %v459, 4294901760
        %494 = vmatpush1.msra.mxu0 %v493
        %v495 = vand.u32 %v462, 4294901760
        %496 = vmatprep.subr.mxu0 %v495
        %v497 = vand.u32 %v461, 4294901760
        %498 = vmatpush1.msra.mxu0 %v497
        %v499 = vand.u32 %v464, 4294901760
        %500 = vmatprep.subr.mxu0 %v499
        %v501 = vand.u32 %v463, 4294901760
        %502 = vmatpush1.msra.mxu0 %v501
        %v503 = vand.u32 %v466, 4294901760
        %504 = vmatprep.subr.mxu0 %v503
        %v505 = vand.u32 %v465, 4294901760
        %506 = vmatpush1.msra.mxu0 %v505
        %v507 = vand.u32 %v468, 4294901760
        %508 = vmatprep.subr.mxu0 %v507
        %v509 = vand.u32 %v467, 4294901760
        %510 = vmatpush1.msra.mxu0 %v509
        %v511 = vand.u32 %v470, 4294901760
        %512 = vmatprep.subr.mxu0 %v511
        %v513 = vand.u32 %v469, 4294901760
        %514 = vmatpush1.msra.mxu0 %v513
        %v515 = vand.u32 %v472, 4294901760
        %516 = vmatprep.subr.mxu0 %v515
        %v517 = vand.u32 %v471, 4294901760
        %518 = vmatpush1.msra.mxu0 %v517
        %v519 = vand.u32 %v474, 4294901760
        %520 = vmatprep.subr.mxu0 %v519
        %v521 = vand.u32 %v473, 4294901760
        %522 = vmatpush1.msra.mxu0 %v521
        %v523 = vand.u32 %v476, 4294901760
        %524 = vmatprep.subr.mxu0 %v523
        %v525 = vand.u32 %v475, 4294901760
        %526 = vmatpush1.msra.mxu0 %v525
        %v527 = vand.u32 %v478, 4294901760
        %528 = vmatprep.subr.mxu0 %v527
        %v529 = vand.u32 %v477, 4294901760
        %530 = vmatpush1.msra.mxu0 %v529
        %v531 = vand.u32 %v480, 4294901760
        %532 = vmatprep.subr.mxu0 %v531
        %v533 = vand.u32 %v479, 4294901760
        %534 = vmatpush1.msra.mxu0 %v533
        %v535 = vand.u32 %v482, 4294901760
        %536 = vmatprep.subr.mxu0 %v535
        %v537 = vand.u32 %v481, 4294901760
        %538 = vmatpush1.msra.mxu0 %v537
        %v539 = vand.u32 %v484, 4294901760
        %540 = vmatprep.subr.mxu0 %v539
        %v541 = vand.u32 %v483, 4294901760
        %542 = vmatpush1.msra.mxu0 %v541
        %v543 = vand.u32 %v486, 4294901760
        %544 = vmatprep.subr.mxu0 %v543
        %v545 = vand.u32 %v485, 4294901760
        %546 = vmatpush1.msra.mxu0 %v545
        %v547 = vand.u32 %v488, 4294901760
        %548 = vmatprep.subr.mxu0 %v547
        %v549 = vand.u32 %v487, 4294901760
        %550 = vmatpush1.msra.mxu0 %v549
        %v551 = vand.u32 %v490, 4294901760
        %552 = vmatprep.subr.mxu0 %v551
        %v553 = vand.u32 %v489, 4294901760
        %554 = vmatpush1.msra.mxu0 %v553
        %555 = vmatprep.subr.mxu0 0.0
        %556 = vmatpush1.msra.mxu0 0.0
        %557 = vmatprep.subr.mxu0 0.0
        %558 = vmatpush1.msra.mxu0 0.0
        %559 = vmatprep.subr.mxu0 0.0
        %560 = vmatpush1.msra.mxu0 0.0
        %561 = vmatprep.subr.mxu0 0.0
        %562 = vmatpush1.msra.mxu0 0.0
        %563 = vmatprep.subr.mxu0 0.0
        %564 = vmatpush1.msra.mxu0 0.0
        %565 = vmatprep.subr.mxu0 0.0
        %566 = vmatpush1.msra.mxu0 0.0
        %567 = vmatprep.subr.mxu0 0.0
        %568 = vmatpush1.msra.mxu0 0.0
        %569 = vmatprep.subr.mxu0 0.0
        %570 = vmatpush1.msra.mxu0 0.0
        %571 = vmatprep.subr.mxu0 0.0
        %572 = vmatpush1.msra.mxu0 0.0
        %573 = vmatprep.subr.mxu0 0.0
        %574 = vmatpush1.msra.mxu0 0.0
        %575 = vmatprep.subr.mxu0 0.0
        %576 = vmatpush1.msra.mxu0 0.0
        %577 = vmatprep.subr.mxu0 0.0
        %578 = vmatpush1.msra.mxu0 0.0
        %579 = vmatprep.subr.mxu0 0.0
        %580 = vmatpush1.msra.mxu0 0.0
        %581 = vmatprep.subr.mxu0 0.0
        %582 = vmatpush1.msra.mxu0 0.0
        %583 = vmatprep.subr.mxu0 0.0
        %584 = vmatpush1.msra.mxu0 0.0
        %585 = vmatprep.subr.mxu0 0.0
        %586 = vmatpush1.msra.mxu0 0.0
        %587 = vmatprep.mubr.f32.mxu0 0.0
        %v588 = vand.u32 %v456, 4294901760
        %v589 = vsub.f32 %v456, %v588
        %v590 = vand.u32 %v589, 4294901760
        %v591 = vsub.f32 %v589, %v590
        %v592 = vand.u32 %v591, 4294901760
        %593 = vmatmul.mubr.f32.gmra.mrb[0].mxu0 %v592
        %v594 = vpop.f32.mrb[0].mxu0
        %v595 = vadd.f32 0.0, %v594
        %v596 = vpop.f32.mrb[0].mxu0
        %v597 = vadd.f32 0.0, %v596
        %598 = vmatprep.mubr.f32.mxu0 0.0
        %v599 = vand.u32 %v457, 4294901760
        %v600 = vsub.f32 %v457, %v599
        %v601 = vand.u32 %v600, 4294901760
        %v602 = vsub.f32 %v600, %v601
        %v603 = vand.u32 %v602, 4294901760
        %604 = vmatmul.mubr.f32.gmra.mrb[0].mxu0 %v603
        %v605 = vpop.f32.mrb[0].mxu0
        %v606 = vadd.f32 0.0, %v605
        %v607 = vpop.f32.mrb[0].mxu0
        %v608 = vadd.f32 0.0, %v607
        %609 = vmatprep.mubr.f32.mxu0 0.0
        %v610 = vand.u32 %v458, 4294901760
        %v611 = vsub.f32 %v458, %v610
        %v612 = vand.u32 %v611, 4294901760
        %v613 = vsub.f32 %v611, %v612
        %v614 = vand.u32 %v613, 4294901760
        %615 = vmatmul.mubr.f32.gmra.mrb[0].mxu0 %v614
        %v616 = vpop.f32.mrb[0].mxu0
        %v617 = vadd.f32 0.0, %v616
        %v618 = vpop.f32.mrb[0].mxu0
        %v619 = vadd.f32 0.0, %v618
        %620 = vdwg.mxu0
        %v621 = vand.u32 %v460, 4294901760
        %v622 = vsub.f32 %v460, %v621
        %v623 = vand.u32 %v622, 4294901760
        %v624 = vsub.f32 %v622, %v623
        %v625 = vand.u32 %v624, 4294901760
        %626 = vmatprep.subr.mxu0 %v625
        %v627 = vand.u32 %v459, 4294901760
        %v628 = vsub.f32 %v459, %v627
        %v629 = vand.u32 %v628, 4294901760
        %v630 = vsub.f32 %v628, %v629
        %v631 = vand.u32 %v630, 4294901760
        %632 = vmatpush1.msra.mxu0 %v631
        %v633 = vand.u32 %v462, 4294901760
        %v634 = vsub.f32 %v462, %v633
        %v635 = vand.u32 %v634, 4294901760
        %v636 = vsub.f32 %v634, %v635
        %v637 = vand.u32 %v636, 4294901760
        %638 = vmatprep.subr.mxu0 %v637
        %v639 = vand.u32 %v461, 4294901760
        %v640 = vsub.f32 %v461, %v639
        %v641 = vand.u32 %v640, 4294901760
        %v642 = vsub.f32 %v640, %v641
        %v643 = vand.u32 %v642, 4294901760
        %644 = vmatpush1.msra.mxu0 %v643
        %v645 = vand.u32 %v464, 4294901760
        %v646 = vsub.f32 %v464, %v645
        %v647 = vand.u32 %v646, 4294901760
        %v648 = vsub.f32 %v646, %v647
        %v649 = vand.u32 %v648, 4294901760
        %650 = vmatprep.subr.mxu0 %v649
        %v651 = vand.u32 %v463, 4294901760
        %v652 = vsub.f32 %v463, %v651
        %v653 = vand.u32 %v652, 4294901760
        %v654 = vsub.f32 %v652, %v653
        %v655 = vand.u32 %v654, 4294901760
        %656 = vmatpush1.msra.mxu0 %v655
        %v657 = vand.u32 %v466, 4294901760
        %v658 = vsub.f32 %v466, %v657
        %v659 = vand.u32 %v658, 4294901760
        %v660 = vsub.f32 %v658, %v659
        %v661 = vand.u32 %v660, 4294901760
        %662 = vmatprep.subr.mxu0 %v661
        %v663 = vand.u32 %v465, 4294901760
        %v664 = vsub.f32 %v465, %v663
        %v665 = vand.u32 %v664, 4294901760
        %v666 = vsub.f32 %v664, %v665
        %v667 = vand.u32 %v666, 4294901760
        %668 = vmatpush1.msra.mxu0 %v667
        %v669 = vand.u32 %v468, 4294901760
        %v670 = vsub.f32 %v468, %v669
        %v671 = vand.u32 %v670, 4294901760
        %v672 = vsub.f32 %v670, %v671
        %v673 = vand.u32 %v672, 4294901760
        %674 = vmatprep.subr.mxu0 %v673
        %v675 = vand.u32 %v467, 4294901760
        %v676 = vsub.f32 %v467, %v675
        %v677 = vand.u32 %v676, 4294901760
        %v678 = vsub.f32 %v676, %v677
        %v679 = vand.u32 %v678, 4294901760
        %680 = vmatpush1.msra.mxu0 %v679
        %v681 = vand.u32 %v470, 4294901760
        %v682 = vsub.f32 %v470, %v681
        %v683 = vand.u32 %v682, 4294901760
        %v684 = vsub.f32 %v682, %v683
        %v685 = vand.u32 %v684, 4294901760
        %686 = vmatprep.subr.mxu0 %v685
        %v687 = vand.u32 %v469, 4294901760
        %v688 = vsub.f32 %v469, %v687
        %v689 = vand.u32 %v688, 4294901760
        %v690 = vsub.f32 %v688, %v689
        %v691 = vand.u32 %v690, 4294901760
        %692 = vmatpush1.msra.mxu0 %v691
        %v693 = vand.u32 %v472, 4294901760
        %v694 = vsub.f32 %v472, %v693
        %v695 = vand.u32 %v694, 4294901760
        %v696 = vsub.f32 %v694, %v695
        %v697 = vand.u32 %v696, 4294901760
        %698 = vmatprep.subr.mxu0 %v697
        %v699 = vand.u32 %v471, 4294901760
        %v700 = vsub.f32 %v471, %v699
        %v701 = vand.u32 %v700, 4294901760
        %v702 = vsub.f32 %v700, %v701
        %v703 = vand.u32 %v702, 4294901760
        %704 = vmatpush1.msra.mxu0 %v703
        %v705 = vand.u32 %v474, 4294901760
        %v706 = vsub.f32 %v474, %v705
        %v707 = vand.u32 %v706, 4294901760
        %v708 = vsub.f32 %v706, %v707
        %v709 = vand.u32 %v708, 4294901760
        %710 = vmatprep.subr.mxu0 %v709
        %v711 = vand.u32 %v473, 4294901760
        %v712 = vsub.f32 %v473, %v711
        %v713 = vand.u32 %v712, 4294901760
        %v714 = vsub.f32 %v712, %v713
        %v715 = vand.u32 %v714, 4294901760
        %716 = vmatpush1.msra.mxu0 %v715
        %v717 = vand.u32 %v476, 4294901760
        %v718 = vsub.f32 %v476, %v717
        %v719 = vand.u32 %v718, 4294901760
        %v720 = vsub.f32 %v718, %v719
        %v721 = vand.u32 %v720, 4294901760
        %722 = vmatprep.subr.mxu0 %v721
        %v723 = vand.u32 %v475, 4294901760
        %v724 = vsub.f32 %v475, %v723
        %v725 = vand.u32 %v724, 4294901760
        %v726 = vsub.f32 %v724, %v725
        %v727 = vand.u32 %v726, 4294901760
        %728 = vmatpush1.msra.mxu0 %v727
        %v729 = vand.u32 %v478, 4294901760
        %v730 = vsub.f32 %v478, %v729
        %v731 = vand.u32 %v730, 4294901760
        %v732 = vsub.f32 %v730, %v731
        %v733 = vand.u32 %v732, 4294901760
        %734 = vmatprep.subr.mxu0 %v733
        %v735 = vand.u32 %v477, 4294901760
        %v736 = vsub.f32 %v477, %v735
        %v737 = vand.u32 %v736, 4294901760
        %v738 = vsub.f32 %v736, %v737
        %v739 = vand.u32 %v738, 4294901760
        %740 = vmatpush1.msra.mxu0 %v739
        %v741 = vand.u32 %v480, 4294901760
        %v742 = vsub.f32 %v480, %v741
        %v743 = vand.u32 %v742, 4294901760
        %v744 = vsub.f32 %v742, %v743
        %v745 = vand.u32 %v744, 4294901760
        %746 = vmatprep.subr.mxu0 %v745
        %v747 = vand.u32 %v479, 4294901760
        %v748 = vsub.f32 %v479, %v747
        %v749 = vand.u32 %v748, 4294901760
        %v750 = vsub.f32 %v748, %v749
        %v751 = vand.u32 %v750, 4294901760
        %752 = vmatpush1.msra.mxu0 %v751
        %v753 = vand.u32 %v482, 4294901760
        %v754 = vsub.f32 %v482, %v753
        %v755 = vand.u32 %v754, 4294901760
        %v756 = vsub.f32 %v754, %v755
        %v757 = vand.u32 %v756, 4294901760
        %758 = vmatprep.subr.mxu0 %v757
        %v759 = vand.u32 %v481, 4294901760
        %v760 = vsub.f32 %v481, %v759
        %v761 = vand.u32 %v760, 4294901760
        %v762 = vsub.f32 %v760, %v761
        %v763 = vand.u32 %v762, 4294901760
        %764 = vmatpush1.msra.mxu0 %v763
        %v765 = vand.u32 %v484, 4294901760
        %v766 = vsub.f32 %v484, %v765
        %v767 = vand.u32 %v766, 4294901760
        %v768 = vsub.f32 %v766, %v767
        %v769 = vand.u32 %v768, 4294901760
        %770 = vmatprep.subr.mxu0 %v769
        %v771 = vand.u32 %v483, 4294901760
        %v772 = vsub.f32 %v483, %v771
        %v773 = vand.u32 %v772, 4294901760
        %v774 = vsub.f32 %v772, %v773
        %v775 = vand.u32 %v774, 4294901760
        %776 = vmatpush1.msra.mxu0 %v775
        %v777 = vand.u32 %v486, 4294901760
        %v778 = vsub.f32 %v486, %v777
        %v779 = vand.u32 %v778, 4294901760
        %v780 = vsub.f32 %v778, %v779
        %v781 = vand.u32 %v780, 4294901760
        %782 = vmatprep.subr.mxu0 %v781
        %v783 = vand.u32 %v485, 4294901760
        %v784 = vsub.f32 %v485, %v783
        %v785 = vand.u32 %v784, 4294901760
        %v786 = vsub.f32 %v784, %v785
        %v787 = vand.u32 %v786, 4294901760
        %788 = vmatpush1.msra.mxu0 %v787
        %v789 = vand.u32 %v488, 4294901760
        %v790 = vsub.f32 %v488, %v789
        %v791 = vand.u32 %v790, 4294901760
        %v792 = vsub.f32 %v790, %v791
        %v793 = vand.u32 %v792, 4294901760
        %794 = vmatprep.subr.mxu0 %v793
        %v795 = vand.u32 %v487, 4294901760
        %v796 = vsub.f32 %v487, %v795
        %v797 = vand.u32 %v796, 4294901760
        %v798 = vsub.f32 %v796, %v797
        %v799 = vand.u32 %v798, 4294901760
        %800 = vmatpush1.msra.mxu0 %v799
        %v801 = vand.u32 %v490, 4294901760
        %v802 = vsub.f32 %v490, %v801
        %v803 = vand.u32 %v802, 4294901760
        %v804 = vsub.f32 %v802, %v803
        %v805 = vand.u32 %v804, 4294901760
        %806 = vmatprep.subr.mxu0 %v805
        %v807 = vand.u32 %v489, 4294901760
        %v808 = vsub.f32 %v489, %v807
        %v809 = vand.u32 %v808, 4294901760
        %v810 = vsub.f32 %v808, %v809
        %v811 = vand.u32 %v810, 4294901760
        %812 = vmatpush1.msra.mxu0 %v811
        %813 = vmatprep.subr.mxu0 0.0
        %814 = vmatpush1.msra.mxu0 0.0
        %815 = vmatprep.subr.mxu0 0.0
        %816 = vmatpush1.msra.mxu0 0.0
        %817 = vmatprep.subr.mxu0 0.0
        %818 = vmatpush1.msra.mxu0 0.0
        %819 = vmatprep.subr.mxu0 0.0
        %820 = vmatpush1.msra.mxu0 0.0
        %821 = vmatprep.subr.mxu0 0.0
        %822 = vmatpush1.msra.mxu0 0.0
        %823 = vmatprep.subr.mxu0 0.0
        %824 = vmatpush1.msra.mxu0 0.0
        %825 = vmatprep.subr.mxu0 0.0
        %826 = vmatpush1.msra.mxu0 0.0
        %827 = vmatprep.subr.mxu0 0.0
        %828 = vmatpush1.msra.mxu0 0.0
        %829 = vmatprep.subr.mxu0 0.0
        %830 = vmatpush1.msra.mxu0 0.0
        %831 = vmatprep.subr.mxu0 0.0
        %832 = vmatpush1.msra.mxu0 0.0
        %833 = vmatprep.subr.mxu0 0.0
        %834 = vmatpush1.msra.mxu0 0.0
        %835 = vmatprep.subr.mxu0 0.0
        %836 = vmatpush1.msra.mxu0 0.0
        %837 = vmatprep.subr.mxu0 0.0
        %838 = vmatpush1.msra.mxu0 0.0
        %839 = vmatprep.subr.mxu0 0.0
        %840 = vmatpush1.msra.mxu0 0.0
        %841 = vmatprep.subr.mxu0 0.0
        %842 = vmatpush1.msra.mxu0 0.0
        %843 = vmatprep.subr.mxu0 0.0
        %844 = vmatpush1.msra.mxu0 0.0
        %845 = vmatprep.mubr.f32.mxu0 0.0
        %v846 = vand.u32 %v456, 4294901760
        %847 = vmatmul.mubr.f32.gmra.mrb[0].mxu0 %v846
        %v848 = vpop.f32.mrb[0].mxu0
        %v849 = vadd.f32 %v595, %v848
        %v850 = vpop.f32.mrb[0].mxu0
        %v851 = vadd.f32 %v597, %v850
        %852 = vmatprep.mubr.f32.mxu0 0.0
        %v853 = vand.u32 %v457, 4294901760
        %854 = vmatmul.mubr.f32.gmra.mrb[0].mxu0 %v853
        %v855 = vpop.f32.mrb[0].mxu0
        %v856 = vadd.f32 %v606, %v855
        %v857 = vpop.f32.mrb[0].mxu0
        %v858 = vadd.f32 %v608, %v857
        %859 = vmatprep.mubr.f32.mxu0 0.0
        %v860 = vand.u32 %v458, 4294901760
        %861 = vmatmul.mubr.f32.gmra.mrb[0].mxu0 %v860
        %v862 = vpop.f32.mrb[0].mxu0
        %v863 = vadd.f32 %v617, %v862
        %v864 = vpop.f32.mrb[0].mxu0
        %v865 = vadd.f32 %v619, %v864
        %866 = vdwg.mxu0
        %v867 = vand.u32 %v460, 4294901760
        %v868 = vsub.f32 %v460, %v867
        %869 = vmatprep.subr.mxu0 %v868
        %v870 = vand.u32 %v459, 4294901760
        %v871 = vsub.f32 %v459, %v870
        %872 = vmatpush1.msra.mxu0 %v871
        %v873 = vand.u32 %v462, 4294901760
        %v874 = vsub.f32 %v462, %v873
        %875 = vmatprep.subr.mxu0 %v874
        %v876 = vand.u32 %v461, 4294901760
        %v877 = vsub.f32 %v461, %v876
        %878 = vmatpush1.msra.mxu0 %v877
        %v879 = vand.u32 %v464, 4294901760
        %v880 = vsub.f32 %v464, %v879
        %881 = vmatprep.subr.mxu0 %v880
        %v882 = vand.u32 %v463, 4294901760
        %v883 = vsub.f32 %v463, %v882
        %884 = vmatpush1.msra.mxu0 %v883
        %v885 = vand.u32 %v466, 4294901760
        %v886 = vsub.f32 %v466, %v885
        %887 = vmatprep.subr.mxu0 %v886
        %v888 = vand.u32 %v465, 4294901760
        %v889 = vsub.f32 %v465, %v888
        %890 = vmatpush1.msra.mxu0 %v889
        %v891 = vand.u32 %v468, 4294901760
        %v892 = vsub.f32 %v468, %v891
        %893 = vmatprep.subr.mxu0 %v892
        %v894 = vand.u32 %v467, 4294901760
        %v895 = vsub.f32 %v467, %v894
        %896 = vmatpush1.msra.mxu0 %v895
        %v897 = vand.u32 %v470, 4294901760
        %v898 = vsub.f32 %v470, %v897
        %899 = vmatprep.subr.mxu0 %v898
        %v900 = vand.u32 %v469, 4294901760
        %v901 = vsub.f32 %v469, %v900
        %902 = vmatpush1.msra.mxu0 %v901
        %v903 = vand.u32 %v472, 4294901760
        %v904 = vsub.f32 %v472, %v903
        %905 = vmatprep.subr.mxu0 %v904
        %v906 = vand.u32 %v471, 4294901760
        %v907 = vsub.f32 %v471, %v906
        %908 = vmatpush1.msra.mxu0 %v907
        %v909 = vand.u32 %v474, 4294901760
        %v910 = vsub.f32 %v474, %v909
        %911 = vmatprep.subr.mxu0 %v910
        %v912 = vand.u32 %v473, 4294901760
        %v913 = vsub.f32 %v473, %v912
        %914 = vmatpush1.msra.mxu0 %v913
        %v915 = vand.u32 %v476, 4294901760
        %v916 = vsub.f32 %v476, %v915
        %917 = vmatprep.subr.mxu0 %v916
        %v918 = vand.u32 %v475, 4294901760
        %v919 = vsub.f32 %v475, %v918
        %920 = vmatpush1.msra.mxu0 %v919
        %v921 = vand.u32 %v478, 4294901760
        %v922 = vsub.f32 %v478, %v921
        %923 = vmatprep.subr.mxu0 %v922
        %v924 = vand.u32 %v477, 4294901760
        %v925 = vsub.f32 %v477, %v924
        %926 = vmatpush1.msra.mxu0 %v925
        %v927 = vand.u32 %v480, 4294901760
        %v928 = vsub.f32 %v480, %v927
        %929 = vmatprep.subr.mxu0 %v928
        %v930 = vand.u32 %v479, 4294901760
        %v931 = vsub.f32 %v479, %v930
        %932 = vmatpush1.msra.mxu0 %v931
        %v933 = vand.u32 %v482, 4294901760
        %v934 = vsub.f32 %v482, %v933
        %935 = vmatprep.subr.mxu0 %v934
        %v936 = vand.u32 %v481, 4294901760
        %v937 = vsub.f32 %v481, %v936
        %938 = vmatpush1.msra.mxu0 %v937
        %v939 = vand.u32 %v484, 4294901760
        %v940 = vsub.f32 %v484, %v939
        %941 = vmatprep.subr.mxu0 %v940
        %v942 = vand.u32 %v483, 4294901760
        %v943 = vsub.f32 %v483, %v942
        %944 = vmatpush1.msra.mxu0 %v943
        %v945 = vand.u32 %v486, 4294901760
        %v946 = vsub.f32 %v486, %v945
        %947 = vmatprep.subr.mxu0 %v946
        %v948 = vand.u32 %v485, 4294901760
        %v949 = vsub.f32 %v485, %v948
        %950 = vmatpush1.msra.mxu0 %v949
        %v951 = vand.u32 %v488, 4294901760
        %v952 = vsub.f32 %v488, %v951
        %953 = vmatprep.subr.mxu0 %v952
        %v954 = vand.u32 %v487, 4294901760
        %v955 = vsub.f32 %v487, %v954
        %956 = vmatpush1.msra.mxu0 %v955
        %v957 = vand.u32 %v490, 4294901760
        %v958 = vsub.f32 %v490, %v957
        %959 = vmatprep.subr.mxu0 %v958
        %v960 = vand.u32 %v489, 4294901760
        %v961 = vsub.f32 %v489, %v960
        %962 = vmatpush1.msra.mxu0 %v961
        %963 = vmatprep.subr.mxu0 0.0
        %964 = vmatpush1.msra.mxu0 0.0
        %965 = vmatprep.subr.mxu0 0.0
        %966 = vmatpush1.msra.mxu0 0.0
        %967 = vmatprep.subr.mxu0 0.0
        %968 = vmatpush1.msra.mxu0 0.0
        %969 = vmatprep.subr.mxu0 0.0
        %970 = vmatpush1.msra.mxu0 0.0
        %971 = vmatprep.subr.mxu0 0.0
        %972 = vmatpush1.msra.mxu0 0.0
        %973 = vmatprep.subr.mxu0 0.0
        %974 = vmatpush1.msra.mxu0 0.0
        %975 = vmatprep.subr.mxu0 0.0
        %976 = vmatpush1.msra.mxu0 0.0
        %977 = vmatprep.subr.mxu0 0.0
        %978 = vmatpush1.msra.mxu0 0.0
        %979 = vmatprep.subr.mxu0 0.0
        %980 = vmatpush1.msra.mxu0 0.0
        %981 = vmatprep.subr.mxu0 0.0
        %982 = vmatpush1.msra.mxu0 0.0
        %983 = vmatprep.subr.mxu0 0.0
        %984 = vmatpush1.msra.mxu0 0.0
        %985 = vmatprep.subr.mxu0 0.0
        %986 = vmatpush1.msra.mxu0 0.0
        %987 = vmatprep.subr.mxu0 0.0
        %988 = vmatpush1.msra.mxu0 0.0
        %989 = vmatprep.subr.mxu0 0.0
        %990 = vmatpush1.msra.mxu0 0.0
        %991 = vmatprep.subr.mxu0 0.0
        %992 = vmatpush1.msra.mxu0 0.0
        %993 = vmatprep.subr.mxu0 0.0
        %994 = vmatpush1.msra.mxu0 0.0
        %995 = vmatprep.mubr.f32.mxu0 0.0
        %v996 = vand.u32 %v456, 4294901760
        %v997 = vsub.f32 %v456, %v996
        %998 = vmatmul.mubr.f32.gmra.mrb[0].mxu0 %v997
        %v999 = vpop.f32.mrb[0].mxu0
        %v1000 = vadd.f32 %v849, %v999
        %v1001 = vpop.f32.mrb[0].mxu0
        %v1002 = vadd.f32 %v851, %v1001
        %1003 = vmatprep.mubr.f32.mxu0 0.0
        %v1004 = vand.u32 %v457, 4294901760
        %v1005 = vsub.f32 %v457, %v1004
        %1006 = vmatmul.mubr.f32.gmra.mrb[0].mxu0 %v1005
        %v1007 = vpop.f32.mrb[0].mxu0
        %v1008 = vadd.f32 %v856, %v1007
        %v1009 = vpop.f32.mrb[0].mxu0
        %v1010 = vadd.f32 %v858, %v1009
        %1011 = vmatprep.mubr.f32.mxu0 0.0
        %v1012 = vand.u32 %v458, 4294901760
        %v1013 = vsub.f32 %v458, %v1012
        %1014 = vmatmul.mubr.f32.gmra.mrb[0].mxu0 %v1013
        %v1015 = vpop.f32.mrb[0].mxu0
        %v1016 = vadd.f32 %v863, %v1015
        %v1017 = vpop.f32.mrb[0].mxu0
        %v1018 = vadd.f32 %v865, %v1017
        %1019 = vdwg.mxu0
        %v1020 = vand.u32 %v460, 4294901760
        %1021 = vmatprep.subr.mxu0 %v1020
        %v1022 = vand.u32 %v459, 4294901760
        %1023 = vmatpush1.msra.mxu0 %v1022
        %v1024 = vand.u32 %v462, 4294901760
        %1025 = vmatprep.subr.mxu0 %v1024
        %v1026 = vand.u32 %v461, 4294901760
        %1027 = vmatpush1.msra.mxu0 %v1026
        %v1028 = vand.u32 %v464, 4294901760
        %1029 = vmatprep.subr.mxu0 %v1028
        %v1030 = vand.u32 %v463, 4294901760
        %1031 = vmatpush1.msra.mxu0 %v1030
        %v1032 = vand.u32 %v466, 4294901760
        %1033 = vmatprep.subr.mxu0 %v1032
        %v1034 = vand.u32 %v465, 4294901760
        %1035 = vmatpush1.msra.mxu0 %v1034
        %v1036 = vand.u32 %v468, 4294901760
        %1037 = vmatprep.subr.mxu0 %v1036
        %v1038 = vand.u32 %v467, 4294901760
        %1039 = vmatpush1.msra.mxu0 %v1038
        %v1040 = vand.u32 %v470, 4294901760
        %1041 = vmatprep.subr.mxu0 %v1040
        %v1042 = vand.u32 %v469, 4294901760
        %1043 = vmatpush1.msra.mxu0 %v1042
        %v1044 = vand.u32 %v472, 4294901760
        %1045 = vmatprep.subr.mxu0 %v1044
        %v1046 = vand.u32 %v471, 4294901760
        %1047 = vmatpush1.msra.mxu0 %v1046
        %v1048 = vand.u32 %v474, 4294901760
        %1049 = vmatprep.subr.mxu0 %v1048
        %v1050 = vand.u32 %v473, 4294901760
        %1051 = vmatpush1.msra.mxu0 %v1050
        %v1052 = vand.u32 %v476, 4294901760
        %1053 = vmatprep.subr.mxu0 %v1052
        %v1054 = vand.u32 %v475, 4294901760
        %1055 = vmatpush1.msra.mxu0 %v1054
        %v1056 = vand.u32 %v478, 4294901760
        %1057 = vmatprep.subr.mxu0 %v1056
        %v1058 = vand.u32 %v477, 4294901760
        %1059 = vmatpush1.msra.mxu0 %v1058
        %v1060 = vand.u32 %v480, 4294901760
        %1061 = vmatprep.subr.mxu0 %v1060
        %v1062 = vand.u32 %v479, 4294901760
        %1063 = vmatpush1.msra.mxu0 %v1062
        %v1064 = vand.u32 %v482, 4294901760
        %1065 = vmatprep.subr.mxu0 %v1064
        %v1066 = vand.u32 %v481, 4294901760
        %1067 = vmatpush1.msra.mxu0 %v1066
        %v1068 = vand.u32 %v484, 4294901760
        %1069 = vmatprep.subr.mxu0 %v1068
        %v1070 = vand.u32 %v483, 4294901760
        %1071 = vmatpush1.msra.mxu0 %v1070
        %v1072 = vand.u32 %v486, 4294901760
        %1073 = vmatprep.subr.mxu0 %v1072
        %v1074 = vand.u32 %v485, 4294901760
        %1075 = vmatpush1.msra.mxu0 %v1074
        %v1076 = vand.u32 %v488, 4294901760
        %1077 = vmatprep.subr.mxu0 %v1076
        %v1078 = vand.u32 %v487, 4294901760
        %1079 = vmatpush1.msra.mxu0 %v1078
        %v1080 = vand.u32 %v490, 4294901760
        %1081 = vmatprep.subr.mxu0 %v1080
        %v1082 = vand.u32 %v489, 4294901760
        %1083 = vmatpush1.msra.mxu0 %v1082
        %1084 = vmatprep.subr.mxu0 0.0
        %1085 = vmatpush1.msra.mxu0 0.0
        %1086 = vmatprep.subr.mxu0 0.0
        %1087 = vmatpush1.msra.mxu0 0.0
        %1088 = vmatprep.subr.mxu0 0.0
        %1089 = vmatpush1.msra.mxu0 0.0
        %1090 = vmatprep.subr.mxu0 0.0
        %1091 = vmatpush1.msra.mxu0 0.0
        %1092 = vmatprep.subr.mxu0 0.0
        %1093 = vmatpush1.msra.mxu0 0.0
        %1094 = vmatprep.subr.mxu0 0.0
        %1095 = vmatpush1.msra.mxu0 0.0
        %1096 = vmatprep.subr.mxu0 0.0
        %1097 = vmatpush1.msra.mxu0 0.0
        %1098 = vmatprep.subr.mxu0 0.0
        %1099 = vmatpush1.msra.mxu0 0.0
        %1100 = vmatprep.subr.mxu0 0.0
        %1101 = vmatpush1.msra.mxu0 0.0
        %1102 = vmatprep.subr.mxu0 0.0
        %1103 = vmatpush1.msra.mxu0 0.0
        %1104 = vmatprep.subr.mxu0 0.0
        %1105 = vmatpush1.msra.mxu0 0.0
        %1106 = vmatprep.subr.mxu0 0.0
        %1107 = vmatpush1.msra.mxu0 0.0
        %1108 = vmatprep.subr.mxu0 0.0
        %1109 = vmatpush1.msra.mxu0 0.0
        %1110 = vmatprep.subr.mxu0 0.0
        %1111 = vmatpush1.msra.mxu0 0.0
        %1112 = vmatprep.subr.mxu0 0.0
        %1113 = vmatpush1.msra.mxu0 0.0
        %1114 = vmatprep.subr.mxu0 0.0
        %1115 = vmatpush1.msra.mxu0 0.0
        %1116 = vmatprep.mubr.f32.mxu0 0.0
        %v1117 = vand.u32 %v456, 4294901760
        %v1118 = vsub.f32 %v456, %v1117
        %v1119 = vand.u32 %v1118, 4294901760
        %1120 = vmatmul.mubr.f32.gmra.mrb[0].mxu0 %v1119
        %v1121 = vpop.f32.mrb[0].mxu0
        %v1122 = vadd.f32 %v1000, %v1121
        %v1123 = vpop.f32.mrb[0].mxu0
        %v1124 = vadd.f32 %v1002, %v1123
        %1125 = vmatprep.mubr.f32.mxu0 0.0
        %v1126 = vand.u32 %v457, 4294901760
        %v1127 = vsub.f32 %v457, %v1126
        %v1128 = vand.u32 %v1127, 4294901760
        %1129 = vmatmul.mubr.f32.gmra.mrb[0].mxu0 %v1128
        %v1130 = vpop.f32.mrb[0].mxu0
        %v1131 = vadd.f32 %v1008, %v1130
        %v1132 = vpop.f32.mrb[0].mxu0
        %v1133 = vadd.f32 %v1010, %v1132
        %1134 = vmatprep.mubr.f32.mxu0 0.0
        %v1135 = vand.u32 %v458, 4294901760
        %v1136 = vsub.f32 %v458, %v1135
        %v1137 = vand.u32 %v1136, 4294901760
        %1138 = vmatmul.mubr.f32.gmra.mrb[0].mxu0 %v1137
        %v1139 = vpop.f32.mrb[0].mxu0
        %v1140 = vadd.f32 %v1016, %v1139
        %v1141 = vpop.f32.mrb[0].mxu0
        %v1142 = vadd.f32 %v1018, %v1141
        %1143 = vdwg.mxu0
        %v1144 = vand.u32 %v460, 4294901760
        %v1145 = vsub.f32 %v460, %v1144
        %v1146 = vand.u32 %v1145, 4294901760
        %1147 = vmatprep.subr.mxu0 %v1146
        %v1148 = vand.u32 %v459, 4294901760
        %v1149 = vsub.f32 %v459, %v1148
        %v1150 = vand.u32 %v1149, 4294901760
        %1151 = vmatpush1.msra.mxu0 %v1150
        %v1152 = vand.u32 %v462, 4294901760
        %v1153 = vsub.f32 %v462, %v1152
        %v1154 = vand.u32 %v1153, 4294901760
        %1155 = vmatprep.subr.mxu0 %v1154
        %v1156 = vand.u32 %v461, 4294901760
        %v1157 = vsub.f32 %v461, %v1156
        %v1158 = vand.u32 %v1157, 4294901760
        %1159 = vmatpush1.msra.mxu0 %v1158
        %v1160 = vand.u32 %v464, 4294901760
        %v1161 = vsub.f32 %v464, %v1160
        %v1162 = vand.u32 %v1161, 4294901760
        %1163 = vmatprep.subr.mxu0 %v1162
        %v1164 = vand.u32 %v463, 4294901760
        %v1165 = vsub.f32 %v463, %v1164
        %v1166 = vand.u32 %v1165, 4294901760
        %1167 = vmatpush1.msra.mxu0 %v1166
        %v1168 = vand.u32 %v466, 4294901760
        %v1169 = vsub.f32 %v466, %v1168
        %v1170 = vand.u32 %v1169, 4294901760
        %1171 = vmatprep.subr.mxu0 %v1170
        %v1172 = vand.u32 %v465, 4294901760
        %v1173 = vsub.f32 %v465, %v1172
        %v1174 = vand.u32 %v1173, 4294901760
        %1175 = vmatpush1.msra.mxu0 %v1174
        %v1176 = vand.u32 %v468, 4294901760
        %v1177 = vsub.f32 %v468, %v1176
        %v1178 = vand.u32 %v1177, 4294901760
        %1179 = vmatprep.subr.mxu0 %v1178
        %v1180 = vand.u32 %v467, 4294901760
        %v1181 = vsub.f32 %v467, %v1180
        %v1182 = vand.u32 %v1181, 4294901760
        %1183 = vmatpush1.msra.mxu0 %v1182
        %v1184 = vand.u32 %v470, 4294901760
        %v1185 = vsub.f32 %v470, %v1184
        %v1186 = vand.u32 %v1185, 4294901760
        %1187 = vmatprep.subr.mxu0 %v1186
        %v1188 = vand.u32 %v469, 4294901760
        %v1189 = vsub.f32 %v469, %v1188
        %v1190 = vand.u32 %v1189, 4294901760
        %1191 = vmatpush1.msra.mxu0 %v1190
        %v1192 = vand.u32 %v472, 4294901760
        %v1193 = vsub.f32 %v472, %v1192
        %v1194 = vand.u32 %v1193, 4294901760
        %1195 = vmatprep.subr.mxu0 %v1194
        %v1196 = vand.u32 %v471, 4294901760
        %v1197 = vsub.f32 %v471, %v1196
        %v1198 = vand.u32 %v1197, 4294901760
        %1199 = vmatpush1.msra.mxu0 %v1198
        %v1200 = vand.u32 %v474, 4294901760
        %v1201 = vsub.f32 %v474, %v1200
        %v1202 = vand.u32 %v1201, 4294901760
        %1203 = vmatprep.subr.mxu0 %v1202
        %v1204 = vand.u32 %v473, 4294901760
        %v1205 = vsub.f32 %v473, %v1204
        %v1206 = vand.u32 %v1205, 4294901760
        %1207 = vmatpush1.msra.mxu0 %v1206
        %v1208 = vand.u32 %v476, 4294901760
        %v1209 = vsub.f32 %v476, %v1208
        %v1210 = vand.u32 %v1209, 4294901760
        %1211 = vmatprep.subr.mxu0 %v1210
        %v1212 = vand.u32 %v475, 4294901760
        %v1213 = vsub.f32 %v475, %v1212
        %v1214 = vand.u32 %v1213, 4294901760
        %1215 = vmatpush1.msra.mxu0 %v1214
        %v1216 = vand.u32 %v478, 4294901760
        %v1217 = vsub.f32 %v478, %v1216
        %v1218 = vand.u32 %v1217, 4294901760
        %1219 = vmatprep.subr.mxu0 %v1218
        %v1220 = vand.u32 %v477, 4294901760
        %v1221 = vsub.f32 %v477, %v1220
        %v1222 = vand.u32 %v1221, 4294901760
        %1223 = vmatpush1.msra.mxu0 %v1222
        %v1224 = vand.u32 %v480, 4294901760
        %v1225 = vsub.f32 %v480, %v1224
        %v1226 = vand.u32 %v1225, 4294901760
        %1227 = vmatprep.subr.mxu0 %v1226
        %v1228 = vand.u32 %v479, 4294901760
        %v1229 = vsub.f32 %v479, %v1228
        %v1230 = vand.u32 %v1229, 4294901760
        %1231 = vmatpush1.msra.mxu0 %v1230
        %v1232 = vand.u32 %v482, 4294901760
        %v1233 = vsub.f32 %v482, %v1232
        %v1234 = vand.u32 %v1233, 4294901760
        %1235 = vmatprep.subr.mxu0 %v1234
        %v1236 = vand.u32 %v481, 4294901760
        %v1237 = vsub.f32 %v481, %v1236
        %v1238 = vand.u32 %v1237, 4294901760
        %1239 = vmatpush1.msra.mxu0 %v1238
        %v1240 = vand.u32 %v484, 4294901760
        %v1241 = vsub.f32 %v484, %v1240
        %v1242 = vand.u32 %v1241, 4294901760
        %1243 = vmatprep.subr.mxu0 %v1242
        %v1244 = vand.u32 %v483, 4294901760
        %v1245 = vsub.f32 %v483, %v1244
        %v1246 = vand.u32 %v1245, 4294901760
        %1247 = vmatpush1.msra.mxu0 %v1246
        %v1248 = vand.u32 %v486, 4294901760
        %v1249 = vsub.f32 %v486, %v1248
        %v1250 = vand.u32 %v1249, 4294901760
        %1251 = vmatprep.subr.mxu0 %v1250
        %v1252 = vand.u32 %v485, 4294901760
        %v1253 = vsub.f32 %v485, %v1252
        %v1254 = vand.u32 %v1253, 4294901760
        %1255 = vmatpush1.msra.mxu0 %v1254
        %v1256 = vand.u32 %v488, 4294901760
        %v1257 = vsub.f32 %v488, %v1256
        %v1258 = vand.u32 %v1257, 4294901760
        %1259 = vmatprep.subr.mxu0 %v1258
        %v1260 = vand.u32 %v487, 4294901760
        %v1261 = vsub.f32 %v487, %v1260
        %v1262 = vand.u32 %v1261, 4294901760
        %1263 = vmatpush1.msra.mxu0 %v1262
        %v1264 = vand.u32 %v490, 4294901760
        %v1265 = vsub.f32 %v490, %v1264
        %v1266 = vand.u32 %v1265, 4294901760
        %1267 = vmatprep.subr.mxu0 %v1266
        %v1268 = vand.u32 %v489, 4294901760
        %v1269 = vsub.f32 %v489, %v1268
        %v1270 = vand.u32 %v1269, 4294901760
        %1271 = vmatpush1.msra.mxu0 %v1270
        %1272 = vmatprep.subr.mxu0 0.0
        %1273 = vmatpush1.msra.mxu0 0.0
        %1274 = vmatprep.subr.mxu0 0.0
        %1275 = vmatpush1.msra.mxu0 0.0
        %1276 = vmatprep.subr.mxu0 0.0
        %1277 = vmatpush1.msra.mxu0 0.0
        %1278 = vmatprep.subr.mxu0 0.0
        %1279 = vmatpush1.msra.mxu0 0.0
        %1280 = vmatprep.subr.mxu0 0.0
        %1281 = vmatpush1.msra.mxu0 0.0
        %1282 = vmatprep.subr.mxu0 0.0
        %1283 = vmatpush1.msra.mxu0 0.0
        %1284 = vmatprep.subr.mxu0 0.0
        %1285 = vmatpush1.msra.mxu0 0.0
        %1286 = vmatprep.subr.mxu0 0.0
        %1287 = vmatpush1.msra.mxu0 0.0
        %1288 = vmatprep.subr.mxu0 0.0
        %1289 = vmatpush1.msra.mxu0 0.0
        %1290 = vmatprep.subr.mxu0 0.0
        %1291 = vmatpush1.msra.mxu0 0.0
        %1292 = vmatprep.subr.mxu0 0.0
        %1293 = vmatpush1.msra.mxu0 0.0
        %1294 = vmatprep.subr.mxu0 0.0
        %1295 = vmatpush1.msra.mxu0 0.0
        %1296 = vmatprep.subr.mxu0 0.0
        %1297 = vmatpush1.msra.mxu0 0.0
        %1298 = vmatprep.subr.mxu0 0.0
        %1299 = vmatpush1.msra.mxu0 0.0
        %1300 = vmatprep.subr.mxu0 0.0
        %1301 = vmatpush1.msra.mxu0 0.0
        %1302 = vmatprep.subr.mxu0 0.0
        %1303 = vmatpush1.msra.mxu0 0.0
        %1304 = vmatprep.mubr.f32.mxu0 0.0
        %v1305 = vand.u32 %v456, 4294901760
        %1306 = vmatmul.mubr.f32.gmra.mrb[0].mxu0 %v1305
        %v1307 = vpop.f32.mrb[0].mxu0
        %v1308 = vadd.f32 %v1122, %v1307
        %v1309 = vpop.f32.mrb[0].mxu0
        %v1310 = vadd.f32 %v1124, %v1309
        %1311 = vmatprep.mubr.f32.mxu0 0.0
        %v1312 = vand.u32 %v457, 4294901760
        %1313 = vmatmul.mubr.f32.gmra.mrb[0].mxu0 %v1312
        %v1314 = vpop.f32.mrb[0].mxu0
        %v1315 = vadd.f32 %v1131, %v1314
        %v1316 = vpop.f32.mrb[0].mxu0
        %v1317 = vadd.f32 %v1133, %v1316
        %1318 = vmatprep.mubr.f32.mxu0 0.0
        %v1319 = vand.u32 %v458, 4294901760
        %1320 = vmatmul.mubr.f32.gmra.mrb[0].mxu0 %v1319
        %v1321 = vpop.f32.mrb[0].mxu0
        %v1322 = vadd.f32 %v1140, %v1321
        %v1323 = vpop.f32.mrb[0].mxu0
        %v1324 = vadd.f32 %v1142, %v1323
        %1325 = vdwg.mxu0
        %v1326 = vand.u32 %v460, 4294901760
        %1327 = vmatprep.subr.mxu0 %v1326
        %v1328 = vand.u32 %v459, 4294901760
        %1329 = vmatpush1.msra.mxu0 %v1328
        %v1330 = vand.u32 %v462, 4294901760
        %1331 = vmatprep.subr.mxu0 %v1330
        %v1332 = vand.u32 %v461, 4294901760
        %1333 = vmatpush1.msra.mxu0 %v1332
        %v1334 = vand.u32 %v464, 4294901760
        %1335 = vmatprep.subr.mxu0 %v1334
        %v1336 = vand.u32 %v463, 4294901760
        %1337 = vmatpush1.msra.mxu0 %v1336
        %v1338 = vand.u32 %v466, 4294901760
        %1339 = vmatprep.subr.mxu0 %v1338
        %v1340 = vand.u32 %v465, 4294901760
        %1341 = vmatpush1.msra.mxu0 %v1340
        %v1342 = vand.u32 %v468, 4294901760
        %1343 = vmatprep.subr.mxu0 %v1342
        %v1344 = vand.u32 %v467, 4294901760
        %1345 = vmatpush1.msra.mxu0 %v1344
        %v1346 = vand.u32 %v470, 4294901760
        %1347 = vmatprep.subr.mxu0 %v1346
        %v1348 = vand.u32 %v469, 4294901760
        %1349 = vmatpush1.msra.mxu0 %v1348
        %v1350 = vand.u32 %v472, 4294901760
        %1351 = vmatprep.subr.mxu0 %v1350
        %v1352 = vand.u32 %v471, 4294901760
        %1353 = vmatpush1.msra.mxu0 %v1352
        %v1354 = vand.u32 %v474, 4294901760
        %1355 = vmatprep.subr.mxu0 %v1354
        %v1356 = vand.u32 %v473, 4294901760
        %1357 = vmatpush1.msra.mxu0 %v1356
        %v1358 = vand.u32 %v476, 4294901760
        %1359 = vmatprep.subr.mxu0 %v1358
        %v1360 = vand.u32 %v475, 4294901760
        %1361 = vmatpush1.msra.mxu0 %v1360
        %v1362 = vand.u32 %v478, 4294901760
        %1363 = vmatprep.subr.mxu0 %v1362
        %v1364 = vand.u32 %v477, 4294901760
        %1365 = vmatpush1.msra.mxu0 %v1364
        %v1366 = vand.u32 %v480, 4294901760
        %1367 = vmatprep.subr.mxu0 %v1366
        %v1368 = vand.u32 %v479, 4294901760
        %1369 = vmatpush1.msra.mxu0 %v1368
        %v1370 = vand.u32 %v482, 4294901760
        %1371 = vmatprep.subr.mxu0 %v1370
        %v1372 = vand.u32 %v481, 4294901760
        %1373 = vmatpush1.msra.mxu0 %v1372
        %v1374 = vand.u32 %v484, 4294901760
        %1375 = vmatprep.subr.mxu0 %v1374
        %v1376 = vand.u32 %v483, 4294901760
        %1377 = vmatpush1.msra.mxu0 %v1376
        %v1378 = vand.u32 %v486, 4294901760
        %1379 = vmatprep.subr.mxu0 %v1378
        %v1380 = vand.u32 %v485, 4294901760
        %1381 = vmatpush1.msra.mxu0 %v1380
        %v1382 = vand.u32 %v488, 4294901760
        %1383 = vmatprep.subr.mxu0 %v1382
        %v1384 = vand.u32 %v487, 4294901760
        %1385 = vmatpush1.msra.mxu0 %v1384
        %v1386 = vand.u32 %v490, 4294901760
        %1387 = vmatprep.subr.mxu0 %v1386
        %v1388 = vand.u32 %v489, 4294901760
        %1389 = vmatpush1.msra.mxu0 %v1388
        %1390 = vmatprep.subr.mxu0 0.0
        %1391 = vmatpush1.msra.mxu0 0.0
        %1392 = vmatprep.subr.mxu0 0.0
        %1393 = vmatpush1.msra.mxu0 0.0
        %1394 = vmatprep.subr.mxu0 0.0
        %1395 = vmatpush1.msra.mxu0 0.0
        %1396 = vmatprep.subr.mxu0 0.0
        %1397 = vmatpush1.msra.mxu0 0.0
        %1398 = vmatprep.subr.mxu0 0.0
        %1399 = vmatpush1.msra.mxu0 0.0
        %1400 = vmatprep.subr.mxu0 0.0
        %1401 = vmatpush1.msra.mxu0 0.0
        %1402 = vmatprep.subr.mxu0 0.0
        %1403 = vmatpush1.msra.mxu0 0.0
        %1404 = vmatprep.subr.mxu0 0.0
        %1405 = vmatpush1.msra.mxu0 0.0
        %1406 = vmatprep.subr.mxu0 0.0
        %1407 = vmatpush1.msra.mxu0 0.0
        %1408 = vmatprep.subr.mxu0 0.0
        %1409 = vmatpush1.msra.mxu0 0.0
        %1410 = vmatprep.subr.mxu0 0.0
        %1411 = vmatpush1.msra.mxu0 0.0
        %1412 = vmatprep.subr.mxu0 0.0
        %1413 = vmatpush1.msra.mxu0 0.0
        %1414 = vmatprep.subr.mxu0 0.0
        %1415 = vmatpush1.msra.mxu0 0.0
        %1416 = vmatprep.subr.mxu0 0.0
        %1417 = vmatpush1.msra.mxu0 0.0
        %1418 = vmatprep.subr.mxu0 0.0
        %1419 = vmatpush1.msra.mxu0 0.0
        %1420 = vmatprep.subr.mxu0 0.0
        %1421 = vmatpush1.msra.mxu0 0.0
        %1422 = vmatprep.mubr.f32.mxu0 0.0
        %v1423 = vand.u32 %v456, 4294901760
        %1424 = vmatmul.mubr.f32.gmra.mrb[0].mxu0 %v1423
        %v1425 = vpop.f32.mrb[0].mxu0
        %v1426 = vadd.f32 %v1308, %v1425
        %v1427 = vpop.f32.mrb[0].mxu0
        %v1428 = vadd.f32 %v1310, %v1427
        %1429 = vmatprep.mubr.f32.mxu0 0.0
        %v1430 = vand.u32 %v457, 4294901760
        %1431 = vmatmul.mubr.f32.gmra.mrb[0].mxu0 %v1430
        %v1432 = vpop.f32.mrb[0].mxu0
        %v1433 = vadd.f32 %v1315, %v1432
        %v1434 = vpop.f32.mrb[0].mxu0
        %v1435 = vadd.f32 %v1317, %v1434
        %1436 = vmatprep.mubr.f32.mxu0 0.0
        %v1437 = vand.u32 %v458, 4294901760
        %1438 = vmatmul.mubr.f32.gmra.mrb[0].mxu0 %v1437
        %v1439 = vpop.f32.mrb[0].mxu0
        %v1440 = vadd.f32 %v1322, %v1439
        %v1441 = vpop.f32.mrb[0].mxu0
        %v1442 = vadd.f32 %v1324, %v1441
        %1443 = vdwg.mxu0
        %1444 = vst [vmem:[%s455] sm:$0xff] %v1428
        %1445 = vst [vmem:[%s455 + $0x8] sm:$0xff] %v1435
        %1446 = vst [vmem:[%s455 + $0x10] sm:$0xff] %v1442
        %v1447 = vmul.f32 %v1426, %v1426
        %v1448 = vmul.f32 %v1433, %v1433
        %v1449 = vmul.f32 %v1440, %v1440
        %v1450 = vadd.f32 %v1447, %v1448
        %v1451 = vadd.f32 %v1450, %v1449
        %v1452 = vrsqrt.pop %v1451
        %v1453 = vmul.f32 %v1451, %v1452
        %vm1454 = vcmp.eq.f32.partialorder %v1451, inf
        %v1455 = vsel %vm1454, %v1451, %v1453
        %vm1456 = vcmp.eq.f32.partialorder %v1451, 0.0
        %v1457 = vand.u32 %v1451, 2147483648
        %v1458 = vsel %vm1456, %v1457, %v1455
        %v1459 = vld [vmem:[%s386] sm:$0xff]
        %v1460 = vld [vmem:[#allocation8] sm:$0xff]
        %v1461 = vld [vmem:[#allocation8 + $0x8] sm:$0xff]
        %v1462 = vld [vmem:[#allocation8 + $0x10] sm:$0xff]
        %v1463 = vld [vmem:[#allocation8 + $0x18] sm:$0xff]
        %v1464 = vld [vmem:[#allocation8 + $0x20] sm:$0xff]
        %v1465 = vld [vmem:[#allocation8 + $0x28] sm:$0xff]
        %v1466 = vld [vmem:[#allocation8 + $0x30] sm:$0xff]
        %v1467 = vld [vmem:[#allocation8 + $0x38] sm:$0xff]
        %v1468 = vld [vmem:[#allocation8 + $0x40] sm:$0xff]
        %v1469 = vld [vmem:[#allocation8 + $0x48] sm:$0xff]
        %v1470 = vld [vmem:[#allocation8 + $0x50] sm:$0xff]
        %v1471 = vld [vmem:[#allocation8 + $0x58] sm:$0xff]
        %v1472 = vld [vmem:[#allocation8 + $0x60] sm:$0xff]
        %v1473 = vld [vmem:[#allocation8 + $0x68] sm:$0xff]
        %v1474 = vld [vmem:[#allocation8 + $0x70] sm:$0xff]
        %v1475 = vld [vmem:[#allocation8 + $0x78] sm:$0xff]
        %v1476 = vld [vmem:[#allocation10] sm:$0xff]
        %v1477 = vld [vmem:[#allocation10 + $0x8] sm:$0xff]
        %v1478 = vld [vmem:[#allocation10 + $0x10] sm:$0xff]
        %v1479 = vld [vmem:[#allocation10 + $0x18] sm:$0xff]
        %v1480 = vld [vmem:[#allocation10 + $0x20] sm:$0xff]
        %v1481 = vld [vmem:[#allocation10 + $0x28] sm:$0xff]
        %v1482 = vld [vmem:[#allocation10 + $0x30] sm:$0xff]
        %v1483 = vld [vmem:[#allocation10 + $0x38] sm:$0xff]
        %v1484 = vld [vmem:[#allocation10 + $0x40] sm:$0xff]
        %v1485 = vld [vmem:[#allocation10 + $0x48] sm:$0xff]
        %v1486 = vld [vmem:[#allocation10 + $0x50] sm:$0xff]
        %v1487 = vld [vmem:[#allocation10 + $0x58] sm:$0xff]
        %v1488 = vld [vmem:[#allocation10 + $0x60] sm:$0xff]
        %v1489 = vld [vmem:[#allocation10 + $0x68] sm:$0xff]
        %v1490 = vld [vmem:[#allocation10 + $0x70] sm:$0xff]
        %v1491 = vld [vmem:[#allocation10 + $0x78] sm:$0xff]
        %1492 = vmatprep.subr.mxu0 0.0
        %v1493 = vand.u32 %v1476, 4294901760
        %1494 = vmatpush1.msra.mxu0 %v1493
        %1495 = vmatprep.subr.mxu0 0.0
        %v1496 = vand.u32 %v1477, 4294901760
        %1497 = vmatpush1.msra.mxu0 %v1496
        %1498 = vmatprep.subr.mxu0 0.0
        %v1499 = vand.u32 %v1478, 4294901760
        %1500 = vmatpush1.msra.mxu0 %v1499
        %1501 = vmatprep.subr.mxu0 0.0
        %v1502 = vand.u32 %v1479, 4294901760
        %1503 = vmatpush1.msra.mxu0 %v1502
        %1504 = vmatprep.subr.mxu0 0.0
        %v1505 = vand.u32 %v1480, 4294901760
        %1506 = vmatpush1.msra.mxu0 %v1505
        %1507 = vmatprep.subr.mxu0 0.0
        %v1508 = vand.u32 %v1481, 4294901760
        %1509 = vmatpush1.msra.mxu0 %v1508
        %1510 = vmatprep.subr.mxu0 0.0
        %v1511 = vand.u32 %v1482, 4294901760
        %1512 = vmatpush1.msra.mxu0 %v1511
        %1513 = vmatprep.subr.mxu0 0.0
        %v1514 = vand.u32 %v1483, 4294901760
        %1515 = vmatpush1.msra.mxu0 %v1514
        %1516 = vmatprep.subr.mxu0 0.0
        %v1517 = vand.u32 %v1484, 4294901760
        %1518 = vmatpush1.msra.mxu0 %v1517
        %1519 = vmatprep.subr.mxu0 0.0
        %v1520 = vand.u32 %v1485, 4294901760
        %1521 = vmatpush1.msra.mxu0 %v1520
        %1522 = vmatprep.subr.mxu0 0.0
        %v1523 = vand.u32 %v1486, 4294901760
        %1524 = vmatpush1.msra.mxu0 %v1523
        %1525 = vmatprep.subr.mxu0 0.0
        %v1526 = vand.u32 %v1487, 4294901760
        %1527 = vmatpush1.msra.mxu0 %v1526
        %1528 = vmatprep.subr.mxu0 0.0
        %v1529 = vand.u32 %v1488, 4294901760
        %1530 = vmatpush1.msra.mxu0 %v1529
        %1531 = vmatprep.subr.mxu0 0.0
        %v1532 = vand.u32 %v1489, 4294901760
        %1533 = vmatpush1.msra.mxu0 %v1532
        %1534 = vmatprep.subr.mxu0 0.0
        %v1535 = vand.u32 %v1490, 4294901760
        %1536 = vmatpush1.msra.mxu0 %v1535
        %1537 = vmatprep.subr.mxu0 0.0
        %v1538 = vand.u32 %v1491, 4294901760
        %1539 = vmatpush1.msra.mxu0 %v1538
        %1540 = vmatprep.subr.mxu0 0.0
        %1541 = vmatpush1.msra.mxu0 0.0
        %1542 = vmatprep.subr.mxu0 0.0
        %1543 = vmatpush1.msra.mxu0 0.0
        %1544 = vmatprep.subr.mxu0 0.0
        %1545 = vmatpush1.msra.mxu0 0.0
        %1546 = vmatprep.subr.mxu0 0.0
        %1547 = vmatpush1.msra.mxu0 0.0
        %1548 = vmatprep.subr.mxu0 0.0
        %1549 = vmatpush1.msra.mxu0 0.0
        %1550 = vmatprep.subr.mxu0 0.0
        %1551 = vmatpush1.msra.mxu0 0.0
        %1552 = vmatprep.subr.mxu0 0.0
        %1553 = vmatpush1.msra.mxu0 0.0
        %1554 = vmatprep.subr.mxu0 0.0
        %1555 = vmatpush1.msra.mxu0 0.0
        %1556 = vmatprep.subr.mxu0 0.0
        %1557 = vmatpush1.msra.mxu0 0.0
        %1558 = vmatprep.subr.mxu0 0.0
        %1559 = vmatpush1.msra.mxu0 0.0
        %1560 = vmatprep.subr.mxu0 0.0
        %1561 = vmatpush1.msra.mxu0 0.0
        %1562 = vmatprep.subr.mxu0 0.0
        %1563 = vmatpush1.msra.mxu0 0.0
        %1564 = vmatprep.subr.mxu0 0.0
        %1565 = vmatpush1.msra.mxu0 0.0
        %1566 = vmatprep.subr.mxu0 0.0
        %1567 = vmatpush1.msra.mxu0 0.0
        %1568 = vmatprep.subr.mxu0 0.0
        %1569 = vmatpush1.msra.mxu0 0.0
        %1570 = vmatprep.subr.mxu0 0.0
        %1571 = vmatpush1.msra.mxu0 0.0
        %1572 = vmatprep.mubr.f32.mxu0 0.0
        %v1573 = vand.u32 %v1458, 4294901760
        %v1574 = vsub.f32 %v1458, %v1573
        %v1575 = vand.u32 %v1574, 4294901760
        %v1576 = vsub.f32 %v1574, %v1575
        %v1577 = vand.u32 %v1576, 4294901760
        %1578 = vmatmul.mubr.f32.gmra.mrb[0].mxu0 %v1577
        %v1579 = vpop.f32.mrb[0].mxu0
        %v1580 = vadd.f32 0.0, %v1579
        %v1581 = vpop.f32.mrb[0].mxu0
        %1582 = vdwg.mxu0
        %1583 = vmatprep.subr.mxu0 0.0
        %v1584 = vand.u32 %v1476, 4294901760
        %v1585 = vsub.f32 %v1476, %v1584
        %v1586 = vand.u32 %v1585, 4294901760
        %v1587 = vsub.f32 %v1585, %v1586
        %v1588 = vand.u32 %v1587, 4294901760
        %1589 = vmatpush1.msra.mxu0 %v1588
        %1590 = vmatprep.subr.mxu0 0.0
        %v1591 = vand.u32 %v1477, 4294901760
        %v1592 = vsub.f32 %v1477, %v1591
        %v1593 = vand.u32 %v1592, 4294901760
        %v1594 = vsub.f32 %v1592, %v1593
        %v1595 = vand.u32 %v1594, 4294901760
        %1596 = vmatpush1.msra.mxu0 %v1595
        %1597 = vmatprep.subr.mxu0 0.0
        %v1598 = vand.u32 %v1478, 4294901760
        %v1599 = vsub.f32 %v1478, %v1598
        %v1600 = vand.u32 %v1599, 4294901760
        %v1601 = vsub.f32 %v1599, %v1600
        %v1602 = vand.u32 %v1601, 4294901760
        %1603 = vmatpush1.msra.mxu0 %v1602
        %1604 = vmatprep.subr.mxu0 0.0
        %v1605 = vand.u32 %v1479, 4294901760
        %v1606 = vsub.f32 %v1479, %v1605
        %v1607 = vand.u32 %v1606, 4294901760
        %v1608 = vsub.f32 %v1606, %v1607
        %v1609 = vand.u32 %v1608, 4294901760
        %1610 = vmatpush1.msra.mxu0 %v1609
        %1611 = vmatprep.subr.mxu0 0.0
        %v1612 = vand.u32 %v1480, 4294901760
        %v1613 = vsub.f32 %v1480, %v1612
        %v1614 = vand.u32 %v1613, 4294901760
        %v1615 = vsub.f32 %v1613, %v1614
        %v1616 = vand.u32 %v1615, 4294901760
        %1617 = vmatpush1.msra.mxu0 %v1616
        %1618 = vmatprep.subr.mxu0 0.0
        %v1619 = vand.u32 %v1481, 4294901760
        %v1620 = vsub.f32 %v1481, %v1619
        %v1621 = vand.u32 %v1620, 4294901760
        %v1622 = vsub.f32 %v1620, %v1621
        %v1623 = vand.u32 %v1622, 4294901760
        %1624 = vmatpush1.msra.mxu0 %v1623
        %1625 = vmatprep.subr.mxu0 0.0
        %v1626 = vand.u32 %v1482, 4294901760
        %v1627 = vsub.f32 %v1482, %v1626
        %v1628 = vand.u32 %v1627, 4294901760
        %v1629 = vsub.f32 %v1627, %v1628
        %v1630 = vand.u32 %v1629, 4294901760
        %1631 = vmatpush1.msra.mxu0 %v1630
        %1632 = vmatprep.subr.mxu0 0.0
        %v1633 = vand.u32 %v1483, 4294901760
        %v1634 = vsub.f32 %v1483, %v1633
        %v1635 = vand.u32 %v1634, 4294901760
        %v1636 = vsub.f32 %v1634, %v1635
        %v1637 = vand.u32 %v1636, 4294901760
        %1638 = vmatpush1.msra.mxu0 %v1637
        %1639 = vmatprep.subr.mxu0 0.0
        %v1640 = vand.u32 %v1484, 4294901760
        %v1641 = vsub.f32 %v1484, %v1640
        %v1642 = vand.u32 %v1641, 4294901760
        %v1643 = vsub.f32 %v1641, %v1642
        %v1644 = vand.u32 %v1643, 4294901760
        %1645 = vmatpush1.msra.mxu0 %v1644
        %1646 = vmatprep.subr.mxu0 0.0
        %v1647 = vand.u32 %v1485, 4294901760
        %v1648 = vsub.f32 %v1485, %v1647
        %v1649 = vand.u32 %v1648, 4294901760
        %v1650 = vsub.f32 %v1648, %v1649
        %v1651 = vand.u32 %v1650, 4294901760
        %1652 = vmatpush1.msra.mxu0 %v1651
        %1653 = vmatprep.subr.mxu0 0.0
        %v1654 = vand.u32 %v1486, 4294901760
        %v1655 = vsub.f32 %v1486, %v1654
        %v1656 = vand.u32 %v1655, 4294901760
        %v1657 = vsub.f32 %v1655, %v1656
        %v1658 = vand.u32 %v1657, 4294901760
        %1659 = vmatpush1.msra.mxu0 %v1658
        %1660 = vmatprep.subr.mxu0 0.0
        %v1661 = vand.u32 %v1487, 4294901760
        %v1662 = vsub.f32 %v1487, %v1661
        %v1663 = vand.u32 %v1662, 4294901760
        %v1664 = vsub.f32 %v1662, %v1663
        %v1665 = vand.u32 %v1664, 4294901760
        %1666 = vmatpush1.msra.mxu0 %v1665
        %1667 = vmatprep.subr.mxu0 0.0
        %v1668 = vand.u32 %v1488, 4294901760
        %v1669 = vsub.f32 %v1488, %v1668
        %v1670 = vand.u32 %v1669, 4294901760
        %v1671 = vsub.f32 %v1669, %v1670
        %v1672 = vand.u32 %v1671, 4294901760
        %1673 = vmatpush1.msra.mxu0 %v1672
        %1674 = vmatprep.subr.mxu0 0.0
        %v1675 = vand.u32 %v1489, 4294901760
        %v1676 = vsub.f32 %v1489, %v1675
        %v1677 = vand.u32 %v1676, 4294901760
        %v1678 = vsub.f32 %v1676, %v1677
        %v1679 = vand.u32 %v1678, 4294901760
        %1680 = vmatpush1.msra.mxu0 %v1679
        %1681 = vmatprep.subr.mxu0 0.0
        %v1682 = vand.u32 %v1490, 4294901760
        %v1683 = vsub.f32 %v1490, %v1682
        %v1684 = vand.u32 %v1683, 4294901760
        %v1685 = vsub.f32 %v1683, %v1684
        %v1686 = vand.u32 %v1685, 4294901760
        %1687 = vmatpush1.msra.mxu0 %v1686
        %1688 = vmatprep.subr.mxu0 0.0
        %v1689 = vand.u32 %v1491, 4294901760
        %v1690 = vsub.f32 %v1491, %v1689
        %v1691 = vand.u32 %v1690, 4294901760
        %v1692 = vsub.f32 %v1690, %v1691
        %v1693 = vand.u32 %v1692, 4294901760
        %1694 = vmatpush1.msra.mxu0 %v1693
        %1695 = vmatprep.subr.mxu0 0.0
        %1696 = vmatpush1.msra.mxu0 0.0
        %1697 = vmatprep.subr.mxu0 0.0
        %1698 = vmatpush1.msra.mxu0 0.0
        %1699 = vmatprep.subr.mxu0 0.0
        %1700 = vmatpush1.msra.mxu0 0.0
        %1701 = vmatprep.subr.mxu0 0.0
        %1702 = vmatpush1.msra.mxu0 0.0
        %1703 = vmatprep.subr.mxu0 0.0
        %1704 = vmatpush1.msra.mxu0 0.0
        %1705 = vmatprep.subr.mxu0 0.0
        %1706 = vmatpush1.msra.mxu0 0.0
        %1707 = vmatprep.subr.mxu0 0.0
        %1708 = vmatpush1.msra.mxu0 0.0
        %1709 = vmatprep.subr.mxu0 0.0
        %1710 = vmatpush1.msra.mxu0 0.0
        %1711 = vmatprep.subr.mxu0 0.0
        %1712 = vmatpush1.msra.mxu0 0.0
        %1713 = vmatprep.subr.mxu0 0.0
        %1714 = vmatpush1.msra.mxu0 0.0
        %1715 = vmatprep.subr.mxu0 0.0
        %1716 = vmatpush1.msra.mxu0 0.0
        %1717 = vmatprep.subr.mxu0 0.0
        %1718 = vmatpush1.msra.mxu0 0.0
        %1719 = vmatprep.subr.mxu0 0.0
        %1720 = vmatpush1.msra.mxu0 0.0
        %1721 = vmatprep.subr.mxu0 0.0
        %1722 = vmatpush1.msra.mxu0 0.0
        %1723 = vmatprep.subr.mxu0 0.0
        %1724 = vmatpush1.msra.mxu0 0.0
        %1725 = vmatprep.subr.mxu0 0.0
        %1726 = vmatpush1.msra.mxu0 0.0
        %1727 = vmatprep.mubr.f32.mxu0 0.0
        %v1728 = vand.u32 %v1458, 4294901760
        %1729 = vmatmul.mubr.f32.gmra.mrb[0].mxu0 %v1728
        %v1730 = vpop.f32.mrb[0].mxu0
        %v1731 = vadd.f32 %v1580, %v1730
        %v1732 = vpop.f32.mrb[0].mxu0
        %1733 = vdwg.mxu0
        %1734 = vmatprep.subr.mxu0 0.0
        %v1735 = vand.u32 %v1476, 4294901760
        %v1736 = vsub.f32 %v1476, %v1735
        %1737 = vmatpush1.msra.mxu0 %v1736
        %1738 = vmatprep.subr.mxu0 0.0
        %v1739 = vand.u32 %v1477, 4294901760
        %v1740 = vsub.f32 %v1477, %v1739
        %1741 = vmatpush1.msra.mxu0 %v1740
        %1742 = vmatprep.subr.mxu0 0.0
        %v1743 = vand.u32 %v1478, 4294901760
        %v1744 = vsub.f32 %v1478, %v1743
        %1745 = vmatpush1.msra.mxu0 %v1744
        %1746 = vmatprep.subr.mxu0 0.0
        %v1747 = vand.u32 %v1479, 4294901760
        %v1748 = vsub.f32 %v1479, %v1747
        %1749 = vmatpush1.msra.mxu0 %v1748
        %1750 = vmatprep.subr.mxu0 0.0
        %v1751 = vand.u32 %v1480, 4294901760
        %v1752 = vsub.f32 %v1480, %v1751
        %1753 = vmatpush1.msra.mxu0 %v1752
        %1754 = vmatprep.subr.mxu0 0.0
        %v1755 = vand.u32 %v1481, 4294901760
        %v1756 = vsub.f32 %v1481, %v1755
        %1757 = vmatpush1.msra.mxu0 %v1756
        %1758 = vmatprep.subr.mxu0 0.0
        %v1759 = vand.u32 %v1482, 4294901760
        %v1760 = vsub.f32 %v1482, %v1759
        %1761 = vmatpush1.msra.mxu0 %v1760
        %1762 = vmatprep.subr.mxu0 0.0
        %v1763 = vand.u32 %v1483, 4294901760
        %v1764 = vsub.f32 %v1483, %v1763
        %1765 = vmatpush1.msra.mxu0 %v1764
        %1766 = vmatprep.subr.mxu0 0.0
        %v1767 = vand.u32 %v1484, 4294901760
        %v1768 = vsub.f32 %v1484, %v1767
        %1769 = vmatpush1.msra.mxu0 %v1768
        %1770 = vmatprep.subr.mxu0 0.0
        %v1771 = vand.u32 %v1485, 4294901760
        %v1772 = vsub.f32 %v1485, %v1771
        %1773 = vmatpush1.msra.mxu0 %v1772
        %1774 = vmatprep.subr.mxu0 0.0
        %v1775 = vand.u32 %v1486, 4294901760
        %v1776 = vsub.f32 %v1486, %v1775
        %1777 = vmatpush1.msra.mxu0 %v1776
        %1778 = vmatprep.subr.mxu0 0.0
        %v1779 = vand.u32 %v1487, 4294901760
        %v1780 = vsub.f32 %v1487, %v1779
        %1781 = vmatpush1.msra.mxu0 %v1780
        %1782 = vmatprep.subr.mxu0 0.0
        %v1783 = vand.u32 %v1488, 4294901760
        %v1784 = vsub.f32 %v1488, %v1783
        %1785 = vmatpush1.msra.mxu0 %v1784
        %1786 = vmatprep.subr.mxu0 0.0
        %v1787 = vand.u32 %v1489, 4294901760
        %v1788 = vsub.f32 %v1489, %v1787
        %1789 = vmatpush1.msra.mxu0 %v1788
        %1790 = vmatprep.subr.mxu0 0.0
        %v1791 = vand.u32 %v1490, 4294901760
        %v1792 = vsub.f32 %v1490, %v1791
        %1793 = vmatpush1.msra.mxu0 %v1792
        %1794 = vmatprep.subr.mxu0 0.0
        %v1795 = vand.u32 %v1491, 4294901760
        %v1796 = vsub.f32 %v1491, %v1795
        %1797 = vmatpush1.msra.mxu0 %v1796
        %1798 = vmatprep.subr.mxu0 0.0
        %1799 = vmatpush1.msra.mxu0 0.0
        %1800 = vmatprep.subr.mxu0 0.0
        %1801 = vmatpush1.msra.mxu0 0.0
        %1802 = vmatprep.subr.mxu0 0.0
        %1803 = vmatpush1.msra.mxu0 0.0
        %1804 = vmatprep.subr.mxu0 0.0
        %1805 = vmatpush1.msra.mxu0 0.0
        %1806 = vmatprep.subr.mxu0 0.0
        %1807 = vmatpush1.msra.mxu0 0.0
        %1808 = vmatprep.subr.mxu0 0.0
        %1809 = vmatpush1.msra.mxu0 0.0
        %1810 = vmatprep.subr.mxu0 0.0
        %1811 = vmatpush1.msra.mxu0 0.0
        %1812 = vmatprep.subr.mxu0 0.0
        %1813 = vmatpush1.msra.mxu0 0.0
        %1814 = vmatprep.subr.mxu0 0.0
        %1815 = vmatpush1.msra.mxu0 0.0
        %1816 = vmatprep.subr.mxu0 0.0
        %1817 = vmatpush1.msra.mxu0 0.0
        %1818 = vmatprep.subr.mxu0 0.0
        %1819 = vmatpush1.msra.mxu0 0.0
        %1820 = vmatprep.subr.mxu0 0.0
        %1821 = vmatpush1.msra.mxu0 0.0
        %1822 = vmatprep.subr.mxu0 0.0
        %1823 = vmatpush1.msra.mxu0 0.0
        %1824 = vmatprep.subr.mxu0 0.0
        %1825 = vmatpush1.msra.mxu0 0.0
        %1826 = vmatprep.subr.mxu0 0.0
        %1827 = vmatpush1.msra.mxu0 0.0
        %1828 = vmatprep.subr.mxu0 0.0
        %1829 = vmatpush1.msra.mxu0 0.0
        %1830 = vmatprep.mubr.f32.mxu0 0.0
        %v1831 = vand.u32 %v1458, 4294901760
        %v1832 = vsub.f32 %v1458, %v1831
        %1833 = vmatmul.mubr.f32.gmra.mrb[0].mxu0 %v1832
        %v1834 = vpop.f32.mrb[0].mxu0
        %v1835 = vadd.f32 %v1731, %v1834
        %v1836 = vpop.f32.mrb[0].mxu0
        %1837 = vdwg.mxu0
        %1838 = vmatprep.subr.mxu0 0.0
        %v1839 = vand.u32 %v1476, 4294901760
        %1840 = vmatpush1.msra.mxu0 %v1839
        %1841 = vmatprep.subr.mxu0 0.0
        %v1842 = vand.u32 %v1477, 4294901760
        %1843 = vmatpush1.msra.mxu0 %v1842
        %1844 = vmatprep.subr.mxu0 0.0
        %v1845 = vand.u32 %v1478, 4294901760
        %1846 = vmatpush1.msra.mxu0 %v1845
        %1847 = vmatprep.subr.mxu0 0.0
        %v1848 = vand.u32 %v1479, 4294901760
        %1849 = vmatpush1.msra.mxu0 %v1848
        %1850 = vmatprep.subr.mxu0 0.0
        %v1851 = vand.u32 %v1480, 4294901760
        %1852 = vmatpush1.msra.mxu0 %v1851
        %1853 = vmatprep.subr.mxu0 0.0
        %v1854 = vand.u32 %v1481, 4294901760
        %1855 = vmatpush1.msra.mxu0 %v1854
        %1856 = vmatprep.subr.mxu0 0.0
        %v1857 = vand.u32 %v1482, 4294901760
        %1858 = vmatpush1.msra.mxu0 %v1857
        %1859 = vmatprep.subr.mxu0 0.0
        %v1860 = vand.u32 %v1483, 4294901760
        %1861 = vmatpush1.msra.mxu0 %v1860
        %1862 = vmatprep.subr.mxu0 0.0
        %v1863 = vand.u32 %v1484, 4294901760
        %1864 = vmatpush1.msra.mxu0 %v1863
        %1865 = vmatprep.subr.mxu0 0.0
        %v1866 = vand.u32 %v1485, 4294901760
        %1867 = vmatpush1.msra.mxu0 %v1866
        %1868 = vmatprep.subr.mxu0 0.0
        %v1869 = vand.u32 %v1486, 4294901760
        %1870 = vmatpush1.msra.mxu0 %v1869
        %1871 = vmatprep.subr.mxu0 0.0
        %v1872 = vand.u32 %v1487, 4294901760
        %1873 = vmatpush1.msra.mxu0 %v1872
        %1874 = vmatprep.subr.mxu0 0.0
        %v1875 = vand.u32 %v1488, 4294901760
        %1876 = vmatpush1.msra.mxu0 %v1875
        %1877 = vmatprep.subr.mxu0 0.0
        %v1878 = vand.u32 %v1489, 4294901760
        %1879 = vmatpush1.msra.mxu0 %v1878
        %1880 = vmatprep.subr.mxu0 0.0
        %v1881 = vand.u32 %v1490, 4294901760
        %1882 = vmatpush1.msra.mxu0 %v1881
        %1883 = vmatprep.subr.mxu0 0.0
        %v1884 = vand.u32 %v1491, 4294901760
        %1885 = vmatpush1.msra.mxu0 %v1884
        %1886 = vmatprep.subr.mxu0 0.0
        %1887 = vmatpush1.msra.mxu0 0.0
        %1888 = vmatprep.subr.mxu0 0.0
        %1889 = vmatpush1.msra.mxu0 0.0
        %1890 = vmatprep.subr.mxu0 0.0
        %1891 = vmatpush1.msra.mxu0 0.0
        %1892 = vmatprep.subr.mxu0 0.0
        %1893 = vmatpush1.msra.mxu0 0.0
        %1894 = vmatprep.subr.mxu0 0.0
        %1895 = vmatpush1.msra.mxu0 0.0
        %1896 = vmatprep.subr.mxu0 0.0
        %1897 = vmatpush1.msra.mxu0 0.0
        %1898 = vmatprep.subr.mxu0 0.0
        %1899 = vmatpush1.msra.mxu0 0.0
        %1900 = vmatprep.subr.mxu0 0.0
        %1901 = vmatpush1.msra.mxu0 0.0
        %1902 = vmatprep.subr.mxu0 0.0
        %1903 = vmatpush1.msra.mxu0 0.0
        %1904 = vmatprep.subr.mxu0 0.0
        %1905 = vmatpush1.msra.mxu0 0.0
        %1906 = vmatprep.subr.mxu0 0.0
        %1907 = vmatpush1.msra.mxu0 0.0
        %1908 = vmatprep.subr.mxu0 0.0
        %1909 = vmatpush1.msra.mxu0 0.0
        %1910 = vmatprep.subr.mxu0 0.0
        %1911 = vmatpush1.msra.mxu0 0.0
        %1912 = vmatprep.subr.mxu0 0.0
        %1913 = vmatpush1.msra.mxu0 0.0
        %1914 = vmatprep.subr.mxu0 0.0
        %1915 = vmatpush1.msra.mxu0 0.0
        %1916 = vmatprep.subr.mxu0 0.0
        %1917 = vmatpush1.msra.mxu0 0.0
        %1918 = vmatprep.mubr.f32.mxu0 0.0
        %v1919 = vand.u32 %v1458, 4294901760
        %v1920 = vsub.f32 %v1458, %v1919
        %v1921 = vand.u32 %v1920, 4294901760
        %1922 = vmatmul.mubr.f32.gmra.mrb[0].mxu0 %v1921
        %v1923 = vpop.f32.mrb[0].mxu0
        %v1924 = vadd.f32 %v1835, %v1923
        %v1925 = vpop.f32.mrb[0].mxu0
        %1926 = vdwg.mxu0
        %1927 = vmatprep.subr.mxu0 0.0
        %v1928 = vand.u32 %v1476, 4294901760
        %v1929 = vsub.f32 %v1476, %v1928
        %v1930 = vand.u32 %v1929, 4294901760
        %1931 = vmatpush1.msra.mxu0 %v1930
        %1932 = vmatprep.subr.mxu0 0.0
        %v1933 = vand.u32 %v1477, 4294901760
        %v1934 = vsub.f32 %v1477, %v1933
        %v1935 = vand.u32 %v1934, 4294901760
        %1936 = vmatpush1.msra.mxu0 %v1935
        %1937 = vmatprep.subr.mxu0 0.0
        %v1938 = vand.u32 %v1478, 4294901760
        %v1939 = vsub.f32 %v1478, %v1938
        %v1940 = vand.u32 %v1939, 4294901760
        %1941 = vmatpush1.msra.mxu0 %v1940
        %1942 = vmatprep.subr.mxu0 0.0
        %v1943 = vand.u32 %v1479, 4294901760
        %v1944 = vsub.f32 %v1479, %v1943
        %v1945 = vand.u32 %v1944, 4294901760
        %1946 = vmatpush1.msra.mxu0 %v1945
        %1947 = vmatprep.subr.mxu0 0.0
        %v1948 = vand.u32 %v1480, 4294901760
        %v1949 = vsub.f32 %v1480, %v1948
        %v1950 = vand.u32 %v1949, 4294901760
        %1951 = vmatpush1.msra.mxu0 %v1950
        %1952 = vmatprep.subr.mxu0 0.0
        %v1953 = vand.u32 %v1481, 4294901760
        %v1954 = vsub.f32 %v1481, %v1953
        %v1955 = vand.u32 %v1954, 4294901760
        %1956 = vmatpush1.msra.mxu0 %v1955
        %1957 = vmatprep.subr.mxu0 0.0
        %v1958 = vand.u32 %v1482, 4294901760
        %v1959 = vsub.f32 %v1482, %v1958
        %v1960 = vand.u32 %v1959, 4294901760
        %1961 = vmatpush1.msra.mxu0 %v1960
        %1962 = vmatprep.subr.mxu0 0.0
        %v1963 = vand.u32 %v1483, 4294901760
        %v1964 = vsub.f32 %v1483, %v1963
        %v1965 = vand.u32 %v1964, 4294901760
        %1966 = vmatpush1.msra.mxu0 %v1965
        %1967 = vmatprep.subr.mxu0 0.0
        %v1968 = vand.u32 %v1484, 4294901760
        %v1969 = vsub.f32 %v1484, %v1968
        %v1970 = vand.u32 %v1969, 4294901760
        %1971 = vmatpush1.msra.mxu0 %v1970
        %1972 = vmatprep.subr.mxu0 0.0
        %v1973 = vand.u32 %v1485, 4294901760
        %v1974 = vsub.f32 %v1485, %v1973
        %v1975 = vand.u32 %v1974, 4294901760
        %1976 = vmatpush1.msra.mxu0 %v1975
        %1977 = vmatprep.subr.mxu0 0.0
        %v1978 = vand.u32 %v1486, 4294901760
        %v1979 = vsub.f32 %v1486, %v1978
        %v1980 = vand.u32 %v1979, 4294901760
        %1981 = vmatpush1.msra.mxu0 %v1980
        %1982 = vmatprep.subr.mxu0 0.0
        %v1983 = vand.u32 %v1487, 4294901760
        %v1984 = vsub.f32 %v1487, %v1983
        %v1985 = vand.u32 %v1984, 4294901760
        %1986 = vmatpush1.msra.mxu0 %v1985
        %1987 = vmatprep.subr.mxu0 0.0
        %v1988 = vand.u32 %v1488, 4294901760
        %v1989 = vsub.f32 %v1488, %v1988
        %v1990 = vand.u32 %v1989, 4294901760
        %1991 = vmatpush1.msra.mxu0 %v1990
        %1992 = vmatprep.subr.mxu0 0.0
        %v1993 = vand.u32 %v1489, 4294901760
        %v1994 = vsub.f32 %v1489, %v1993
        %v1995 = vand.u32 %v1994, 4294901760
        %1996 = vmatpush1.msra.mxu0 %v1995
        %1997 = vmatprep.subr.mxu0 0.0
        %v1998 = vand.u32 %v1490, 4294901760
        %v1999 = vsub.f32 %v1490, %v1998
        %v2000 = vand.u32 %v1999, 4294901760
        %2001 = vmatpush1.msra.mxu0 %v2000
        %2002 = vmatprep.subr.mxu0 0.0
        %v2003 = vand.u32 %v1491, 4294901760
        %v2004 = vsub.f32 %v1491, %v2003
        %v2005 = vand.u32 %v2004, 4294901760
        %2006 = vmatpush1.msra.mxu0 %v2005
        %2007 = vmatprep.subr.mxu0 0.0
        %2008 = vmatpush1.msra.mxu0 0.0
        %2009 = vmatprep.subr.mxu0 0.0
        %2010 = vmatpush1.msra.mxu0 0.0
        %2011 = vmatprep.subr.mxu0 0.0
        %2012 = vmatpush1.msra.mxu0 0.0
        %2013 = vmatprep.subr.mxu0 0.0
        %2014 = vmatpush1.msra.mxu0 0.0
        %2015 = vmatprep.subr.mxu0 0.0
        %2016 = vmatpush1.msra.mxu0 0.0
        %2017 = vmatprep.subr.mxu0 0.0
        %2018 = vmatpush1.msra.mxu0 0.0
        %2019 = vmatprep.subr.mxu0 0.0
        %2020 = vmatpush1.msra.mxu0 0.0
        %2021 = vmatprep.subr.mxu0 0.0
        %2022 = vmatpush1.msra.mxu0 0.0
        %2023 = vmatprep.subr.mxu0 0.0
        %2024 = vmatpush1.msra.mxu0 0.0
        %2025 = vmatprep.subr.mxu0 0.0
        %2026 = vmatpush1.msra.mxu0 0.0
        %2027 = vmatprep.subr.mxu0 0.0
        %2028 = vmatpush1.msra.mxu0 0.0
        %2029 = vmatprep.subr.mxu0 0.0
        %2030 = vmatpush1.msra.mxu0 0.0
        %2031 = vmatprep.subr.mxu0 0.0
        %2032 = vmatpush1.msra.mxu0 0.0
        %2033 = vmatprep.subr.mxu0 0.0
        %2034 = vmatpush1.msra.mxu0 0.0
        %2035 = vmatprep.subr.mxu0 0.0
        %2036 = vmatpush1.msra.mxu0 0.0
        %2037 = vmatprep.subr.mxu0 0.0
        %2038 = vmatpush1.msra.mxu0 0.0
        %2039 = vmatprep.mubr.f32.mxu0 0.0
        %v2040 = vand.u32 %v1458, 4294901760
        %2041 = vmatmul.mubr.f32.gmra.mrb[0].mxu0 %v2040
        %v2042 = vpop.f32.mrb[0].mxu0
        %v2043 = vadd.f32 %v1924, %v2042
        %v2044 = vpop.f32.mrb[0].mxu0
        %2045 = vdwg.mxu0
        %2046 = vmatprep.subr.mxu0 0.0
        %v2047 = vand.u32 %v1476, 4294901760
        %2048 = vmatpush1.msra.mxu0 %v2047
        %2049 = vmatprep.subr.mxu0 0.0
        %v2050 = vand.u32 %v1477, 4294901760
        %2051 = vmatpush1.msra.mxu0 %v2050
        %2052 = vmatprep.subr.mxu0 0.0
        %v2053 = vand.u32 %v1478, 4294901760
        %2054 = vmatpush1.msra.mxu0 %v2053
        %2055 = vmatprep.subr.mxu0 0.0
        %v2056 = vand.u32 %v1479, 4294901760
        %2057 = vmatpush1.msra.mxu0 %v2056
        %2058 = vmatprep.subr.mxu0 0.0
        %v2059 = vand.u32 %v1480, 4294901760
        %2060 = vmatpush1.msra.mxu0 %v2059
        %2061 = vmatprep.subr.mxu0 0.0
        %v2062 = vand.u32 %v1481, 4294901760
        %2063 = vmatpush1.msra.mxu0 %v2062
        %2064 = vmatprep.subr.mxu0 0.0
        %v2065 = vand.u32 %v1482, 4294901760
        %2066 = vmatpush1.msra.mxu0 %v2065
        %2067 = vmatprep.subr.mxu0 0.0
        %v2068 = vand.u32 %v1483, 4294901760
        %2069 = vmatpush1.msra.mxu0 %v2068
        %2070 = vmatprep.subr.mxu0 0.0
        %v2071 = vand.u32 %v1484, 4294901760
        %2072 = vmatpush1.msra.mxu0 %v2071
        %2073 = vmatprep.subr.mxu0 0.0
        %v2074 = vand.u32 %v1485, 4294901760
        %2075 = vmatpush1.msra.mxu0 %v2074
        %2076 = vmatprep.subr.mxu0 0.0
        %v2077 = vand.u32 %v1486, 4294901760
        %2078 = vmatpush1.msra.mxu0 %v2077
        %2079 = vmatprep.subr.mxu0 0.0
        %v2080 = vand.u32 %v1487, 4294901760
        %2081 = vmatpush1.msra.mxu0 %v2080
        %2082 = vmatprep.subr.mxu0 0.0
        %v2083 = vand.u32 %v1488, 4294901760
        %2084 = vmatpush1.msra.mxu0 %v2083
        %2085 = vmatprep.subr.mxu0 0.0
        %v2086 = vand.u32 %v1489, 4294901760
        %2087 = vmatpush1.msra.mxu0 %v2086
        %2088 = vmatprep.subr.mxu0 0.0
        %v2089 = vand.u32 %v1490, 4294901760
        %2090 = vmatpush1.msra.mxu0 %v2089
        %2091 = vmatprep.subr.mxu0 0.0
        %v2092 = vand.u32 %v1491, 4294901760
        %2093 = vmatpush1.msra.mxu0 %v2092
        %2094 = vmatprep.subr.mxu0 0.0
        %2095 = vmatpush1.msra.mxu0 0.0
        %2096 = vmatprep.subr.mxu0 0.0
        %2097 = vmatpush1.msra.mxu0 0.0
        %2098 = vmatprep.subr.mxu0 0.0
        %2099 = vmatpush1.msra.mxu0 0.0
        %2100 = vmatprep.subr.mxu0 0.0
        %2101 = vmatpush1.msra.mxu0 0.0
        %2102 = vmatprep.subr.mxu0 0.0
        %2103 = vmatpush1.msra.mxu0 0.0
        %2104 = vmatprep.subr.mxu0 0.0
        %2105 = vmatpush1.msra.mxu0 0.0
        %2106 = vmatprep.subr.mxu0 0.0
        %2107 = vmatpush1.msra.mxu0 0.0
        %2108 = vmatprep.subr.mxu0 0.0
        %2109 = vmatpush1.msra.mxu0 0.0
        %2110 = vmatprep.subr.mxu0 0.0
        %2111 = vmatpush1.msra.mxu0 0.0
        %2112 = vmatprep.subr.mxu0 0.0
        %2113 = vmatpush1.msra.mxu0 0.0
        %2114 = vmatprep.subr.mxu0 0.0
        %2115 = vmatpush1.msra.mxu0 0.0
        %2116 = vmatprep.subr.mxu0 0.0
        %2117 = vmatpush1.msra.mxu0 0.0
        %2118 = vmatprep.subr.mxu0 0.0
        %2119 = vmatpush1.msra.mxu0 0.0
        %2120 = vmatprep.subr.mxu0 0.0
        %2121 = vmatpush1.msra.mxu0 0.0
        %2122 = vmatprep.subr.mxu0 0.0
        %2123 = vmatpush1.msra.mxu0 0.0
        %2124 = vmatprep.subr.mxu0 0.0
        %2125 = vmatpush1.msra.mxu0 0.0
        %2126 = vmatprep.mubr.f32.mxu0 0.0
        %v2127 = vand.u32 %v1458, 4294901760
        %2128 = vmatmul.mubr.f32.gmra.mrb[0].mxu0 %v2127
        %v2129 = vpop.f32.mrb[0].mxu0
        %v2130 = vadd.f32 %v2043, %v2129
        %v2131 = vpop.f32.mrb[0].mxu0
        %2132 = vdwg.mxu0
        %2133 = vmatprep.subr.mxu0 0.0
        %v2134 = vand.u32 %v1460, 4294901760
        %2135 = vmatpush1.msra.mxu0 %v2134
        %2136 = vmatprep.subr.mxu0 0.0
        %v2137 = vand.u32 %v1461, 4294901760
        %2138 = vmatpush1.msra.mxu0 %v2137
        %2139 = vmatprep.subr.mxu0 0.0
        %v2140 = vand.u32 %v1462, 4294901760
        %2141 = vmatpush1.msra.mxu0 %v2140
        %2142 = vmatprep.subr.mxu0 0.0
        %v2143 = vand.u32 %v1463, 4294901760
        %2144 = vmatpush1.msra.mxu0 %v2143
        %2145 = vmatprep.subr.mxu0 0.0
        %v2146 = vand.u32 %v1464, 4294901760
        %2147 = vmatpush1.msra.mxu0 %v2146
        %2148 = vmatprep.subr.mxu0 0.0
        %v2149 = vand.u32 %v1465, 4294901760
        %2150 = vmatpush1.msra.mxu0 %v2149
        %2151 = vmatprep.subr.mxu0 0.0
        %v2152 = vand.u32 %v1466, 4294901760
        %2153 = vmatpush1.msra.mxu0 %v2152
        %2154 = vmatprep.subr.mxu0 0.0
        %v2155 = vand.u32 %v1467, 4294901760
        %2156 = vmatpush1.msra.mxu0 %v2155
        %2157 = vmatprep.subr.mxu0 0.0
        %v2158 = vand.u32 %v1468, 4294901760
        %2159 = vmatpush1.msra.mxu0 %v2158
        %2160 = vmatprep.subr.mxu0 0.0
        %v2161 = vand.u32 %v1469, 4294901760
        %2162 = vmatpush1.msra.mxu0 %v2161
        %2163 = vmatprep.subr.mxu0 0.0
        %v2164 = vand.u32 %v1470, 4294901760
        %2165 = vmatpush1.msra.mxu0 %v2164
        %2166 = vmatprep.subr.mxu0 0.0
        %v2167 = vand.u32 %v1471, 4294901760
        %2168 = vmatpush1.msra.mxu0 %v2167
        %2169 = vmatprep.subr.mxu0 0.0
        %v2170 = vand.u32 %v1472, 4294901760
        %2171 = vmatpush1.msra.mxu0 %v2170
        %2172 = vmatprep.subr.mxu0 0.0
        %v2173 = vand.u32 %v1473, 4294901760
        %2174 = vmatpush1.msra.mxu0 %v2173
        %2175 = vmatprep.subr.mxu0 0.0
        %v2176 = vand.u32 %v1474, 4294901760
        %2177 = vmatpush1.msra.mxu0 %v2176
        %2178 = vmatprep.subr.mxu0 0.0
        %v2179 = vand.u32 %v1475, 4294901760
        %2180 = vmatpush1.msra.mxu0 %v2179
        %2181 = vmatprep.subr.mxu0 0.0
        %2182 = vmatpush1.msra.mxu0 0.0
        %2183 = vmatprep.subr.mxu0 0.0
        %2184 = vmatpush1.msra.mxu0 0.0
        %2185 = vmatprep.subr.mxu0 0.0
        %2186 = vmatpush1.msra.mxu0 0.0
        %2187 = vmatprep.subr.mxu0 0.0
        %2188 = vmatpush1.msra.mxu0 0.0
        %2189 = vmatprep.subr.mxu0 0.0
        %2190 = vmatpush1.msra.mxu0 0.0
        %2191 = vmatprep.subr.mxu0 0.0
        %2192 = vmatpush1.msra.mxu0 0.0
        %2193 = vmatprep.subr.mxu0 0.0
        %2194 = vmatpush1.msra.mxu0 0.0
        %2195 = vmatprep.subr.mxu0 0.0
        %2196 = vmatpush1.msra.mxu0 0.0
        %2197 = vmatprep.subr.mxu0 0.0
        %2198 = vmatpush1.msra.mxu0 0.0
        %2199 = vmatprep.subr.mxu0 0.0
        %2200 = vmatpush1.msra.mxu0 0.0
        %2201 = vmatprep.subr.mxu0 0.0
        %2202 = vmatpush1.msra.mxu0 0.0
        %2203 = vmatprep.subr.mxu0 0.0
        %2204 = vmatpush1.msra.mxu0 0.0
        %2205 = vmatprep.subr.mxu0 0.0
        %2206 = vmatpush1.msra.mxu0 0.0
        %2207 = vmatprep.subr.mxu0 0.0
        %2208 = vmatpush1.msra.mxu0 0.0
        %2209 = vmatprep.subr.mxu0 0.0
        %2210 = vmatpush1.msra.mxu0 0.0
        %2211 = vmatprep.subr.mxu0 0.0
        %2212 = vmatpush1.msra.mxu0 0.0
        %2213 = vmatprep.mubr.f32.mxu0 0.0
        %v2214 = vand.u32 %v1459, 4294901760
        %v2215 = vsub.f32 %v1459, %v2214
        %v2216 = vand.u32 %v2215, 4294901760
        %v2217 = vsub.f32 %v2215, %v2216
        %v2218 = vand.u32 %v2217, 4294901760
        %2219 = vmatmul.mubr.f32.gmra.mrb[0].mxu0 %v2218
        %v2220 = vpop.f32.mrb[0].mxu0
        %v2221 = vadd.f32 %v2130, %v2220
        %v2222 = vpop.f32.mrb[0].mxu0
        %2223 = vdwg.mxu0
        %2224 = vmatprep.subr.mxu0 0.0
        %v2225 = vand.u32 %v1460, 4294901760
        %v2226 = vsub.f32 %v1460, %v2225
        %v2227 = vand.u32 %v2226, 4294901760
        %v2228 = vsub.f32 %v2226, %v2227
        %v2229 = vand.u32 %v2228, 4294901760
        %2230 = vmatpush1.msra.mxu0 %v2229
        %2231 = vmatprep.subr.mxu0 0.0
        %v2232 = vand.u32 %v1461, 4294901760
        %v2233 = vsub.f32 %v1461, %v2232
        %v2234 = vand.u32 %v2233, 4294901760
        %v2235 = vsub.f32 %v2233, %v2234
        %v2236 = vand.u32 %v2235, 4294901760
        %2237 = vmatpush1.msra.mxu0 %v2236
        %2238 = vmatprep.subr.mxu0 0.0
        %v2239 = vand.u32 %v1462, 4294901760
        %v2240 = vsub.f32 %v1462, %v2239
        %v2241 = vand.u32 %v2240, 4294901760
        %v2242 = vsub.f32 %v2240, %v2241
        %v2243 = vand.u32 %v2242, 4294901760
        %2244 = vmatpush1.msra.mxu0 %v2243
        %2245 = vmatprep.subr.mxu0 0.0
        %v2246 = vand.u32 %v1463, 4294901760
        %v2247 = vsub.f32 %v1463, %v2246
        %v2248 = vand.u32 %v2247, 4294901760
        %v2249 = vsub.f32 %v2247, %v2248
        %v2250 = vand.u32 %v2249, 4294901760
        %2251 = vmatpush1.msra.mxu0 %v2250
        %2252 = vmatprep.subr.mxu0 0.0
        %v2253 = vand.u32 %v1464, 4294901760
        %v2254 = vsub.f32 %v1464, %v2253
        %v2255 = vand.u32 %v2254, 4294901760
        %v2256 = vsub.f32 %v2254, %v2255
        %v2257 = vand.u32 %v2256, 4294901760
        %2258 = vmatpush1.msra.mxu0 %v2257
        %2259 = vmatprep.subr.mxu0 0.0
        %v2260 = vand.u32 %v1465, 4294901760
        %v2261 = vsub.f32 %v1465, %v2260
        %v2262 = vand.u32 %v2261, 4294901760
        %v2263 = vsub.f32 %v2261, %v2262
        %v2264 = vand.u32 %v2263, 4294901760
        %2265 = vmatpush1.msra.mxu0 %v2264
        %2266 = vmatprep.subr.mxu0 0.0
        %v2267 = vand.u32 %v1466, 4294901760
        %v2268 = vsub.f32 %v1466, %v2267
        %v2269 = vand.u32 %v2268, 4294901760
        %v2270 = vsub.f32 %v2268, %v2269
        %v2271 = vand.u32 %v2270, 4294901760
        %2272 = vmatpush1.msra.mxu0 %v2271
        %2273 = vmatprep.subr.mxu0 0.0
        %v2274 = vand.u32 %v1467, 4294901760
        %v2275 = vsub.f32 %v1467, %v2274
        %v2276 = vand.u32 %v2275, 4294901760
        %v2277 = vsub.f32 %v2275, %v2276
        %v2278 = vand.u32 %v2277, 4294901760
        %2279 = vmatpush1.msra.mxu0 %v2278
        %2280 = vmatprep.subr.mxu0 0.0
        %v2281 = vand.u32 %v1468, 4294901760
        %v2282 = vsub.f32 %v1468, %v2281
        %v2283 = vand.u32 %v2282, 4294901760
        %v2284 = vsub.f32 %v2282, %v2283
        %v2285 = vand.u32 %v2284, 4294901760
        %2286 = vmatpush1.msra.mxu0 %v2285
        %2287 = vmatprep.subr.mxu0 0.0
        %v2288 = vand.u32 %v1469, 4294901760
        %v2289 = vsub.f32 %v1469, %v2288
        %v2290 = vand.u32 %v2289, 4294901760
        %v2291 = vsub.f32 %v2289, %v2290
        %v2292 = vand.u32 %v2291, 4294901760
        %2293 = vmatpush1.msra.mxu0 %v2292
        %2294 = vmatprep.subr.mxu0 0.0
        %v2295 = vand.u32 %v1470, 4294901760
        %v2296 = vsub.f32 %v1470, %v2295
        %v2297 = vand.u32 %v2296, 4294901760
        %v2298 = vsub.f32 %v2296, %v2297
        %v2299 = vand.u32 %v2298, 4294901760
        %2300 = vmatpush1.msra.mxu0 %v2299
        %2301 = vmatprep.subr.mxu0 0.0
        %v2302 = vand.u32 %v1471, 4294901760
        %v2303 = vsub.f32 %v1471, %v2302
        %v2304 = vand.u32 %v2303, 4294901760
        %v2305 = vsub.f32 %v2303, %v2304
        %v2306 = vand.u32 %v2305, 4294901760
        %2307 = vmatpush1.msra.mxu0 %v2306
        %2308 = vmatprep.subr.mxu0 0.0
        %v2309 = vand.u32 %v1472, 4294901760
        %v2310 = vsub.f32 %v1472, %v2309
        %v2311 = vand.u32 %v2310, 4294901760
        %v2312 = vsub.f32 %v2310, %v2311
        %v2313 = vand.u32 %v2312, 4294901760
        %2314 = vmatpush1.msra.mxu0 %v2313
        %2315 = vmatprep.subr.mxu0 0.0
        %v2316 = vand.u32 %v1473, 4294901760
        %v2317 = vsub.f32 %v1473, %v2316
        %v2318 = vand.u32 %v2317, 4294901760
        %v2319 = vsub.f32 %v2317, %v2318
        %v2320 = vand.u32 %v2319, 4294901760
        %2321 = vmatpush1.msra.mxu0 %v2320
        %2322 = vmatprep.subr.mxu0 0.0
        %v2323 = vand.u32 %v1474, 4294901760
        %v2324 = vsub.f32 %v1474, %v2323
        %v2325 = vand.u32 %v2324, 4294901760
        %v2326 = vsub.f32 %v2324, %v2325
        %v2327 = vand.u32 %v2326, 4294901760
        %2328 = vmatpush1.msra.mxu0 %v2327
        %2329 = vmatprep.subr.mxu0 0.0
        %v2330 = vand.u32 %v1475, 4294901760
        %v2331 = vsub.f32 %v1475, %v2330
        %v2332 = vand.u32 %v2331, 4294901760
        %v2333 = vsub.f32 %v2331, %v2332
        %v2334 = vand.u32 %v2333, 4294901760
        %2335 = vmatpush1.msra.mxu0 %v2334
        %2336 = vmatprep.subr.mxu0 0.0
        %2337 = vmatpush1.msra.mxu0 0.0
        %2338 = vmatprep.subr.mxu0 0.0
        %2339 = vmatpush1.msra.mxu0 0.0
        %2340 = vmatprep.subr.mxu0 0.0
        %2341 = vmatpush1.msra.mxu0 0.0
        %2342 = vmatprep.subr.mxu0 0.0
        %2343 = vmatpush1.msra.mxu0 0.0
        %2344 = vmatprep.subr.mxu0 0.0
        %2345 = vmatpush1.msra.mxu0 0.0
        %2346 = vmatprep.subr.mxu0 0.0
        %2347 = vmatpush1.msra.mxu0 0.0
        %2348 = vmatprep.subr.mxu0 0.0
        %2349 = vmatpush1.msra.mxu0 0.0
        %2350 = vmatprep.subr.mxu0 0.0
        %2351 = vmatpush1.msra.mxu0 0.0
        %2352 = vmatprep.subr.mxu0 0.0
        %2353 = vmatpush1.msra.mxu0 0.0
        %2354 = vmatprep.subr.mxu0 0.0
        %2355 = vmatpush1.msra.mxu0 0.0
        %2356 = vmatprep.subr.mxu0 0.0
        %2357 = vmatpush1.msra.mxu0 0.0
        %2358 = vmatprep.subr.mxu0 0.0
        %2359 = vmatpush1.msra.mxu0 0.0
        %2360 = vmatprep.subr.mxu0 0.0
        %2361 = vmatpush1.msra.mxu0 0.0
        %2362 = vmatprep.subr.mxu0 0.0
        %2363 = vmatpush1.msra.mxu0 0.0
        %2364 = vmatprep.subr.mxu0 0.0
        %2365 = vmatpush1.msra.mxu0 0.0
        %2366 = vmatprep.subr.mxu0 0.0
        %2367 = vmatpush1.msra.mxu0 0.0
        %2368 = vmatprep.mubr.f32.mxu0 0.0
        %v2369 = vand.u32 %v1459, 4294901760
        %2370 = vmatmul.mubr.f32.gmra.mrb[0].mxu0 %v2369
        %v2371 = vpop.f32.mrb[0].mxu0
        %v2372 = vadd.f32 %v2221, %v2371
        %v2373 = vpop.f32.mrb[0].mxu0
        %2374 = vdwg.mxu0
        %2375 = vmatprep.subr.mxu0 0.0
        %v2376 = vand.u32 %v1460, 4294901760
        %v2377 = vsub.f32 %v1460, %v2376
        %2378 = vmatpush1.msra.mxu0 %v2377
        %2379 = vmatprep.subr.mxu0 0.0
        %v2380 = vand.u32 %v1461, 4294901760
        %v2381 = vsub.f32 %v1461, %v2380
        %2382 = vmatpush1.msra.mxu0 %v2381
        %2383 = vmatprep.subr.mxu0 0.0
        %v2384 = vand.u32 %v1462, 4294901760
        %v2385 = vsub.f32 %v1462, %v2384
        %2386 = vmatpush1.msra.mxu0 %v2385
        %2387 = vmatprep.subr.mxu0 0.0
        %v2388 = vand.u32 %v1463, 4294901760
        %v2389 = vsub.f32 %v1463, %v2388
        %2390 = vmatpush1.msra.mxu0 %v2389
        %2391 = vmatprep.subr.mxu0 0.0
        %v2392 = vand.u32 %v1464, 4294901760
        %v2393 = vsub.f32 %v1464, %v2392
        %2394 = vmatpush1.msra.mxu0 %v2393
        %2395 = vmatprep.subr.mxu0 0.0
        %v2396 = vand.u32 %v1465, 4294901760
        %v2397 = vsub.f32 %v1465, %v2396
        %2398 = vmatpush1.msra.mxu0 %v2397
        %2399 = vmatprep.subr.mxu0 0.0
        %v2400 = vand.u32 %v1466, 4294901760
        %v2401 = vsub.f32 %v1466, %v2400
        %2402 = vmatpush1.msra.mxu0 %v2401
        %2403 = vmatprep.subr.mxu0 0.0
        %v2404 = vand.u32 %v1467, 4294901760
        %v2405 = vsub.f32 %v1467, %v2404
        %2406 = vmatpush1.msra.mxu0 %v2405
        %2407 = vmatprep.subr.mxu0 0.0
        %v2408 = vand.u32 %v1468, 4294901760
        %v2409 = vsub.f32 %v1468, %v2408
        %2410 = vmatpush1.msra.mxu0 %v2409
        %2411 = vmatprep.subr.mxu0 0.0
        %v2412 = vand.u32 %v1469, 4294901760
        %v2413 = vsub.f32 %v1469, %v2412
        %2414 = vmatpush1.msra.mxu0 %v2413
        %2415 = vmatprep.subr.mxu0 0.0
        %v2416 = vand.u32 %v1470, 4294901760
        %v2417 = vsub.f32 %v1470, %v2416
        %2418 = vmatpush1.msra.mxu0 %v2417
        %2419 = vmatprep.subr.mxu0 0.0
        %v2420 = vand.u32 %v1471, 4294901760
        %v2421 = vsub.f32 %v1471, %v2420
        %2422 = vmatpush1.msra.mxu0 %v2421
        %2423 = vmatprep.subr.mxu0 0.0
        %v2424 = vand.u32 %v1472, 4294901760
        %v2425 = vsub.f32 %v1472, %v2424
        %2426 = vmatpush1.msra.mxu0 %v2425
        %2427 = vmatprep.subr.mxu0 0.0
        %v2428 = vand.u32 %v1473, 4294901760
        %v2429 = vsub.f32 %v1473, %v2428
        %2430 = vmatpush1.msra.mxu0 %v2429
        %2431 = vmatprep.subr.mxu0 0.0
        %v2432 = vand.u32 %v1474, 4294901760
        %v2433 = vsub.f32 %v1474, %v2432
        %2434 = vmatpush1.msra.mxu0 %v2433
        %2435 = vmatprep.subr.mxu0 0.0
        %v2436 = vand.u32 %v1475, 4294901760
        %v2437 = vsub.f32 %v1475, %v2436
        %2438 = vmatpush1.msra.mxu0 %v2437
        %2439 = vmatprep.subr.mxu0 0.0
        %2440 = vmatpush1.msra.mxu0 0.0
        %2441 = vmatprep.subr.mxu0 0.0
        %2442 = vmatpush1.msra.mxu0 0.0
        %2443 = vmatprep.subr.mxu0 0.0
        %2444 = vmatpush1.msra.mxu0 0.0
        %2445 = vmatprep.subr.mxu0 0.0
        %2446 = vmatpush1.msra.mxu0 0.0
        %2447 = vmatprep.subr.mxu0 0.0
        %2448 = vmatpush1.msra.mxu0 0.0
        %2449 = vmatprep.subr.mxu0 0.0
        %2450 = vmatpush1.msra.mxu0 0.0
        %2451 = vmatprep.subr.mxu0 0.0
        %2452 = vmatpush1.msra.mxu0 0.0
        %2453 = vmatprep.subr.mxu0 0.0
        %2454 = vmatpush1.msra.mxu0 0.0
        %2455 = vmatprep.subr.mxu0 0.0
        %2456 = vmatpush1.msra.mxu0 0.0
        %2457 = vmatprep.subr.mxu0 0.0
        %2458 = vmatpush1.msra.mxu0 0.0
        %2459 = vmatprep.subr.mxu0 0.0
        %2460 = vmatpush1.msra.mxu0 0.0
        %2461 = vmatprep.subr.mxu0 0.0
        %2462 = vmatpush1.msra.mxu0 0.0
        %2463 = vmatprep.subr.mxu0 0.0
        %2464 = vmatpush1.msra.mxu0 0.0
        %2465 = vmatprep.subr.mxu0 0.0
        %2466 = vmatpush1.msra.mxu0 0.0
        %2467 = vmatprep.subr.mxu0 0.0
        %2468 = vmatpush1.msra.mxu0 0.0
        %2469 = vmatprep.subr.mxu0 0.0
        %2470 = vmatpush1.msra.mxu0 0.0
        %2471 = vmatprep.mubr.f32.mxu0 0.0
        %v2472 = vand.u32 %v1459, 4294901760
        %v2473 = vsub.f32 %v1459, %v2472
        %2474 = vmatmul.mubr.f32.gmra.mrb[0].mxu0 %v2473
        %v2475 = vpop.f32.mrb[0].mxu0
        %v2476 = vadd.f32 %v2372, %v2475
        %v2477 = vpop.f32.mrb[0].mxu0
        %2478 = vdwg.mxu0
        %2479 = vmatprep.subr.mxu0 0.0
        %v2480 = vand.u32 %v1460, 4294901760
        %2481 = vmatpush1.msra.mxu0 %v2480
        %2482 = vmatprep.subr.mxu0 0.0
        %v2483 = vand.u32 %v1461, 4294901760
        %2484 = vmatpush1.msra.mxu0 %v2483
        %2485 = vmatprep.subr.mxu0 0.0
        %v2486 = vand.u32 %v1462, 4294901760
        %2487 = vmatpush1.msra.mxu0 %v2486
        %2488 = vmatprep.subr.mxu0 0.0
        %v2489 = vand.u32 %v1463, 4294901760
        %2490 = vmatpush1.msra.mxu0 %v2489
        %2491 = vmatprep.subr.mxu0 0.0
        %v2492 = vand.u32 %v1464, 4294901760
        %2493 = vmatpush1.msra.mxu0 %v2492
        %2494 = vmatprep.subr.mxu0 0.0
        %v2495 = vand.u32 %v1465, 4294901760
        %2496 = vmatpush1.msra.mxu0 %v2495
        %2497 = vmatprep.subr.mxu0 0.0
        %v2498 = vand.u32 %v1466, 4294901760
        %2499 = vmatpush1.msra.mxu0 %v2498
        %2500 = vmatprep.subr.mxu0 0.0
        %v2501 = vand.u32 %v1467, 4294901760
        %2502 = vmatpush1.msra.mxu0 %v2501
        %2503 = vmatprep.subr.mxu0 0.0
        %v2504 = vand.u32 %v1468, 4294901760
        %2505 = vmatpush1.msra.mxu0 %v2504
        %2506 = vmatprep.subr.mxu0 0.0
        %v2507 = vand.u32 %v1469, 4294901760
        %2508 = vmatpush1.msra.mxu0 %v2507
        %2509 = vmatprep.subr.mxu0 0.0
        %v2510 = vand.u32 %v1470, 4294901760
        %2511 = vmatpush1.msra.mxu0 %v2510
        %2512 = vmatprep.subr.mxu0 0.0
        %v2513 = vand.u32 %v1471, 4294901760
        %2514 = vmatpush1.msra.mxu0 %v2513
        %2515 = vmatprep.subr.mxu0 0.0
        %v2516 = vand.u32 %v1472, 4294901760
        %2517 = vmatpush1.msra.mxu0 %v2516
        %2518 = vmatprep.subr.mxu0 0.0
        %v2519 = vand.u32 %v1473, 4294901760
        %2520 = vmatpush1.msra.mxu0 %v2519
        %2521 = vmatprep.subr.mxu0 0.0
        %v2522 = vand.u32 %v1474, 4294901760
        %2523 = vmatpush1.msra.mxu0 %v2522
        %2524 = vmatprep.subr.mxu0 0.0
        %v2525 = vand.u32 %v1475, 4294901760
        %2526 = vmatpush1.msra.mxu0 %v2525
        %2527 = vmatprep.subr.mxu0 0.0
        %2528 = vmatpush1.msra.mxu0 0.0
        %2529 = vmatprep.subr.mxu0 0.0
        %2530 = vmatpush1.msra.mxu0 0.0
        %2531 = vmatprep.subr.mxu0 0.0
        %2532 = vmatpush1.msra.mxu0 0.0
        %2533 = vmatprep.subr.mxu0 0.0
        %2534 = vmatpush1.msra.mxu0 0.0
        %2535 = vmatprep.subr.mxu0 0.0
        %2536 = vmatpush1.msra.mxu0 0.0
        %2537 = vmatprep.subr.mxu0 0.0
        %2538 = vmatpush1.msra.mxu0 0.0
        %2539 = vmatprep.subr.mxu0 0.0
        %2540 = vmatpush1.msra.mxu0 0.0
        %2541 = vmatprep.subr.mxu0 0.0
        %2542 = vmatpush1.msra.mxu0 0.0
        %2543 = vmatprep.subr.mxu0 0.0
        %2544 = vmatpush1.msra.mxu0 0.0
        %2545 = vmatprep.subr.mxu0 0.0
        %2546 = vmatpush1.msra.mxu0 0.0
        %2547 = vmatprep.subr.mxu0 0.0
        %2548 = vmatpush1.msra.mxu0 0.0
        %2549 = vmatprep.subr.mxu0 0.0
        %2550 = vmatpush1.msra.mxu0 0.0
        %2551 = vmatprep.subr.mxu0 0.0
        %2552 = vmatpush1.msra.mxu0 0.0
        %2553 = vmatprep.subr.mxu0 0.0
        %2554 = vmatpush1.msra.mxu0 0.0
        %2555 = vmatprep.subr.mxu0 0.0
        %2556 = vmatpush1.msra.mxu0 0.0
        %2557 = vmatprep.subr.mxu0 0.0
        %2558 = vmatpush1.msra.mxu0 0.0
        %2559 = vmatprep.mubr.f32.mxu0 0.0
        %v2560 = vand.u32 %v1459, 4294901760
        %v2561 = vsub.f32 %v1459, %v2560
        %v2562 = vand.u32 %v2561, 4294901760
        %2563 = vmatmul.mubr.f32.gmra.mrb[0].mxu0 %v2562
        %v2564 = vpop.f32.mrb[0].mxu0
        %v2565 = vadd.f32 %v2476, %v2564
        %v2566 = vpop.f32.mrb[0].mxu0
        %2567 = vdwg.mxu0
        %2568 = vmatprep.subr.mxu0 0.0
        %v2569 = vand.u32 %v1460, 4294901760
        %v2570 = vsub.f32 %v1460, %v2569
        %v2571 = vand.u32 %v2570, 4294901760
        %2572 = vmatpush1.msra.mxu0 %v2571
        %2573 = vmatprep.subr.mxu0 0.0
        %v2574 = vand.u32 %v1461, 4294901760
        %v2575 = vsub.f32 %v1461, %v2574
        %v2576 = vand.u32 %v2575, 4294901760
        %2577 = vmatpush1.msra.mxu0 %v2576
        %2578 = vmatprep.subr.mxu0 0.0
        %v2579 = vand.u32 %v1462, 4294901760
        %v2580 = vsub.f32 %v1462, %v2579
        %v2581 = vand.u32 %v2580, 4294901760
        %2582 = vmatpush1.msra.mxu0 %v2581
        %2583 = vmatprep.subr.mxu0 0.0
        %v2584 = vand.u32 %v1463, 4294901760
        %v2585 = vsub.f32 %v1463, %v2584
        %v2586 = vand.u32 %v2585, 4294901760
        %2587 = vmatpush1.msra.mxu0 %v2586
        %2588 = vmatprep.subr.mxu0 0.0
        %v2589 = vand.u32 %v1464, 4294901760
        %v2590 = vsub.f32 %v1464, %v2589
        %v2591 = vand.u32 %v2590, 4294901760
        %2592 = vmatpush1.msra.mxu0 %v2591
        %2593 = vmatprep.subr.mxu0 0.0
        %v2594 = vand.u32 %v1465, 4294901760
        %v2595 = vsub.f32 %v1465, %v2594
        %v2596 = vand.u32 %v2595, 4294901760
        %2597 = vmatpush1.msra.mxu0 %v2596
        %2598 = vmatprep.subr.mxu0 0.0
        %v2599 = vand.u32 %v1466, 4294901760
        %v2600 = vsub.f32 %v1466, %v2599
        %v2601 = vand.u32 %v2600, 4294901760
        %2602 = vmatpush1.msra.mxu0 %v2601
        %2603 = vmatprep.subr.mxu0 0.0
        %v2604 = vand.u32 %v1467, 4294901760
        %v2605 = vsub.f32 %v1467, %v2604
        %v2606 = vand.u32 %v2605, 4294901760
        %2607 = vmatpush1.msra.mxu0 %v2606
        %2608 = vmatprep.subr.mxu0 0.0
        %v2609 = vand.u32 %v1468, 4294901760
        %v2610 = vsub.f32 %v1468, %v2609
        %v2611 = vand.u32 %v2610, 4294901760
        %2612 = vmatpush1.msra.mxu0 %v2611
        %2613 = vmatprep.subr.mxu0 0.0
        %v2614 = vand.u32 %v1469, 4294901760
        %v2615 = vsub.f32 %v1469, %v2614
        %v2616 = vand.u32 %v2615, 4294901760
        %2617 = vmatpush1.msra.mxu0 %v2616
        %2618 = vmatprep.subr.mxu0 0.0
        %v2619 = vand.u32 %v1470, 4294901760
        %v2620 = vsub.f32 %v1470, %v2619
        %v2621 = vand.u32 %v2620, 4294901760
        %2622 = vmatpush1.msra.mxu0 %v2621
        %2623 = vmatprep.subr.mxu0 0.0
        %v2624 = vand.u32 %v1471, 4294901760
        %v2625 = vsub.f32 %v1471, %v2624
        %v2626 = vand.u32 %v2625, 4294901760
        %2627 = vmatpush1.msra.mxu0 %v2626
        %2628 = vmatprep.subr.mxu0 0.0
        %v2629 = vand.u32 %v1472, 4294901760
        %v2630 = vsub.f32 %v1472, %v2629
        %v2631 = vand.u32 %v2630, 4294901760
        %2632 = vmatpush1.msra.mxu0 %v2631
        %2633 = vmatprep.subr.mxu0 0.0
        %v2634 = vand.u32 %v1473, 4294901760
        %v2635 = vsub.f32 %v1473, %v2634
        %v2636 = vand.u32 %v2635, 4294901760
        %2637 = vmatpush1.msra.mxu0 %v2636
        %2638 = vmatprep.subr.mxu0 0.0
        %v2639 = vand.u32 %v1474, 4294901760
        %v2640 = vsub.f32 %v1474, %v2639
        %v2641 = vand.u32 %v2640, 4294901760
        %2642 = vmatpush1.msra.mxu0 %v2641
        %2643 = vmatprep.subr.mxu0 0.0
        %v2644 = vand.u32 %v1475, 4294901760
        %v2645 = vsub.f32 %v1475, %v2644
        %v2646 = vand.u32 %v2645, 4294901760
        %2647 = vmatpush1.msra.mxu0 %v2646
        %2648 = vmatprep.subr.mxu0 0.0
        %2649 = vmatpush1.msra.mxu0 0.0
        %2650 = vmatprep.subr.mxu0 0.0
        %2651 = vmatpush1.msra.mxu0 0.0
        %2652 = vmatprep.subr.mxu0 0.0
        %2653 = vmatpush1.msra.mxu0 0.0
        %2654 = vmatprep.subr.mxu0 0.0
        %2655 = vmatpush1.msra.mxu0 0.0
        %2656 = vmatprep.subr.mxu0 0.0
        %2657 = vmatpush1.msra.mxu0 0.0
        %2658 = vmatprep.subr.mxu0 0.0
        %2659 = vmatpush1.msra.mxu0 0.0
        %2660 = vmatprep.subr.mxu0 0.0
        %2661 = vmatpush1.msra.mxu0 0.0
        %2662 = vmatprep.subr.mxu0 0.0
        %2663 = vmatpush1.msra.mxu0 0.0
        %2664 = vmatprep.subr.mxu0 0.0
        %2665 = vmatpush1.msra.mxu0 0.0
        %2666 = vmatprep.subr.mxu0 0.0
        %2667 = vmatpush1.msra.mxu0 0.0
        %2668 = vmatprep.subr.mxu0 0.0
        %2669 = vmatpush1.msra.mxu0 0.0
        %2670 = vmatprep.subr.mxu0 0.0
        %2671 = vmatpush1.msra.mxu0 0.0
        %2672 = vmatprep.subr.mxu0 0.0
        %2673 = vmatpush1.msra.mxu0 0.0
        %2674 = vmatprep.subr.mxu0 0.0
        %2675 = vmatpush1.msra.mxu0 0.0
        %2676 = vmatprep.subr.mxu0 0.0
        %2677 = vmatpush1.msra.mxu0 0.0
        %2678 = vmatprep.subr.mxu0 0.0
        %2679 = vmatpush1.msra.mxu0 0.0
        %2680 = vmatprep.mubr.f32.mxu0 0.0
        %v2681 = vand.u32 %v1459, 4294901760
        %2682 = vmatmul.mubr.f32.gmra.mrb[0].mxu0 %v2681
        %v2683 = vpop.f32.mrb[0].mxu0
        %v2684 = vadd.f32 %v2565, %v2683
        %v2685 = vpop.f32.mrb[0].mxu0
        %2686 = vdwg.mxu0
        %2687 = vmatprep.subr.mxu0 0.0
        %v2688 = vand.u32 %v1460, 4294901760
        %2689 = vmatpush1.msra.mxu0 %v2688
        %2690 = vmatprep.subr.mxu0 0.0
        %v2691 = vand.u32 %v1461, 4294901760
        %2692 = vmatpush1.msra.mxu0 %v2691
        %2693 = vmatprep.subr.mxu0 0.0
        %v2694 = vand.u32 %v1462, 4294901760
        %2695 = vmatpush1.msra.mxu0 %v2694
        %2696 = vmatprep.subr.mxu0 0.0
        %v2697 = vand.u32 %v1463, 4294901760
        %2698 = vmatpush1.msra.mxu0 %v2697
        %2699 = vmatprep.subr.mxu0 0.0
        %v2700 = vand.u32 %v1464, 4294901760
        %2701 = vmatpush1.msra.mxu0 %v2700
        %2702 = vmatprep.subr.mxu0 0.0
        %v2703 = vand.u32 %v1465, 4294901760
        %2704 = vmatpush1.msra.mxu0 %v2703
        %2705 = vmatprep.subr.mxu0 0.0
        %v2706 = vand.u32 %v1466, 4294901760
        %2707 = vmatpush1.msra.mxu0 %v2706
        %2708 = vmatprep.subr.mxu0 0.0
        %v2709 = vand.u32 %v1467, 4294901760
        %2710 = vmatpush1.msra.mxu0 %v2709
        %2711 = vmatprep.subr.mxu0 0.0
        %v2712 = vand.u32 %v1468, 4294901760
        %2713 = vmatpush1.msra.mxu0 %v2712
        %2714 = vmatprep.subr.mxu0 0.0
        %v2715 = vand.u32 %v1469, 4294901760
        %2716 = vmatpush1.msra.mxu0 %v2715
        %2717 = vmatprep.subr.mxu0 0.0
        %v2718 = vand.u32 %v1470, 4294901760
        %2719 = vmatpush1.msra.mxu0 %v2718
        %2720 = vmatprep.subr.mxu0 0.0
        %v2721 = vand.u32 %v1471, 4294901760
        %2722 = vmatpush1.msra.mxu0 %v2721
        %2723 = vmatprep.subr.mxu0 0.0
        %v2724 = vand.u32 %v1472, 4294901760
        %2725 = vmatpush1.msra.mxu0 %v2724
        %2726 = vmatprep.subr.mxu0 0.0
        %v2727 = vand.u32 %v1473, 4294901760
        %2728 = vmatpush1.msra.mxu0 %v2727
        %2729 = vmatprep.subr.mxu0 0.0
        %v2730 = vand.u32 %v1474, 4294901760
        %2731 = vmatpush1.msra.mxu0 %v2730
        %2732 = vmatprep.subr.mxu0 0.0
        %v2733 = vand.u32 %v1475, 4294901760
        %2734 = vmatpush1.msra.mxu0 %v2733
        %2735 = vmatprep.subr.mxu0 0.0
        %2736 = vmatpush1.msra.mxu0 0.0
        %2737 = vmatprep.subr.mxu0 0.0
        %2738 = vmatpush1.msra.mxu0 0.0
        %2739 = vmatprep.subr.mxu0 0.0
        %2740 = vmatpush1.msra.mxu0 0.0
        %2741 = vmatprep.subr.mxu0 0.0
        %2742 = vmatpush1.msra.mxu0 0.0
        %2743 = vmatprep.subr.mxu0 0.0
        %2744 = vmatpush1.msra.mxu0 0.0
        %2745 = vmatprep.subr.mxu0 0.0
        %2746 = vmatpush1.msra.mxu0 0.0
        %2747 = vmatprep.subr.mxu0 0.0
        %2748 = vmatpush1.msra.mxu0 0.0
        %2749 = vmatprep.subr.mxu0 0.0
        %2750 = vmatpush1.msra.mxu0 0.0
        %2751 = vmatprep.subr.mxu0 0.0
        %2752 = vmatpush1.msra.mxu0 0.0
        %2753 = vmatprep.subr.mxu0 0.0
        %2754 = vmatpush1.msra.mxu0 0.0
        %2755 = vmatprep.subr.mxu0 0.0
        %2756 = vmatpush1.msra.mxu0 0.0
        %2757 = vmatprep.subr.mxu0 0.0
        %2758 = vmatpush1.msra.mxu0 0.0
        %2759 = vmatprep.subr.mxu0 0.0
        %2760 = vmatpush1.msra.mxu0 0.0
        %2761 = vmatprep.subr.mxu0 0.0
        %2762 = vmatpush1.msra.mxu0 0.0
        %2763 = vmatprep.subr.mxu0 0.0
        %2764 = vmatpush1.msra.mxu0 0.0
        %2765 = vmatprep.subr.mxu0 0.0
        %2766 = vmatpush1.msra.mxu0 0.0
        %2767 = vmatprep.mubr.f32.mxu0 0.0
        %v2768 = vand.u32 %v1459, 4294901760
        %2769 = vmatmul.mubr.f32.gmra.mrb[0].mxu0 %v2768
        %v2770 = vpop.f32.mrb[0].mxu0
        %v2771 = vadd.f32 %v2684, %v2770
        %v2772 = vpop.f32.mrb[0].mxu0
        %2773 = vdwg.mxu0
        %v2774 = vld [vmem:[%s5] sm:$0x1]
        %v2776 = vlaneseq
        %v2777 = vshrl.u32 %v2776, 7
        %v2778 = vsub.s32 0, %v2777
        %v2779 = vrot.slane %v2774, %v2778
        %v2781 = vadd.f32 %v2771, %v2779
        %v2782 = vxor.u32 %v2781, 2147483648
        %v2783 = vmul.f32 %v2782, 1.442695
        %v2784 = vpow.pop %v2783
        %v2785 = vadd.f32 %v2784, 1.0
        %v2786 = vrcp.pop %v2785
        %v2787 = vmul.f32 1.0, %v2786
        %v2788 = vmul.f32 %v2781, %v2787
        %v2789 = vld [vmem:[#allocation11] sm:$0xff]
        %v2790 = vld [vmem:[#allocation11 + $0x8] sm:$0xff]
        %v2791 = vld [vmem:[#allocation11 + $0x10] sm:$0xff]
        %v2792 = vld [vmem:[#allocation11 + $0x18] sm:$0xff]
        %v2793 = vld [vmem:[#allocation11 + $0x20] sm:$0xff]
        %v2794 = vld [vmem:[#allocation11 + $0x28] sm:$0xff]
        %v2795 = vld [vmem:[#allocation11 + $0x30] sm:$0xff]
        %v2796 = vld [vmem:[#allocation11 + $0x38] sm:$0xff]
        %v2797 = vld [vmem:[#allocation11 + $0x40] sm:$0xff]
        %v2798 = vld [vmem:[#allocation11 + $0x48] sm:$0xff]
        %v2799 = vld [vmem:[#allocation11 + $0x50] sm:$0xff]
        %v2800 = vld [vmem:[#allocation11 + $0x58] sm:$0xff]
        %v2801 = vld [vmem:[#allocation11 + $0x60] sm:$0xff]
        %v2802 = vld [vmem:[#allocation11 + $0x68] sm:$0xff]
        %v2803 = vld [vmem:[#allocation11 + $0x70] sm:$0xff]
        %v2804 = vld [vmem:[#allocation11 + $0x78] sm:$0xff]
        %v2805 = vld [vmem:[#allocation11 + $0x80] sm:$0xff]
        %v2806 = vld [vmem:[#allocation11 + $0x88] sm:$0xff]
        %v2807 = vld [vmem:[#allocation11 + $0x90] sm:$0xff]
        %v2808 = vld [vmem:[#allocation11 + $0x98] sm:$0xff]
        %v2809 = vld [vmem:[#allocation11 + $0xa0] sm:$0xff]
        %v2810 = vld [vmem:[#allocation11 + $0xa8] sm:$0xff]
        %v2811 = vld [vmem:[#allocation11 + $0xb0] sm:$0xff]
        %v2812 = vld [vmem:[#allocation11 + $0xb8] sm:$0xff]
        %v2813 = vld [vmem:[#allocation11 + $0xc0] sm:$0xff]
        %v2814 = vld [vmem:[#allocation11 + $0xc8] sm:$0xff]
        %v2815 = vld [vmem:[#allocation11 + $0xd0] sm:$0xff]
        %v2816 = vld [vmem:[#allocation11 + $0xd8] sm:$0xff]
        %v2817 = vld [vmem:[#allocation11 + $0xe0] sm:$0xff]
        %v2818 = vld [vmem:[#allocation11 + $0xe8] sm:$0xff]
        %v2819 = vld [vmem:[#allocation11 + $0xf0] sm:$0xff]
        %v2820 = vld [vmem:[#allocation11 + $0xf8] sm:$0xff]
        %v2821 = vld [vmem:[%s7] sm:$0x3]
        %v2823 = vlaneseq
        %v2824 = vshrl.u32 %v2823, 7
        %v2825 = vsub.s32 0, %v2824
        %v2826 = vrot.slane %v2821, %v2825
        %v2827 = vlaneseq
        %v2828 = vshrl.u32 %v2827, 7
        %v2829 = vsub.s32 1, %v2828
        %v2830 = vrot.slane %v2821, %v2829
        %v2833 = vand.u32 %v2790, 4294901760
        %2834 = vmatprep.subr.mxu0 %v2833
        %v2835 = vand.u32 %v2789, 4294901760
        %2836 = vmatpush1.msra.mxu0 %v2835
        %v2837 = vand.u32 %v2792, 4294901760
        %2838 = vmatprep.subr.mxu0 %v2837
        %v2839 = vand.u32 %v2791, 4294901760
        %2840 = vmatpush1.msra.mxu0 %v2839
        %v2841 = vand.u32 %v2794, 4294901760
        %2842 = vmatprep.subr.mxu0 %v2841
        %v2843 = vand.u32 %v2793, 4294901760
        %2844 = vmatpush1.msra.mxu0 %v2843
        %v2845 = vand.u32 %v2796, 4294901760
        %2846 = vmatprep.subr.mxu0 %v2845
        %v2847 = vand.u32 %v2795, 4294901760
        %2848 = vmatpush1.msra.mxu0 %v2847
        %v2849 = vand.u32 %v2798, 4294901760
        %2850 = vmatprep.subr.mxu0 %v2849
        %v2851 = vand.u32 %v2797, 4294901760
        %2852 = vmatpush1.msra.mxu0 %v2851
        %v2853 = vand.u32 %v2800, 4294901760
        %2854 = vmatprep.subr.mxu0 %v2853
        %v2855 = vand.u32 %v2799, 4294901760
        %2856 = vmatpush1.msra.mxu0 %v2855
        %v2857 = vand.u32 %v2802, 4294901760
        %2858 = vmatprep.subr.mxu0 %v2857
        %v2859 = vand.u32 %v2801, 4294901760
        %2860 = vmatpush1.msra.mxu0 %v2859
        %v2861 = vand.u32 %v2804, 4294901760
        %2862 = vmatprep.subr.mxu0 %v2861
        %v2863 = vand.u32 %v2803, 4294901760
        %2864 = vmatpush1.msra.mxu0 %v2863
        %v2865 = vand.u32 %v2806, 4294901760
        %2866 = vmatprep.subr.mxu0 %v2865
        %v2867 = vand.u32 %v2805, 4294901760
        %2868 = vmatpush1.msra.mxu0 %v2867
        %v2869 = vand.u32 %v2808, 4294901760
        %2870 = vmatprep.subr.mxu0 %v2869
        %v2871 = vand.u32 %v2807, 4294901760
        %2872 = vmatpush1.msra.mxu0 %v2871
        %v2873 = vand.u32 %v2810, 4294901760
        %2874 = vmatprep.subr.mxu0 %v2873
        %v2875 = vand.u32 %v2809, 4294901760
        %2876 = vmatpush1.msra.mxu0 %v2875
        %v2877 = vand.u32 %v2812, 4294901760
        %2878 = vmatprep.subr.mxu0 %v2877
        %v2879 = vand.u32 %v2811, 4294901760
        %2880 = vmatpush1.msra.mxu0 %v2879
        %v2881 = vand.u32 %v2814, 4294901760
        %2882 = vmatprep.subr.mxu0 %v2881
        %v2883 = vand.u32 %v2813, 4294901760
        %2884 = vmatpush1.msra.mxu0 %v2883
        %v2885 = vand.u32 %v2816, 4294901760
        %2886 = vmatprep.subr.mxu0 %v2885
        %v2887 = vand.u32 %v2815, 4294901760
        %2888 = vmatpush1.msra.mxu0 %v2887
        %v2889 = vand.u32 %v2818, 4294901760
        %2890 = vmatprep.subr.mxu0 %v2889
        %v2891 = vand.u32 %v2817, 4294901760
        %2892 = vmatpush1.msra.mxu0 %v2891
        %v2893 = vand.u32 %v2820, 4294901760
        %2894 = vmatprep.subr.mxu0 %v2893
        %v2895 = vand.u32 %v2819, 4294901760
        %2896 = vmatpush1.msra.mxu0 %v2895
        %2897 = vmatprep.subr.mxu0 0.0
        %2898 = vmatpush1.msra.mxu0 0.0
        %2899 = vmatprep.subr.mxu0 0.0
        %2900 = vmatpush1.msra.mxu0 0.0
        %2901 = vmatprep.subr.mxu0 0.0
        %2902 = vmatpush1.msra.mxu0 0.0
        %2903 = vmatprep.subr.mxu0 0.0
        %2904 = vmatpush1.msra.mxu0 0.0
        %2905 = vmatprep.subr.mxu0 0.0
        %2906 = vmatpush1.msra.mxu0 0.0
        %2907 = vmatprep.subr.mxu0 0.0
        %2908 = vmatpush1.msra.mxu0 0.0
        %2909 = vmatprep.subr.mxu0 0.0
        %2910 = vmatpush1.msra.mxu0 0.0
        %2911 = vmatprep.subr.mxu0 0.0
        %2912 = vmatpush1.msra.mxu0 0.0
        %2913 = vmatprep.subr.mxu0 0.0
        %2914 = vmatpush1.msra.mxu0 0.0
        %2915 = vmatprep.subr.mxu0 0.0
        %2916 = vmatpush1.msra.mxu0 0.0
        %2917 = vmatprep.subr.mxu0 0.0
        %2918 = vmatpush1.msra.mxu0 0.0
        %2919 = vmatprep.subr.mxu0 0.0
        %2920 = vmatpush1.msra.mxu0 0.0
        %2921 = vmatprep.subr.mxu0 0.0
        %2922 = vmatpush1.msra.mxu0 0.0
        %2923 = vmatprep.subr.mxu0 0.0
        %2924 = vmatpush1.msra.mxu0 0.0
        %2925 = vmatprep.subr.mxu0 0.0
        %2926 = vmatpush1.msra.mxu0 0.0
        %2927 = vmatprep.subr.mxu0 0.0
        %2928 = vmatpush1.msra.mxu0 0.0
        %2929 = vmatprep.mubr.f32.mxu0 0.0
        %v2930 = vand.u32 %v2788, 4294901760
        %v2931 = vsub.f32 %v2788, %v2930
        %v2932 = vand.u32 %v2931, 4294901760
        %v2933 = vsub.f32 %v2931, %v2932
        %v2934 = vand.u32 %v2933, 4294901760
        %2935 = vmatmul.mubr.f32.gmra.mrb[0].mxu0 %v2934
        %v2936 = vpop.f32.mrb[0].mxu0
        %v2937 = vadd.f32 %v2826, %v2936
        %v2938 = vpop.f32.mrb[0].mxu0
        %v2939 = vadd.f32 %v2830, %v2938
        %2940 = vdwg.mxu0
        %v2941 = vand.u32 %v2790, 4294901760
        %v2942 = vsub.f32 %v2790, %v2941
        %v2943 = vand.u32 %v2942, 4294901760
        %v2944 = vsub.f32 %v2942, %v2943
        %v2945 = vand.u32 %v2944, 4294901760
        %2946 = vmatprep.subr.mxu0 %v2945
        %v2947 = vand.u32 %v2789, 4294901760
        %v2948 = vsub.f32 %v2789, %v2947
        %v2949 = vand.u32 %v2948, 4294901760
        %v2950 = vsub.f32 %v2948, %v2949
        %v2951 = vand.u32 %v2950, 4294901760
        %2952 = vmatpush1.msra.mxu0 %v2951
        %v2953 = vand.u32 %v2792, 4294901760
        %v2954 = vsub.f32 %v2792, %v2953
        %v2955 = vand.u32 %v2954, 4294901760
        %v2956 = vsub.f32 %v2954, %v2955
        %v2957 = vand.u32 %v2956, 4294901760
        %2958 = vmatprep.subr.mxu0 %v2957
        %v2959 = vand.u32 %v2791, 4294901760
        %v2960 = vsub.f32 %v2791, %v2959
        %v2961 = vand.u32 %v2960, 4294901760
        %v2962 = vsub.f32 %v2960, %v2961
        %v2963 = vand.u32 %v2962, 4294901760
        %2964 = vmatpush1.msra.mxu0 %v2963
        %v2965 = vand.u32 %v2794, 4294901760
        %v2966 = vsub.f32 %v2794, %v2965
        %v2967 = vand.u32 %v2966, 4294901760
        %v2968 = vsub.f32 %v2966, %v2967
        %v2969 = vand.u32 %v2968, 4294901760
        %2970 = vmatprep.subr.mxu0 %v2969
        %v2971 = vand.u32 %v2793, 4294901760
        %v2972 = vsub.f32 %v2793, %v2971
        %v2973 = vand.u32 %v2972, 4294901760
        %v2974 = vsub.f32 %v2972, %v2973
        %v2975 = vand.u32 %v2974, 4294901760
        %2976 = vmatpush1.msra.mxu0 %v2975
        %v2977 = vand.u32 %v2796, 4294901760
        %v2978 = vsub.f32 %v2796, %v2977
        %v2979 = vand.u32 %v2978, 4294901760
        %v2980 = vsub.f32 %v2978, %v2979
        %v2981 = vand.u32 %v2980, 4294901760
        %2982 = vmatprep.subr.mxu0 %v2981
        %v2983 = vand.u32 %v2795, 4294901760
        %v2984 = vsub.f32 %v2795, %v2983
        %v2985 = vand.u32 %v2984, 4294901760
        %v2986 = vsub.f32 %v2984, %v2985
        %v2987 = vand.u32 %v2986, 4294901760
        %2988 = vmatpush1.msra.mxu0 %v2987
        %v2989 = vand.u32 %v2798, 4294901760
        %v2990 = vsub.f32 %v2798, %v2989
        %v2991 = vand.u32 %v2990, 4294901760
        %v2992 = vsub.f32 %v2990, %v2991
        %v2993 = vand.u32 %v2992, 4294901760
        %2994 = vmatprep.subr.mxu0 %v2993
        %v2995 = vand.u32 %v2797, 4294901760
        %v2996 = vsub.f32 %v2797, %v2995
        %v2997 = vand.u32 %v2996, 4294901760
        %v2998 = vsub.f32 %v2996, %v2997
        %v2999 = vand.u32 %v2998, 4294901760
        %3000 = vmatpush1.msra.mxu0 %v2999
        %v3001 = vand.u32 %v2800, 4294901760
        %v3002 = vsub.f32 %v2800, %v3001
        %v3003 = vand.u32 %v3002, 4294901760
        %v3004 = vsub.f32 %v3002, %v3003
        %v3005 = vand.u32 %v3004, 4294901760
        %3006 = vmatprep.subr.mxu0 %v3005
        %v3007 = vand.u32 %v2799, 4294901760
        %v3008 = vsub.f32 %v2799, %v3007
        %v3009 = vand.u32 %v3008, 4294901760
        %v3010 = vsub.f32 %v3008, %v3009
        %v3011 = vand.u32 %v3010, 4294901760
        %3012 = vmatpush1.msra.mxu0 %v3011
        %v3013 = vand.u32 %v2802, 4294901760
        %v3014 = vsub.f32 %v2802, %v3013
        %v3015 = vand.u32 %v3014, 4294901760
        %v3016 = vsub.f32 %v3014, %v3015
        %v3017 = vand.u32 %v3016, 4294901760
        %3018 = vmatprep.subr.mxu0 %v3017
        %v3019 = vand.u32 %v2801, 4294901760
        %v3020 = vsub.f32 %v2801, %v3019
        %v3021 = vand.u32 %v3020, 4294901760
        %v3022 = vsub.f32 %v3020, %v3021
        %v3023 = vand.u32 %v3022, 4294901760
        %3024 = vmatpush1.msra.mxu0 %v3023
        %v3025 = vand.u32 %v2804, 4294901760
        %v3026 = vsub.f32 %v2804, %v3025
        %v3027 = vand.u32 %v3026, 4294901760
        %v3028 = vsub.f32 %v3026, %v3027
        %v3029 = vand.u32 %v3028, 4294901760
        %3030 = vmatprep.subr.mxu0 %v3029
        %v3031 = vand.u32 %v2803, 4294901760
        %v3032 = vsub.f32 %v2803, %v3031
        %v3033 = vand.u32 %v3032, 4294901760
        %v3034 = vsub.f32 %v3032, %v3033
        %v3035 = vand.u32 %v3034, 4294901760
        %3036 = vmatpush1.msra.mxu0 %v3035
        %v3037 = vand.u32 %v2806, 4294901760
        %v3038 = vsub.f32 %v2806, %v3037
        %v3039 = vand.u32 %v3038, 4294901760
        %v3040 = vsub.f32 %v3038, %v3039
        %v3041 = vand.u32 %v3040, 4294901760
        %3042 = vmatprep.subr.mxu0 %v3041
        %v3043 = vand.u32 %v2805, 4294901760
        %v3044 = vsub.f32 %v2805, %v3043
        %v3045 = vand.u32 %v3044, 4294901760
        %v3046 = vsub.f32 %v3044, %v3045
        %v3047 = vand.u32 %v3046, 4294901760
        %3048 = vmatpush1.msra.mxu0 %v3047
        %v3049 = vand.u32 %v2808, 4294901760
        %v3050 = vsub.f32 %v2808, %v3049
        %v3051 = vand.u32 %v3050, 4294901760
        %v3052 = vsub.f32 %v3050, %v3051
        %v3053 = vand.u32 %v3052, 4294901760
        %3054 = vmatprep.subr.mxu0 %v3053
        %v3055 = vand.u32 %v2807, 4294901760
        %v3056 = vsub.f32 %v2807, %v3055
        %v3057 = vand.u32 %v3056, 4294901760
        %v3058 = vsub.f32 %v3056, %v3057
        %v3059 = vand.u32 %v3058, 4294901760
        %3060 = vmatpush1.msra.mxu0 %v3059
        %v3061 = vand.u32 %v2810, 4294901760
        %v3062 = vsub.f32 %v2810, %v3061
        %v3063 = vand.u32 %v3062, 4294901760
        %v3064 = vsub.f32 %v3062, %v3063
        %v3065 = vand.u32 %v3064, 4294901760
        %3066 = vmatprep.subr.mxu0 %v3065
        %v3067 = vand.u32 %v2809, 4294901760
        %v3068 = vsub.f32 %v2809, %v3067
        %v3069 = vand.u32 %v3068, 4294901760
        %v3070 = vsub.f32 %v3068, %v3069
        %v3071 = vand.u32 %v3070, 4294901760
        %3072 = vmatpush1.msra.mxu0 %v3071
        %v3073 = vand.u32 %v2812, 4294901760
        %v3074 = vsub.f32 %v2812, %v3073
        %v3075 = vand.u32 %v3074, 4294901760
        %v3076 = vsub.f32 %v3074, %v3075
        %v3077 = vand.u32 %v3076, 4294901760
        %3078 = vmatprep.subr.mxu0 %v3077
        %v3079 = vand.u32 %v2811, 4294901760
        %v3080 = vsub.f32 %v2811, %v3079
        %v3081 = vand.u32 %v3080, 4294901760
        %v3082 = vsub.f32 %v3080, %v3081
        %v3083 = vand.u32 %v3082, 4294901760
        %3084 = vmatpush1.msra.mxu0 %v3083
        %v3085 = vand.u32 %v2814, 4294901760
        %v3086 = vsub.f32 %v2814, %v3085
        %v3087 = vand.u32 %v3086, 4294901760
        %v3088 = vsub.f32 %v3086, %v3087
        %v3089 = vand.u32 %v3088, 4294901760
        %3090 = vmatprep.subr.mxu0 %v3089
        %v3091 = vand.u32 %v2813, 4294901760
        %v3092 = vsub.f32 %v2813, %v3091
        %v3093 = vand.u32 %v3092, 4294901760
        %v3094 = vsub.f32 %v3092, %v3093
        %v3095 = vand.u32 %v3094, 4294901760
        %3096 = vmatpush1.msra.mxu0 %v3095
        %v3097 = vand.u32 %v2816, 4294901760
        %v3098 = vsub.f32 %v2816, %v3097
        %v3099 = vand.u32 %v3098, 4294901760
        %v3100 = vsub.f32 %v3098, %v3099
        %v3101 = vand.u32 %v3100, 4294901760
        %3102 = vmatprep.subr.mxu0 %v3101
        %v3103 = vand.u32 %v2815, 4294901760
        %v3104 = vsub.f32 %v2815, %v3103
        %v3105 = vand.u32 %v3104, 4294901760
        %v3106 = vsub.f32 %v3104, %v3105
        %v3107 = vand.u32 %v3106, 4294901760
        %3108 = vmatpush1.msra.mxu0 %v3107
        %v3109 = vand.u32 %v2818, 4294901760
        %v3110 = vsub.f32 %v2818, %v3109
        %v3111 = vand.u32 %v3110, 4294901760
        %v3112 = vsub.f32 %v3110, %v3111
        %v3113 = vand.u32 %v3112, 4294901760
        %3114 = vmatprep.subr.mxu0 %v3113
        %v3115 = vand.u32 %v2817, 4294901760
        %v3116 = vsub.f32 %v2817, %v3115
        %v3117 = vand.u32 %v3116, 4294901760
        %v3118 = vsub.f32 %v3116, %v3117
        %v3119 = vand.u32 %v3118, 4294901760
        %3120 = vmatpush1.msra.mxu0 %v3119
        %v3121 = vand.u32 %v2820, 4294901760
        %v3122 = vsub.f32 %v2820, %v3121
        %v3123 = vand.u32 %v3122, 4294901760
        %v3124 = vsub.f32 %v3122, %v3123
        %v3125 = vand.u32 %v3124, 4294901760
        %3126 = vmatprep.subr.mxu0 %v3125
        %v3127 = vand.u32 %v2819, 4294901760
        %v3128 = vsub.f32 %v2819, %v3127
        %v3129 = vand.u32 %v3128, 4294901760
        %v3130 = vsub.f32 %v3128, %v3129
        %v3131 = vand.u32 %v3130, 4294901760
        %3132 = vmatpush1.msra.mxu0 %v3131
        %3133 = vmatprep.subr.mxu0 0.0
        %3134 = vmatpush1.msra.mxu0 0.0
        %3135 = vmatprep.subr.mxu0 0.0
        %3136 = vmatpush1.msra.mxu0 0.0
        %3137 = vmatprep.subr.mxu0 0.0
        %3138 = vmatpush1.msra.mxu0 0.0
        %3139 = vmatprep.subr.mxu0 0.0
        %3140 = vmatpush1.msra.mxu0 0.0
        %3141 = vmatprep.subr.mxu0 0.0
        %3142 = vmatpush1.msra.mxu0 0.0
        %3143 = vmatprep.subr.mxu0 0.0
        %3144 = vmatpush1.msra.mxu0 0.0
        %3145 = vmatprep.subr.mxu0 0.0
        %3146 = vmatpush1.msra.mxu0 0.0
        %3147 = vmatprep.subr.mxu0 0.0
        %3148 = vmatpush1.msra.mxu0 0.0
        %3149 = vmatprep.subr.mxu0 0.0
        %3150 = vmatpush1.msra.mxu0 0.0
        %3151 = vmatprep.subr.mxu0 0.0
        %3152 = vmatpush1.msra.mxu0 0.0
        %3153 = vmatprep.subr.mxu0 0.0
        %3154 = vmatpush1.msra.mxu0 0.0
        %3155 = vmatprep.subr.mxu0 0.0
        %3156 = vmatpush1.msra.mxu0 0.0
        %3157 = vmatprep.subr.mxu0 0.0
        %3158 = vmatpush1.msra.mxu0 0.0
        %3159 = vmatprep.subr.mxu0 0.0
        %3160 = vmatpush1.msra.mxu0 0.0
        %3161 = vmatprep.subr.mxu0 0.0
        %3162 = vmatpush1.msra.mxu0 0.0
        %3163 = vmatprep.subr.mxu0 0.0
        %3164 = vmatpush1.msra.mxu0 0.0
        %3165 = vmatprep.mubr.f32.mxu0 0.0
        %v3166 = vand.u32 %v2788, 4294901760
        %3167 = vmatmul.mubr.f32.gmra.mrb[0].mxu0 %v3166
        %v3168 = vpop.f32.mrb[0].mxu0
        %v3169 = vadd.f32 %v2937, %v3168
        %v3170 = vpop.f32.mrb[0].mxu0
        %v3171 = vadd.f32 %v2939, %v3170
        %3172 = vdwg.mxu0
        %v3173 = vand.u32 %v2790, 4294901760
        %v3174 = vsub.f32 %v2790, %v3173
        %3175 = vmatprep.subr.mxu0 %v3174
        %v3176 = vand.u32 %v2789, 4294901760
        %v3177 = vsub.f32 %v2789, %v3176
        %3178 = vmatpush1.msra.mxu0 %v3177
        %v3179 = vand.u32 %v2792, 4294901760
        %v3180 = vsub.f32 %v2792, %v3179
        %3181 = vmatprep.subr.mxu0 %v3180
        %v3182 = vand.u32 %v2791, 4294901760
        %v3183 = vsub.f32 %v2791, %v3182
        %3184 = vmatpush1.msra.mxu0 %v3183
        %v3185 = vand.u32 %v2794, 4294901760
        %v3186 = vsub.f32 %v2794, %v3185
        %3187 = vmatprep.subr.mxu0 %v3186
        %v3188 = vand.u32 %v2793, 4294901760
        %v3189 = vsub.f32 %v2793, %v3188
        %3190 = vmatpush1.msra.mxu0 %v3189
        %v3191 = vand.u32 %v2796, 4294901760
        %v3192 = vsub.f32 %v2796, %v3191
        %3193 = vmatprep.subr.mxu0 %v3192
        %v3194 = vand.u32 %v2795, 4294901760
        %v3195 = vsub.f32 %v2795, %v3194
        %3196 = vmatpush1.msra.mxu0 %v3195
        %v3197 = vand.u32 %v2798, 4294901760
        %v3198 = vsub.f32 %v2798, %v3197
        %3199 = vmatprep.subr.mxu0 %v3198
        %v3200 = vand.u32 %v2797, 4294901760
        %v3201 = vsub.f32 %v2797, %v3200
        %3202 = vmatpush1.msra.mxu0 %v3201
        %v3203 = vand.u32 %v2800, 4294901760
        %v3204 = vsub.f32 %v2800, %v3203
        %3205 = vmatprep.subr.mxu0 %v3204
        %v3206 = vand.u32 %v2799, 4294901760
        %v3207 = vsub.f32 %v2799, %v3206
        %3208 = vmatpush1.msra.mxu0 %v3207
        %v3209 = vand.u32 %v2802, 4294901760
        %v3210 = vsub.f32 %v2802, %v3209
        %3211 = vmatprep.subr.mxu0 %v3210
        %v3212 = vand.u32 %v2801, 4294901760
        %v3213 = vsub.f32 %v2801, %v3212
        %3214 = vmatpush1.msra.mxu0 %v3213
        %v3215 = vand.u32 %v2804, 4294901760
        %v3216 = vsub.f32 %v2804, %v3215
        %3217 = vmatprep.subr.mxu0 %v3216
        %v3218 = vand.u32 %v2803, 4294901760
        %v3219 = vsub.f32 %v2803, %v3218
        %3220 = vmatpush1.msra.mxu0 %v3219
        %v3221 = vand.u32 %v2806, 4294901760
        %v3222 = vsub.f32 %v2806, %v3221
        %3223 = vmatprep.subr.mxu0 %v3222
        %v3224 = vand.u32 %v2805, 4294901760
        %v3225 = vsub.f32 %v2805, %v3224
        %3226 = vmatpush1.msra.mxu0 %v3225
        %v3227 = vand.u32 %v2808, 4294901760
        %v3228 = vsub.f32 %v2808, %v3227
        %3229 = vmatprep.subr.mxu0 %v3228
        %v3230 = vand.u32 %v2807, 4294901760
        %v3231 = vsub.f32 %v2807, %v3230
        %3232 = vmatpush1.msra.mxu0 %v3231
        %v3233 = vand.u32 %v2810, 4294901760
        %v3234 = vsub.f32 %v2810, %v3233
        %3235 = vmatprep.subr.mxu0 %v3234
        %v3236 = vand.u32 %v2809, 4294901760
        %v3237 = vsub.f32 %v2809, %v3236
        %3238 = vmatpush1.msra.mxu0 %v3237
        %v3239 = vand.u32 %v2812, 4294901760
        %v3240 = vsub.f32 %v2812, %v3239
        %3241 = vmatprep.subr.mxu0 %v3240
        %v3242 = vand.u32 %v2811, 4294901760
        %v3243 = vsub.f32 %v2811, %v3242
        %3244 = vmatpush1.msra.mxu0 %v3243
        %v3245 = vand.u32 %v2814, 4294901760
        %v3246 = vsub.f32 %v2814, %v3245
        %3247 = vmatprep.subr.mxu0 %v3246
        %v3248 = vand.u32 %v2813, 4294901760
        %v3249 = vsub.f32 %v2813, %v3248
        %3250 = vmatpush1.msra.mxu0 %v3249
        %v3251 = vand.u32 %v2816, 4294901760
        %v3252 = vsub.f32 %v2816, %v3251
        %3253 = vmatprep.subr.mxu0 %v3252
        %v3254 = vand.u32 %v2815, 4294901760
        %v3255 = vsub.f32 %v2815, %v3254
        %3256 = vmatpush1.msra.mxu0 %v3255
        %v3257 = vand.u32 %v2818, 4294901760
        %v3258 = vsub.f32 %v2818, %v3257
        %3259 = vmatprep.subr.mxu0 %v3258
        %v3260 = vand.u32 %v2817, 4294901760
        %v3261 = vsub.f32 %v2817, %v3260
        %3262 = vmatpush1.msra.mxu0 %v3261
        %v3263 = vand.u32 %v2820, 4294901760
        %v3264 = vsub.f32 %v2820, %v3263
        %3265 = vmatprep.subr.mxu0 %v3264
        %v3266 = vand.u32 %v2819, 4294901760
        %v3267 = vsub.f32 %v2819, %v3266
        %3268 = vmatpush1.msra.mxu0 %v3267
        %3269 = vmatprep.subr.mxu0 0.0
        %3270 = vmatpush1.msra.mxu0 0.0
        %3271 = vmatprep.subr.mxu0 0.0
        %3272 = vmatpush1.msra.mxu0 0.0
        %3273 = vmatprep.subr.mxu0 0.0
        %3274 = vmatpush1.msra.mxu0 0.0
        %3275 = vmatprep.subr.mxu0 0.0
        %3276 = vmatpush1.msra.mxu0 0.0
        %3277 = vmatprep.subr.mxu0 0.0
        %3278 = vmatpush1.msra.mxu0 0.0
        %3279 = vmatprep.subr.mxu0 0.0
        %3280 = vmatpush1.msra.mxu0 0.0
        %3281 = vmatprep.subr.mxu0 0.0
        %3282 = vmatpush1.msra.mxu0 0.0
        %3283 = vmatprep.subr.mxu0 0.0
        %3284 = vmatpush1.msra.mxu0 0.0
        %3285 = vmatprep.subr.mxu0 0.0
        %3286 = vmatpush1.msra.mxu0 0.0
        %3287 = vmatprep.subr.mxu0 0.0
        %3288 = vmatpush1.msra.mxu0 0.0
        %3289 = vmatprep.subr.mxu0 0.0
        %3290 = vmatpush1.msra.mxu0 0.0
        %3291 = vmatprep.subr.mxu0 0.0
        %3292 = vmatpush1.msra.mxu0 0.0
        %3293 = vmatprep.subr.mxu0 0.0
        %3294 = vmatpush1.msra.mxu0 0.0
        %3295 = vmatprep.subr.mxu0 0.0
        %3296 = vmatpush1.msra.mxu0 0.0
        %3297 = vmatprep.subr.mxu0 0.0
        %3298 = vmatpush1.msra.mxu0 0.0
        %3299 = vmatprep.subr.mxu0 0.0
        %3300 = vmatpush1.msra.mxu0 0.0
        %3301 = vmatprep.mubr.f32.mxu0 0.0
        %v3302 = vand.u32 %v2788, 4294901760
        %v3303 = vsub.f32 %v2788, %v3302
        %3304 = vmatmul.mubr.f32.gmra.mrb[0].mxu0 %v3303
        %v3305 = vpop.f32.mrb[0].mxu0
        %v3306 = vadd.f32 %v3169, %v3305
        %v3307 = vpop.f32.mrb[0].mxu0
        %v3308 = vadd.f32 %v3171, %v3307
        %3309 = vdwg.mxu0
        %v3310 = vand.u32 %v2790, 4294901760
        %3311 = vmatprep.subr.mxu0 %v3310
        %v3312 = vand.u32 %v2789, 4294901760
        %3313 = vmatpush1.msra.mxu0 %v3312
        %v3314 = vand.u32 %v2792, 4294901760
        %3315 = vmatprep.subr.mxu0 %v3314
        %v3316 = vand.u32 %v2791, 4294901760
        %3317 = vmatpush1.msra.mxu0 %v3316
        %v3318 = vand.u32 %v2794, 4294901760
        %3319 = vmatprep.subr.mxu0 %v3318
        %v3320 = vand.u32 %v2793, 4294901760
        %3321 = vmatpush1.msra.mxu0 %v3320
        %v3322 = vand.u32 %v2796, 4294901760
        %3323 = vmatprep.subr.mxu0 %v3322
        %v3324 = vand.u32 %v2795, 4294901760
        %3325 = vmatpush1.msra.mxu0 %v3324
        %v3326 = vand.u32 %v2798, 4294901760
        %3327 = vmatprep.subr.mxu0 %v3326
        %v3328 = vand.u32 %v2797, 4294901760
        %3329 = vmatpush1.msra.mxu0 %v3328
        %v3330 = vand.u32 %v2800, 4294901760
        %3331 = vmatprep.subr.mxu0 %v3330
        %v3332 = vand.u32 %v2799, 4294901760
        %3333 = vmatpush1.msra.mxu0 %v3332
        %v3334 = vand.u32 %v2802, 4294901760
        %3335 = vmatprep.subr.mxu0 %v3334
        %v3336 = vand.u32 %v2801, 4294901760
        %3337 = vmatpush1.msra.mxu0 %v3336
        %v3338 = vand.u32 %v2804, 4294901760
        %3339 = vmatprep.subr.mxu0 %v3338
        %v3340 = vand.u32 %v2803, 4294901760
        %3341 = vmatpush1.msra.mxu0 %v3340
        %v3342 = vand.u32 %v2806, 4294901760
        %3343 = vmatprep.subr.mxu0 %v3342
        %v3344 = vand.u32 %v2805, 4294901760
        %3345 = vmatpush1.msra.mxu0 %v3344
        %v3346 = vand.u32 %v2808, 4294901760
        %3347 = vmatprep.subr.mxu0 %v3346
        %v3348 = vand.u32 %v2807, 4294901760
        %3349 = vmatpush1.msra.mxu0 %v3348
        %v3350 = vand.u32 %v2810, 4294901760
        %3351 = vmatprep.subr.mxu0 %v3350
        %v3352 = vand.u32 %v2809, 4294901760
        %3353 = vmatpush1.msra.mxu0 %v3352
        %v3354 = vand.u32 %v2812, 4294901760
        %3355 = vmatprep.subr.mxu0 %v3354
        %v3356 = vand.u32 %v2811, 4294901760
        %3357 = vmatpush1.msra.mxu0 %v3356
        %v3358 = vand.u32 %v2814, 4294901760
        %3359 = vmatprep.subr.mxu0 %v3358
        %v3360 = vand.u32 %v2813, 4294901760
        %3361 = vmatpush1.msra.mxu0 %v3360
        %v3362 = vand.u32 %v2816, 4294901760
        %3363 = vmatprep.subr.mxu0 %v3362
        %v3364 = vand.u32 %v2815, 4294901760
        %3365 = vmatpush1.msra.mxu0 %v3364
        %v3366 = vand.u32 %v2818, 4294901760
        %3367 = vmatprep.subr.mxu0 %v3366
        %v3368 = vand.u32 %v2817, 4294901760
        %3369 = vmatpush1.msra.mxu0 %v3368
        %v3370 = vand.u32 %v2820, 4294901760
        %3371 = vmatprep.subr.mxu0 %v3370
        %v3372 = vand.u32 %v2819, 4294901760
        %3373 = vmatpush1.msra.mxu0 %v3372
        %3374 = vmatprep.subr.mxu0 0.0
        %3375 = vmatpush1.msra.mxu0 0.0
        %3376 = vmatprep.subr.mxu0 0.0
        %3377 = vmatpush1.msra.mxu0 0.0
        %3378 = vmatprep.subr.mxu0 0.0
        %3379 = vmatpush1.msra.mxu0 0.0
        %3380 = vmatprep.subr.mxu0 0.0
        %3381 = vmatpush1.msra.mxu0 0.0
        %3382 = vmatprep.subr.mxu0 0.0
        %3383 = vmatpush1.msra.mxu0 0.0
        %3384 = vmatprep.subr.mxu0 0.0
        %3385 = vmatpush1.msra.mxu0 0.0
        %3386 = vmatprep.subr.mxu0 0.0
        %3387 = vmatpush1.msra.mxu0 0.0
        %3388 = vmatprep.subr.mxu0 0.0
        %3389 = vmatpush1.msra.mxu0 0.0
        %3390 = vmatprep.subr.mxu0 0.0
        %3391 = vmatpush1.msra.mxu0 0.0
        %3392 = vmatprep.subr.mxu0 0.0
        %3393 = vmatpush1.msra.mxu0 0.0
        %3394 = vmatprep.subr.mxu0 0.0
        %3395 = vmatpush1.msra.mxu0 0.0
        %3396 = vmatprep.subr.mxu0 0.0
        %3397 = vmatpush1.msra.mxu0 0.0
        %3398 = vmatprep.subr.mxu0 0.0
        %3399 = vmatpush1.msra.mxu0 0.0
        %3400 = vmatprep.subr.mxu0 0.0
        %3401 = vmatpush1.msra.mxu0 0.0
        %3402 = vmatprep.subr.mxu0 0.0
        %3403 = vmatpush1.msra.mxu0 0.0
        %3404 = vmatprep.subr.mxu0 0.0
        %3405 = vmatpush1.msra.mxu0 0.0
        %3406 = vmatprep.mubr.f32.mxu0 0.0
        %v3407 = vand.u32 %v2788, 4294901760
        %v3408 = vsub.f32 %v2788, %v3407
        %v3409 = vand.u32 %v3408, 4294901760
        %3410 = vmatmul.mubr.f32.gmra.mrb[0].mxu0 %v3409
        %v3411 = vpop.f32.mrb[0].mxu0
        %v3412 = vadd.f32 %v3306, %v3411
        %v3413 = vpop.f32.mrb[0].mxu0
        %v3414 = vadd.f32 %v3308, %v3413
        %3415 = vdwg.mxu0
        %v3416 = vand.u32 %v2790, 4294901760
        %v3417 = vsub.f32 %v2790, %v3416
        %v3418 = vand.u32 %v3417, 4294901760
        %3419 = vmatprep.subr.mxu0 %v3418
        %v3420 = vand.u32 %v2789, 4294901760
        %v3421 = vsub.f32 %v2789, %v3420
        %v3422 = vand.u32 %v3421, 4294901760
        %3423 = vmatpush1.msra.mxu0 %v3422
        %v3424 = vand.u32 %v2792, 4294901760
        %v3425 = vsub.f32 %v2792, %v3424
        %v3426 = vand.u32 %v3425, 4294901760
        %3427 = vmatprep.subr.mxu0 %v3426
        %v3428 = vand.u32 %v2791, 4294901760
        %v3429 = vsub.f32 %v2791, %v3428
        %v3430 = vand.u32 %v3429, 4294901760
        %3431 = vmatpush1.msra.mxu0 %v3430
        %v3432 = vand.u32 %v2794, 4294901760
        %v3433 = vsub.f32 %v2794, %v3432
        %v3434 = vand.u32 %v3433, 4294901760
        %3435 = vmatprep.subr.mxu0 %v3434
        %v3436 = vand.u32 %v2793, 4294901760
        %v3437 = vsub.f32 %v2793, %v3436
        %v3438 = vand.u32 %v3437, 4294901760
        %3439 = vmatpush1.msra.mxu0 %v3438
        %v3440 = vand.u32 %v2796, 4294901760
        %v3441 = vsub.f32 %v2796, %v3440
        %v3442 = vand.u32 %v3441, 4294901760
        %3443 = vmatprep.subr.mxu0 %v3442
        %v3444 = vand.u32 %v2795, 4294901760
        %v3445 = vsub.f32 %v2795, %v3444
        %v3446 = vand.u32 %v3445, 4294901760
        %3447 = vmatpush1.msra.mxu0 %v3446
        %v3448 = vand.u32 %v2798, 4294901760
        %v3449 = vsub.f32 %v2798, %v3448
        %v3450 = vand.u32 %v3449, 4294901760
        %3451 = vmatprep.subr.mxu0 %v3450
        %v3452 = vand.u32 %v2797, 4294901760
        %v3453 = vsub.f32 %v2797, %v3452
        %v3454 = vand.u32 %v3453, 4294901760
        %3455 = vmatpush1.msra.mxu0 %v3454
        %v3456 = vand.u32 %v2800, 4294901760
        %v3457 = vsub.f32 %v2800, %v3456
        %v3458 = vand.u32 %v3457, 4294901760
        %3459 = vmatprep.subr.mxu0 %v3458
        %v3460 = vand.u32 %v2799, 4294901760
        %v3461 = vsub.f32 %v2799, %v3460
        %v3462 = vand.u32 %v3461, 4294901760
        %3463 = vmatpush1.msra.mxu0 %v3462
        %v3464 = vand.u32 %v2802, 4294901760
        %v3465 = vsub.f32 %v2802, %v3464
        %v3466 = vand.u32 %v3465, 4294901760
        %3467 = vmatprep.subr.mxu0 %v3466
        %v3468 = vand.u32 %v2801, 4294901760
        %v3469 = vsub.f32 %v2801, %v3468
        %v3470 = vand.u32 %v3469, 4294901760
        %3471 = vmatpush1.msra.mxu0 %v3470
        %v3472 = vand.u32 %v2804, 4294901760
        %v3473 = vsub.f32 %v2804, %v3472
        %v3474 = vand.u32 %v3473, 4294901760
        %3475 = vmatprep.subr.mxu0 %v3474
        %v3476 = vand.u32 %v2803, 4294901760
        %v3477 = vsub.f32 %v2803, %v3476
        %v3478 = vand.u32 %v3477, 4294901760
        %3479 = vmatpush1.msra.mxu0 %v3478
        %v3480 = vand.u32 %v2806, 4294901760
        %v3481 = vsub.f32 %v2806, %v3480
        %v3482 = vand.u32 %v3481, 4294901760
        %3483 = vmatprep.subr.mxu0 %v3482
        %v3484 = vand.u32 %v2805, 4294901760
        %v3485 = vsub.f32 %v2805, %v3484
        %v3486 = vand.u32 %v3485, 4294901760
        %3487 = vmatpush1.msra.mxu0 %v3486
        %v3488 = vand.u32 %v2808, 4294901760
        %v3489 = vsub.f32 %v2808, %v3488
        %v3490 = vand.u32 %v3489, 4294901760
        %3491 = vmatprep.subr.mxu0 %v3490
        %v3492 = vand.u32 %v2807, 4294901760
        %v3493 = vsub.f32 %v2807, %v3492
        %v3494 = vand.u32 %v3493, 4294901760
        %3495 = vmatpush1.msra.mxu0 %v3494
        %v3496 = vand.u32 %v2810, 4294901760
        %v3497 = vsub.f32 %v2810, %v3496
        %v3498 = vand.u32 %v3497, 4294901760
        %3499 = vmatprep.subr.mxu0 %v3498
        %v3500 = vand.u32 %v2809, 4294901760
        %v3501 = vsub.f32 %v2809, %v3500
        %v3502 = vand.u32 %v3501, 4294901760
        %3503 = vmatpush1.msra.mxu0 %v3502
        %v3504 = vand.u32 %v2812, 4294901760
        %v3505 = vsub.f32 %v2812, %v3504
        %v3506 = vand.u32 %v3505, 4294901760
        %3507 = vmatprep.subr.mxu0 %v3506
        %v3508 = vand.u32 %v2811, 4294901760
        %v3509 = vsub.f32 %v2811, %v3508
        %v3510 = vand.u32 %v3509, 4294901760
        %3511 = vmatpush1.msra.mxu0 %v3510
        %v3512 = vand.u32 %v2814, 4294901760
        %v3513 = vsub.f32 %v2814, %v3512
        %v3514 = vand.u32 %v3513, 4294901760
        %3515 = vmatprep.subr.mxu0 %v3514
        %v3516 = vand.u32 %v2813, 4294901760
        %v3517 = vsub.f32 %v2813, %v3516
        %v3518 = vand.u32 %v3517, 4294901760
        %3519 = vmatpush1.msra.mxu0 %v3518
        %v3520 = vand.u32 %v2816, 4294901760
        %v3521 = vsub.f32 %v2816, %v3520
        %v3522 = vand.u32 %v3521, 4294901760
        %3523 = vmatprep.subr.mxu0 %v3522
        %v3524 = vand.u32 %v2815, 4294901760
        %v3525 = vsub.f32 %v2815, %v3524
        %v3526 = vand.u32 %v3525, 4294901760
        %3527 = vmatpush1.msra.mxu0 %v3526
        %v3528 = vand.u32 %v2818, 4294901760
        %v3529 = vsub.f32 %v2818, %v3528
        %v3530 = vand.u32 %v3529, 4294901760
        %3531 = vmatprep.subr.mxu0 %v3530
        %v3532 = vand.u32 %v2817, 4294901760
        %v3533 = vsub.f32 %v2817, %v3532
        %v3534 = vand.u32 %v3533, 4294901760
        %3535 = vmatpush1.msra.mxu0 %v3534
        %v3536 = vand.u32 %v2820, 4294901760
        %v3537 = vsub.f32 %v2820, %v3536
        %v3538 = vand.u32 %v3537, 4294901760
        %3539 = vmatprep.subr.mxu0 %v3538
        %v3540 = vand.u32 %v2819, 4294901760
        %v3541 = vsub.f32 %v2819, %v3540
        %v3542 = vand.u32 %v3541, 4294901760
        %3543 = vmatpush1.msra.mxu0 %v3542
        %3544 = vmatprep.subr.mxu0 0.0
        %3545 = vmatpush1.msra.mxu0 0.0
        %3546 = vmatprep.subr.mxu0 0.0
        %3547 = vmatpush1.msra.mxu0 0.0
        %3548 = vmatprep.subr.mxu0 0.0
        %3549 = vmatpush1.msra.mxu0 0.0
        %3550 = vmatprep.subr.mxu0 0.0
        %3551 = vmatpush1.msra.mxu0 0.0
        %3552 = vmatprep.subr.mxu0 0.0
        %3553 = vmatpush1.msra.mxu0 0.0
        %3554 = vmatprep.subr.mxu0 0.0
        %3555 = vmatpush1.msra.mxu0 0.0
        %3556 = vmatprep.subr.mxu0 0.0
        %3557 = vmatpush1.msra.mxu0 0.0
        %3558 = vmatprep.subr.mxu0 0.0
        %3559 = vmatpush1.msra.mxu0 0.0
        %3560 = vmatprep.subr.mxu0 0.0
        %3561 = vmatpush1.msra.mxu0 0.0
        %3562 = vmatprep.subr.mxu0 0.0
        %3563 = vmatpush1.msra.mxu0 0.0
        %3564 = vmatprep.subr.mxu0 0.0
        %3565 = vmatpush1.msra.mxu0 0.0
        %3566 = vmatprep.subr.mxu0 0.0
        %3567 = vmatpush1.msra.mxu0 0.0
        %3568 = vmatprep.subr.mxu0 0.0
        %3569 = vmatpush1.msra.mxu0 0.0
        %3570 = vmatprep.subr.mxu0 0.0
        %3571 = vmatpush1.msra.mxu0 0.0
        %3572 = vmatprep.subr.mxu0 0.0
        %3573 = vmatpush1.msra.mxu0 0.0
        %3574 = vmatprep.subr.mxu0 0.0
        %3575 = vmatpush1.msra.mxu0 0.0
        %3576 = vmatprep.mubr.f32.mxu0 0.0
        %v3577 = vand.u32 %v2788, 4294901760
        %3578 = vmatmul.mubr.f32.gmra.mrb[0].mxu0 %v3577
        %v3579 = vpop.f32.mrb[0].mxu0
        %v3580 = vadd.f32 %v3412, %v3579
        %v3581 = vpop.f32.mrb[0].mxu0
        %v3582 = vadd.f32 %v3414, %v3581
        %3583 = vdwg.mxu0
        %v3584 = vand.u32 %v2790, 4294901760
        %3585 = vmatprep.subr.mxu0 %v3584
        %v3586 = vand.u32 %v2789, 4294901760
        %3587 = vmatpush1.msra.mxu0 %v3586
        %v3588 = vand.u32 %v2792, 4294901760
        %3589 = vmatprep.subr.mxu0 %v3588
        %v3590 = vand.u32 %v2791, 4294901760
        %3591 = vmatpush1.msra.mxu0 %v3590
        %v3592 = vand.u32 %v2794, 4294901760
        %3593 = vmatprep.subr.mxu0 %v3592
        %v3594 = vand.u32 %v2793, 4294901760
        %3595 = vmatpush1.msra.mxu0 %v3594
        %v3596 = vand.u32 %v2796, 4294901760
        %3597 = vmatprep.subr.mxu0 %v3596
        %v3598 = vand.u32 %v2795, 4294901760
        %3599 = vmatpush1.msra.mxu0 %v3598
        %v3600 = vand.u32 %v2798, 4294901760
        %3601 = vmatprep.subr.mxu0 %v3600
        %v3602 = vand.u32 %v2797, 4294901760
        %3603 = vmatpush1.msra.mxu0 %v3602
        %v3604 = vand.u32 %v2800, 4294901760
        %3605 = vmatprep.subr.mxu0 %v3604
        %v3606 = vand.u32 %v2799, 4294901760
        %3607 = vmatpush1.msra.mxu0 %v3606
        %v3608 = vand.u32 %v2802, 4294901760
        %3609 = vmatprep.subr.mxu0 %v3608
        %v3610 = vand.u32 %v2801, 4294901760
        %3611 = vmatpush1.msra.mxu0 %v3610
        %v3612 = vand.u32 %v2804, 4294901760
        %3613 = vmatprep.subr.mxu0 %v3612
        %v3614 = vand.u32 %v2803, 4294901760
        %3615 = vmatpush1.msra.mxu0 %v3614
        %v3616 = vand.u32 %v2806, 4294901760
        %3617 = vmatprep.subr.mxu0 %v3616
        %v3618 = vand.u32 %v2805, 4294901760
        %3619 = vmatpush1.msra.mxu0 %v3618
        %v3620 = vand.u32 %v2808, 4294901760
        %3621 = vmatprep.subr.mxu0 %v3620
        %v3622 = vand.u32 %v2807, 4294901760
        %3623 = vmatpush1.msra.mxu0 %v3622
        %v3624 = vand.u32 %v2810, 4294901760
        %3625 = vmatprep.subr.mxu0 %v3624
        %v3626 = vand.u32 %v2809, 4294901760
        %3627 = vmatpush1.msra.mxu0 %v3626
        %v3628 = vand.u32 %v2812, 4294901760
        %3629 = vmatprep.subr.mxu0 %v3628
        %v3630 = vand.u32 %v2811, 4294901760
        %3631 = vmatpush1.msra.mxu0 %v3630
        %v3632 = vand.u32 %v2814, 4294901760
        %3633 = vmatprep.subr.mxu0 %v3632
        %v3634 = vand.u32 %v2813, 4294901760
        %3635 = vmatpush1.msra.mxu0 %v3634
        %v3636 = vand.u32 %v2816, 4294901760
        %3637 = vmatprep.subr.mxu0 %v3636
        %v3638 = vand.u32 %v2815, 4294901760
        %3639 = vmatpush1.msra.mxu0 %v3638
        %v3640 = vand.u32 %v2818, 4294901760
        %3641 = vmatprep.subr.mxu0 %v3640
        %v3642 = vand.u32 %v2817, 4294901760
        %3643 = vmatpush1.msra.mxu0 %v3642
        %v3644 = vand.u32 %v2820, 4294901760
        %3645 = vmatprep.subr.mxu0 %v3644
        %v3646 = vand.u32 %v2819, 4294901760
        %3647 = vmatpush1.msra.mxu0 %v3646
        %3648 = vmatprep.subr.mxu0 0.0
        %3649 = vmatpush1.msra.mxu0 0.0
        %3650 = vmatprep.subr.mxu0 0.0
        %3651 = vmatpush1.msra.mxu0 0.0
        %3652 = vmatprep.subr.mxu0 0.0
        %3653 = vmatpush1.msra.mxu0 0.0
        %3654 = vmatprep.subr.mxu0 0.0
        %3655 = vmatpush1.msra.mxu0 0.0
        %3656 = vmatprep.subr.mxu0 0.0
        %3657 = vmatpush1.msra.mxu0 0.0
        %3658 = vmatprep.subr.mxu0 0.0
        %3659 = vmatpush1.msra.mxu0 0.0
        %3660 = vmatprep.subr.mxu0 0.0
        %3661 = vmatpush1.msra.mxu0 0.0
        %3662 = vmatprep.subr.mxu0 0.0
        %3663 = vmatpush1.msra.mxu0 0.0
        %3664 = vmatprep.subr.mxu0 0.0
        %3665 = vmatpush1.msra.mxu0 0.0
        %3666 = vmatprep.subr.mxu0 0.0
        %3667 = vmatpush1.msra.mxu0 0.0
        %3668 = vmatprep.subr.mxu0 0.0
        %3669 = vmatpush1.msra.mxu0 0.0
        %3670 = vmatprep.subr.mxu0 0.0
        %3671 = vmatpush1.msra.mxu0 0.0
        %3672 = vmatprep.subr.mxu0 0.0
        %3673 = vmatpush1.msra.mxu0 0.0
        %3674 = vmatprep.subr.mxu0 0.0
        %3675 = vmatpush1.msra.mxu0 0.0
        %3676 = vmatprep.subr.mxu0 0.0
        %3677 = vmatpush1.msra.mxu0 0.0
        %3678 = vmatprep.subr.mxu0 0.0
        %3679 = vmatpush1.msra.mxu0 0.0
        %3680 = vmatprep.mubr.f32.mxu0 0.0
        %v3681 = vand.u32 %v2788, 4294901760
        %3682 = vmatmul.mubr.f32.gmra.mrb[0].mxu0 %v3681
        %v3683 = vpop.f32.mrb[0].mxu0
        %v3684 = vadd.f32 %v3580, %v3683
        %v3685 = vpop.f32.mrb[0].mxu0
        %v3686 = vadd.f32 %v3582, %v3685
        %3687 = vdwg.mxu0
        %3688 = vst [vmem:[%s448] sm:$0xff] %v3684
        %v3689 = vld [vmem:[%s455] sm:$0xff]
        %v3690 = vld [vmem:[%s455 + $0x8] sm:$0xff]
        %v3691 = vld [vmem:[%s455 + $0x10] sm:$0xff]
        %v3692 = vmul.f32 %v3686, %v3689
        %v3693 = vmul.f32 %v3686, %v3690
        %v3694 = vmul.f32 %v3686, %v3691
        %3695 = vst [vmem:[%s455] sm:$0xff] %v3692
        %3696 = vst [vmem:[%s455 + $0x8] sm:$0xff] %v3693
        %3697 = vst [vmem:[%s455 + $0x10] sm:$0xff] %v3694
        %s3698 = sand.u32 %s221, 1
        %s3699 = scalar_lea.sflag [#allocation4], %s3698
        %s3700 = sand.u32 %s221, 1
        %s3701 = smul.addr %s3700, 8
        %s3702 = scalar_lea.vmem [#allocation13], %s3701
        %s3703 = sand.u32 %s247, 1
        %s3704 = scalar_lea.sflag [#allocation15], %s3703
        %s3705 = sand.u32 %s247, 1
        %s3706 = smul.addr %s3705, 24
        %s3707 = scalar_lea.vmem [#allocation14], %s3706
        // Predicated region
        $region77: #{tpu_custom_call.1} parent=51 // pred_check
          %p3708 = pneg %p231
        $region78: #{tpu_custom_call.1} parent=51 // pred_check_branch
          %3710 = sbr.rel (%p3708) target = $region80
        $region79: #{tpu_custom_call.1} parent=51 // pred_region
          %s3712 = ssub.s32 128, 128
          %3713 = vsyncadd %s3699, %s3712
          %s3714 = smul.addr %s35, 128
          %s3715 = scalar_lea.hbm %s8, %s3714
          %s3717 = sshll.u32 %s3702, 4
          %s3718 = int_to_ptr.vmem [resolvable:$true] %s3717
          %3720 = dma.vmem_to_hbm [thread:$0]  %s3718, 128, %s3715, %s3699
        $region80: #{tpu_custom_call.1} parent=51 // pred_fallthru
          _
        // Predicated region
        $region81: #{tpu_custom_call.1} parent=51 // pred_check
          %p3721 = pneg %p257
        $region82: #{tpu_custom_call.1} parent=51 // pred_check_branch
          %3723 = sbr.rel (%p3721) target = $region84
        $region83: #{tpu_custom_call.1} parent=51 // pred_region
          %s3725 = ssub.s32 384, 384
          %3726 = vsyncadd %s3704, %s3725
          %s3727 = smul.addr %s35, 128
          %s3728 = scalar_lea.hbm %s9, %s3727
          %s3729 = sshll.u32 %s3707, 4
          %s3730 = int_to_ptr.vmem [resolvable:$true] %s3729
          %3735 = dma.vmem_to_hbm [thread:$0]  %s3730, 384, %s3728, %s3704, 128, 256, 8
        $region84: #{tpu_custom_call.1} parent=51 // pred_fallthru
          _
      $region52: #{tpu_custom_call.1} parent=5 // pred_fallthru
        _
      %p3736 = scmp.le.s32.totalorder 2, %s30
      // Predicated region
      $region85: #{tpu_custom_call.1} parent=5 // pred_check
        %p3737 = pneg %p3736
      $region86: #{tpu_custom_call.1} parent=5 // pred_check_branch
        %3739 = sbr.rel (%p3737) target = $region88
      $region87: #{tpu_custom_call.1} parent=5 // pred_region
        %s3740 = ssub.s32 %s30, 2
        // Predicated region
        $region89: #{tpu_custom_call.1} parent=87 // pred_check
          %p3741 = pneg %p237
        $region90: #{tpu_custom_call.1} parent=87 // pred_check_branch
          %3743 = sbr.rel (%p3741) target = $region92
        $region91: #{tpu_custom_call.1} parent=87 // pred_region
          %s3744 = sand.u32 %s222, 1
          %s3745 = scalar_lea.sflag [#allocation4], %s3744
          %s3746 = sand.u32 %s222, 1
          %s3747 = smul.addr %s3746, 8
          %s3748 = scalar_lea.vmem [#allocation13], %s3747
          %3749 = dma.done %s3745, 128
        $region92: #{tpu_custom_call.1} parent=87 // pred_fallthru
          _
        // Predicated region
        $region93: #{tpu_custom_call.1} parent=87 // pred_check
          %p3750 = pneg %p263
        $region94: #{tpu_custom_call.1} parent=87 // pred_check_branch
          %3752 = sbr.rel (%p3750) target = $region96
        $region95: #{tpu_custom_call.1} parent=87 // pred_region
          %s3753 = sand.u32 %s248, 1
          %s3754 = scalar_lea.sflag [#allocation15], %s3753
          %s3755 = sand.u32 %s248, 1
          %s3756 = smul.addr %s3755, 24
          %s3757 = scalar_lea.vmem [#allocation14], %s3756
          %3758 = dma.done %s3754, 384
        $region96: #{tpu_custom_call.1} parent=87 // pred_fallthru
          _
      $region88: #{tpu_custom_call.1} parent=5 // pred_fallthru
        _
    $region6: #{tpu_custom_call.1} parent=1 // loop_footer
      %s34 = sadd.s32 1, %s30
    $region7: #{tpu_custom_call.1} parent=1 // loop_footer_branch
      %29 = sbr.rel target = $region3
    $region8: #{tpu_custom_call.1} parent=1 // loop_exit
      _
    %3759 = vsyncpa [#allocation3], 1
    %s3760 = scalar_lea.sflag [#allocation3], 1
    %3761 = vsyncpa %s3760, 1
    %3762 = vsyncpa [#allocation6], 1
    %s3763 = scalar_lea.sflag [#allocation6], 1
    %3764 = vsyncpa %s3763, 1
    %3765 = vsyncpa [#allocation9], 1
    %3766 = vsyncpa [#allocation12], 1
    %3767 = vsyncpa [#allocation4], 1
    %s3768 = scalar_lea.sflag [#allocation4], 1
    %3769 = vsyncpa %s3768, 1
    %3770 = vsyncpa [#allocation15], 1
    %s3771 = scalar_lea.sflag [#allocation15], 1
    %3772 = vsyncpa %s3771, 1

</llo_original>
